<compile_context>
chip_gen: v7x
topology: tpu7x:2x2x1
jax: 0.10.0
libtpu: 0.0.40
codegen_flags: <defaults>
</compile_context>

<pallas_src>
import math

import jax
import jax.numpy as jnp
from jax import lax
from jax.experimental import pallas as pl
from jax.experimental.pallas import tpu as pltpu

MATMUL_DTYPE = jnp.bfloat16   # MXU operand dtype (accumulation is always f32)
LN_EPS = 1e-5
BN_EPS = 1e-5


# ----------------------------------------------------------------------------
# helpers
# ----------------------------------------------------------------------------
def _row_tile(M, max_tile=256):
    """Largest row tile <= max_tile that divides M and is sublane aligned."""
    if M <= max_tile:
        return M
    for t in range(max_tile, 7, -8):
        if M % t == 0:
            return t
    return M


def _cparams(*sems):
    return pltpu.CompilerParams(dimension_semantics=sems)


# ----------------------------------------------------------------------------
# Fused Pallas kernels
# ----------------------------------------------------------------------------
def ffn_block_pallas(x, ln_g, ln_b, w1, b1, w2, b2, *, res_factor=0.5,
                     final_ln=None):
    """out = x + res_factor * (Swish(LN(x) @ w1 + b1) @ w2 + b2).

    If final_ln=(gamma, beta) is given, a trailing LayerNorm is fused in.
    """
    M, D = x.shape
    E = w1.shape[1]
    TM = _row_tile(M)
    has_final = final_ln is not None
    fg, fb = final_ln if has_final else (jnp.ones((D,), jnp.float32),
                                         jnp.zeros((D,), jnp.float32))

    def kernel(x_ref, g_ref, b_ref, w1_ref, b1_ref, w2_ref, b2_ref,
               fg_ref, fb_ref, o_ref):
        xv = x_ref[...]
        mu = jnp.mean(xv, axis=-1, keepdims=True)
        var = jnp.mean(jnp.square(xv - mu), axis=-1, keepdims=True)
        y = (xv - mu) * lax.rsqrt(var + LN_EPS) * g_ref[...] + b_ref[...]
        h = jnp.dot(y.astype(MATMUL_DTYPE), w1_ref[...],
                    preferred_element_type=jnp.float32) + b1_ref[...]
        h = h * jax.nn.sigmoid(h)                      # Swish (f32)
        z = jnp.dot(h.astype(MATMUL_DTYPE), w2_ref[...],
                    preferred_element_type=jnp.float32) + b2_ref[...]
        out = xv + res_factor * z                      # residual
        if has_final:
            mu2 = jnp.mean(out, axis=-1, keepdims=True)
            var2 = jnp.mean(jnp.square(out - mu2), axis=-1, keepdims=True)
            out = (out - mu2) * lax.rsqrt(var2 + LN_EPS) * fg_ref[...] + fb_ref[...]
        o_ref[...] = out

    return pl.pallas_call(
        kernel,
        out_shape=jax.ShapeDtypeStruct((M, D), jnp.float32),
        grid=(M // TM,),
        in_specs=[
            pl.BlockSpec((TM, D), lambda i: (i, 0)),
            pl.BlockSpec((1, D), lambda i: (0, 0)),
            pl.BlockSpec((1, D), lambda i: (0, 0)),
            pl.BlockSpec((D, E), lambda i: (0, 0)),
            pl.BlockSpec((1, E), lambda i: (0, 0)),
            pl.BlockSpec((E, D), lambda i: (0, 0)),
            pl.BlockSpec((1, D), lambda i: (0, 0)),
            pl.BlockSpec((1, D), lambda i: (0, 0)),
            pl.BlockSpec((1, D), lambda i: (0, 0)),
        ],
        out_specs=pl.BlockSpec((TM, D), lambda i: (i, 0)),
        compiler_params=_cparams("parallel"),
    )(x, ln_g.reshape(1, D), ln_b.reshape(1, D),
      w1.astype(MATMUL_DTYPE), b1.reshape(1, E),
      w2.astype(MATMUL_DTYPE), b2.reshape(1, D),
      fg.reshape(1, D), fb.reshape(1, D))


def linear_pallas(x, w, b, *, pre_ln=None):
    """y = (LN(x) if pre_ln else x) @ w + b, row-tiled, bf16 MXU operands."""
    M, K = x.shape
    N = w.shape[1]
    TM = _row_tile(M)
    has_ln = pre_ln is not None
    lg, lb = pre_ln if has_ln else (jnp.ones((K,), jnp.float32),
                                    jnp.zeros((K,), jnp.float32))

    def kernel(x_ref, lg_ref, lb_ref, w_ref, b_ref, o_ref):
        xv = x_ref[...]
        if has_ln:
            mu = jnp.mean(xv, axis=-1, keepdims=True)
            var = jnp.mean(jnp.square(xv - mu), axis=-1, keepdims=True)
            xv = (xv - mu) * lax.rsqrt(var + LN_EPS) * lg_ref[...] + lb_ref[...]
        o_ref[...] = jnp.dot(xv.astype(MATMUL_DTYPE), w_ref[...],
                             preferred_element_type=jnp.float32) + b_ref[...]

    return pl.pallas_call(
        kernel,
        out_shape=jax.ShapeDtypeStruct((M, N), jnp.float32),
        grid=(M // TM,),
        in_specs=[
            pl.BlockSpec((TM, K), lambda i: (i, 0)),
            pl.BlockSpec((1, K), lambda i: (0, 0)),
            pl.BlockSpec((1, K), lambda i: (0, 0)),
            pl.BlockSpec((K, N), lambda i: (0, 0)),
            pl.BlockSpec((1, N), lambda i: (0, 0)),
        ],
        out_specs=pl.BlockSpec((TM, N), lambda i: (i, 0)),
        compiler_params=_cparams("parallel"),
    )(x, lg.reshape(1, K), lb.reshape(1, K),
      w.astype(MATMUL_DTYPE), b.reshape(1, N))


def conv_block_pallas(x, ln_g, ln_b, pw1_w, pw1_b, dw_w, bn_g, bn_b, bn_mean,
                      bn_var, pw2_w, pw2_b):
    """Fused Conformer conv module with residual.  x: (B, T, D)."""
    B, T, D = x.shape
    K = dw_w.shape[0]
    pad_l = (K - 1) // 2
    pad_r = K - 1 - pad_l
    # GLU as two lane-aligned matmuls (value half / gate half of PW1).
    w1a, w1b = pw1_w[:, :D], pw1_w[:, D:]
    b1a, b1b = pw1_b[:D], pw1_b[D:]

    def kernel(x_ref, lg_ref, lb_ref, w1a_ref, b1a_ref, w1b_ref, b1b_ref,
               dw_ref, bng_ref, bnb_ref, bnm_ref, bnv_ref, w2_ref, b2_ref,
               o_ref):
        xv = x_ref[...]                                      # (T, D)
        mu = jnp.mean(xv, axis=-1, keepdims=True)
        var = jnp.mean(jnp.square(xv - mu), axis=-1, keepdims=True)
        y = (xv - mu) * lax.rsqrt(var + LN_EPS) * lg_ref[...] + lb_ref[...]
        yb = y.astype(MATMUL_DTYPE)
        a = jnp.dot(yb, w1a_ref[...], preferred_element_type=jnp.float32) + b1a_ref[...]
        g = jnp.dot(yb, w1b_ref[...], preferred_element_type=jnp.float32) + b1b_ref[...]
        u = a * jax.nn.sigmoid(g)                            # GLU  (T, D)
        # depthwise conv, 'same' zero padding done in VMEM (no HBM pad copy)
        up = jnp.concatenate([jnp.zeros((pad_l, D), jnp.float32), u,
                              jnp.zeros((pad_r, D), jnp.float32)], axis=0)
        dwv = dw_ref[...]                                    # (K, D)
        acc = jnp.zeros((T, D), jnp.float32)
        for k in range(K):                                   # small static tap loop
            acc = acc + up[k:k + T, :] * dwv[k:k + 1, :]
        # eval-mode BatchNorm1d + Swish
        z = (acc - bnm_ref[...]) * lax.rsqrt(bnv_ref[...] + BN_EPS) * bng_ref[...] + bnb_ref[...]
        z = z * jax.nn.sigmoid(z)
        out = jnp.dot(z.astype(MATMUL_DTYPE), w2_ref[...],
                      preferred_element_type=jnp.float32) + b2_ref[...]
        o_ref[...] = xv + out                                # residual

    # TODO(synk): tile the T axis (with a K-1 halo) for long sequences so the
    # per-step block stays within the v7x 64 MiB VMEM budget.
    vec = lambda v: v.reshape(1, D)
    return pl.pallas_call(
        kernel,
        out_shape=jax.ShapeDtypeStruct((B, T, D), jnp.float32),
        grid=(B,),
        in_specs=[
            pl.BlockSpec((None, T, D), lambda b: (b, 0, 0)),
            pl.BlockSpec((1, D), lambda b: (0, 0)),
            pl.BlockSpec((1, D), lambda b: (0, 0)),
            pl.BlockSpec((D, D), lambda b: (0, 0)),
            pl.BlockSpec((1, D), lambda b: (0, 0)),
            pl.BlockSpec((D, D), lambda b: (0, 0)),
            pl.BlockSpec((1, D), lambda b: (0, 0)),
            pl.BlockSpec((K, D), lambda b: (0, 0)),
            pl.BlockSpec((1, D), lambda b: (0, 0)),
            pl.BlockSpec((1, D), lambda b: (0, 0)),
            pl.BlockSpec((1, D), lambda b: (0, 0)),
            pl.BlockSpec((1, D), lambda b: (0, 0)),
            pl.BlockSpec((D, D), lambda b: (0, 0)),
            pl.BlockSpec((1, D), lambda b: (0, 0)),
        ],
        out_specs=pl.BlockSpec((None, T, D), lambda b: (b, 0, 0)),
        compiler_params=_cparams("parallel"),
    )(x, vec(ln_g), vec(ln_b),
      w1a.astype(MATMUL_DTYPE), b1a.reshape(1, D),
      w1b.astype(MATMUL_DTYPE), b1b.reshape(1, D),
      dw_w, vec(bn_g), vec(bn_b), vec(bn_mean), vec(bn_var),
      pw2_w.astype(MATMUL_DTYPE), pw2_b.reshape(1, D))


def bilstm_pallas(xproj_tbh, w_hh_f, w_hh_b):
    """Fused bidirectional LSTM recurrence (PyTorch gate order i, f, g, o).

    xproj_tbh: (T, B, 8H) where the last dim is [fwd gates 4H | bwd gates 4H],
               already containing x @ W_ih^T + b_ih + b_hh per direction.
    Returns (T, B, 2H) = [forward h | backward h], zero initial states.

    Both directions run in one kernel; each timestep issues a single MXU call
    (2B, 2H) @ (2H, 4H) using a block-diagonal W_hh realised through a masked
    augmented hidden state.  The backward direction is indexed as T-1-t inside
    the kernel, so no JAX-side reversal copies are needed.
    """
    T, B, H8 = xproj_tbh.shape
    H = H8 // 8
    whh_cat = jnp.concatenate([w_hh_f, w_hh_b], axis=0).astype(MATMUL_DTYPE)  # (2H,4H)

    def kernel(xp_ref, whh_ref, o_ref):
        whh = whh_ref[...]
        row = lax.broadcasted_iota(jnp.int32, (2 * B, 1), 0)
        fwd_mask = (row < B).astype(jnp.float32)             # (2B, 1)

        def step(t, carry):
            h, c = carry                                     # (2B, H) f32
            rt = T - 1 - t
            row_f = xp_ref[t]                                # (B, 8H)
            row_b = xp_ref[rt]                               # (B, 8H)
            xp_t = jnp.concatenate([row_f[:, :4 * H], row_b[:, 4 * H:]], axis=0)
            # masked augmented hidden -> one matmul serves both directions
            h_aug = jnp.concatenate([h * fwd_mask, h * (1.0 - fwd_mask)], axis=-1)
            gates = xp_t + jnp.dot(h_aug.astype(MATMUL_DTYPE), whh,
                                   preferred_element_type=jnp.float32)
            # gate slices are 128-lane aligned whenever H % 128 == 0
            i_g = jax.nn.sigmoid(gates[:, 0:H])
            f_g = jax.nn.sigmoid(gates[:, H:2 * H])
            g_g = jnp.tanh(gates[:, 2 * H:3 * H])
            o_g = jax.nn.sigmoid(gates[:, 3 * H:4 * H])
            c = f_g * c + i_g * g_g
            h = o_g * jnp.tanh(c)
            o_ref[t, :, 0:H] = h[0:B]                        # forward dir
            o_ref[rt, :, H:2 * H] = h[B:2 * B]               # backward dir
            return (h, c)

        zero = jnp.zeros((2 * B, H), jnp.float32)
        lax.fori_loop(0, T, step, (zero, zero))

    return pl.pallas_call(
        kernel,
        out_shape=jax.ShapeDtypeStruct((T, B, 2 * H), jnp.float32),
        grid=(1,),
        in_specs=[
            pl.BlockSpec((T, B, 8 * H), lambda i: (0, 0, 0)),
            pl.BlockSpec((2 * H, 4 * H), lambda i: (0, 0)),
        ],
        out_specs=pl.BlockSpec((T, B, 2 * H), lambda i: (0, 0, 0)),
        compiler_params=_cparams("arbitrary"),
    )(xproj_tbh, whh_cat)


def attention_core_pallas(qkv, pos_proj, u_bias, v_bias, num_heads, scale):
    """Per-batch fused relative self-attention core (all heads in one step).

    qkv:      (B, T, 3*dm)  rows = [q | k | v] projections (bias included)
    pos_proj: (T, dm)       positional embedding projection (shared over batch)
    returns context (B, T, dm) with heads merged (lane-dense output).
    """
    B, T, dm3 = qkv.shape
    dm = dm3 // 3
    Hh = num_heads
    dh = dm // Hh

    def kernel(qkv_ref, pos_ref, u_ref, v_ref, o_ref):
        qkv_v = qkv_ref[...]                    # (T, 3dm)
        pos = pos_ref[...]                      # (T, dm)
        q = qkv_v[:, 0:dm]
        k = qkv_v[:, dm:2 * dm]
        v = qkv_v[:, 2 * dm:3 * dm]

        def split_heads(m):                     # (T, dm) -> (Hh, T, dh)
            return jnp.stack([m[:, h * dh:(h + 1) * dh] for h in range(Hh)],
                             axis=0)

        qh = split_heads(q)
        kh = split_heads(k).astype(MATMUL_DTYPE)
        vh = split_heads(v).astype(MATMUL_DTYPE)
        ph = split_heads(pos).astype(MATMUL_DTYPE)
        ub = u_ref[...][:, None, :]             # (Hh, 1, dh)
        vb = v_ref[...][:, None, :]

        content = jnp.einsum('hqd,hkd->hqk', (qh + ub).astype(MATMUL_DTYPE),
                             kh, preferred_element_type=jnp.float32)
        pos_raw = jnp.einsum('hqd,hkd->hqk', (qh + vb).astype(MATMUL_DTYPE),
                             ph, preferred_element_type=jnp.float32)

        # Transformer-XL relative shift, in-register.  Equivalent to the
        # reference pad -> reshape -> drop-first-row trick:
        #   out[r, c] = S[r, T-1-r+c]  (c <= r);  0 (c == r+1);
        #   out[r, c] = S[r+1, c-r-2]  (c >= r+2)
        # i.e. row r is a length-T window starting at column T-1-r of
        # C = [ S | zero column | S shifted up one row ].
        s_up = jnp.concatenate(
            [pos_raw[:, 1:, :], jnp.zeros((Hh, 1, T), jnp.float32)], axis=1)
        cbuf = jnp.concatenate(
            [pos_raw, jnp.zeros((Hh, T, 1), jnp.float32), s_up], axis=-1)
        # TODO(synk): for long T replace the unrolled skew below with a strided
        # pltpu.roll (per-row rotate) so the op count stays O(1).
        pos_shift = jnp.concatenate(
            [cbuf[:, r:r + 1, T - 1 - r:2 * T - 1 - r] for r in range(T)],
            axis=1)

        score = (content + pos_shift) * scale
        score = score - jnp.max(score, axis=-1, keepdims=True)
        e = jnp.exp(score)
        attn = e * pl.reciprocal(jnp.sum(e, axis=-1, keepdims=True), approx=True)
        ctx = jnp.einsum('hqk,hkd->hqd', attn.astype(MATMUL_DTYPE), vh,
                         preferred_element_type=jnp.float32)
        # merge heads back into a lane-dense (T, dm) tile
        o_ref[...] = jnp.concatenate([ctx[h] for h in range(Hh)], axis=-1)

    return pl.pallas_call(
        kernel,
        out_shape=jax.ShapeDtypeStruct((B, T, dm), jnp.float32),
        grid=(B,),
        in_specs=[
            pl.BlockSpec((None, T, 3 * dm), lambda b: (b, 0, 0)),
            pl.BlockSpec((T, dm), lambda b: (0, 0)),
            pl.BlockSpec((Hh, dh), lambda b: (0, 0)),
            pl.BlockSpec((Hh, dh), lambda b: (0, 0)),
        ],
        out_specs=pl.BlockSpec((None, T, dm), lambda b: (b, 0, 0)),
        compiler_params=_cparams("parallel"),
    )(qkv, pos_proj, u_bias, v_bias)


def attn_output_pallas(ctx, residual, w_o, b_o, w_fc, b_fc):
    """out = residual + ((ctx @ w_o + b_o) @ w_fc + b_fc)."""
    M, dm = ctx.shape
    D = w_fc.shape[1]
    TM = _row_tile(M)

    def kernel(c_ref, r_ref, wo_ref, bo_ref, wf_ref, bf_ref, o_ref):
        att = jnp.dot(c_ref[...].astype(MATMUL_DTYPE), wo_ref[...],
                      preferred_element_type=jnp.float32) + bo_ref[...]
        out = jnp.dot(att.astype(MATMUL_DTYPE), wf_ref[...],
                      preferred_element_type=jnp.float32) + bf_ref[...]
        o_ref[...] = r_ref[...] + out

    return pl.pallas_call(
        kernel,
        out_shape=jax.ShapeDtypeStruct((M, D), jnp.float32),
        grid=(M // TM,),
        in_specs=[
            pl.BlockSpec((TM, dm), lambda i: (i, 0)),
            pl.BlockSpec((TM, D), lambda i: (i, 0)),
            pl.BlockSpec((dm, dm), lambda i: (0, 0)),
            pl.BlockSpec((1, dm), lambda i: (0, 0)),
            pl.BlockSpec((dm, D), lambda i: (0, 0)),
            pl.BlockSpec((1, D), lambda i: (0, 0)),
        ],
        out_specs=pl.BlockSpec((TM, D), lambda i: (i, 0)),
        compiler_params=_cparams("parallel"),
    )(ctx, residual, w_o.astype(MATMUL_DTYPE), b_o.reshape(1, dm),
      w_fc.astype(MATMUL_DTYPE), b_fc.reshape(1, D))


# ----------------------------------------------------------------------------
# Plain-JAX glue: positional encoding, params, forward pass
# ----------------------------------------------------------------------------
def positional_encoding(length, d_model):
    position = jnp.arange(length, dtype=jnp.float32)[:, None]
    div_term = jnp.exp(jnp.arange(0, d_model, 2, dtype=jnp.float32)
                       * (-math.log(10000.0) / d_model))
    pe = jnp.zeros((length, d_model), jnp.float32)
    pe = pe.at[:, 0::2].set(jnp.sin(position * div_term))
    pe = pe.at[:, 1::2].set(jnp.cos(position * div_term))
    return pe


def init_params(key, D, num_heads, ff_expand=4, conv_expand=2, K=7):
    dm = 2 * D
    dh = dm // num_heads
    keys = iter(jax.random.split(key, 48))

    def w(shape):
        fan_in = shape[0]
        return (jax.random.normal(next(keys), shape, jnp.float32)
                / math.sqrt(fan_in)).astype(jnp.float32)

    def bvec(shape):
        return (0.01 * jax.random.normal(next(keys), shape, jnp.float32)).astype(jnp.float32)

    p = {}
    for pre in ("ff1", "ff2"):
        p[pre + "_ln_g"] = jnp.ones((D,), jnp.float32)
        p[pre + "_ln_b"] = jnp.zeros((D,), jnp.float32)
        p[pre + "_w1"] = w((D, ff_expand * D)); p[pre + "_b1"] = bvec((ff_expand * D,))
        p[pre + "_w2"] = w((ff_expand * D, D)); p[pre + "_b2"] = bvec((D,))

    p["conv_ln_g"] = jnp.ones((D,), jnp.float32)
    p["conv_ln_b"] = jnp.zeros((D,), jnp.float32)
    p["conv_pw1_w"] = w((D, conv_expand * D)); p["conv_pw1_b"] = bvec((conv_expand * D,))
    p["conv_dw_w"] = w((K, D))                 # depthwise conv, bias=False
    p["bn_g"] = jnp.ones((D,), jnp.float32)
    p["bn_b"] = jnp.zeros((D,), jnp.float32)
    p["bn_mean"] = jnp.zeros((D,), jnp.float32)
    p["bn_var"] = jnp.ones((D,), jnp.float32)
    p["conv_pw2_w"] = w((D, D)); p["conv_pw2_b"] = bvec((D,))

    p["sa_ln_g"] = jnp.ones((D,), jnp.float32)
    p["sa_ln_b"] = jnp.zeros((D,), jnp.float32)
    for d in ("f", "b"):
        p[f"lstm_wih_{d}"] = w((D, 4 * D))
        p[f"lstm_whh_{d}"] = w((D, 4 * D))
        p[f"lstm_bih_{d}"] = bvec((4 * D,))
        p[f"lstm_bhh_{d}"] = bvec((4 * D,))
    for n in ("q", "k", "v", "o", "pos"):
        p[f"att_w{n}"] = w((dm, dm))
    for n in ("q", "k", "v", "o"):
        p[f"att_b{n}"] = bvec((dm,))
    p["att_u_bias"] = w((num_heads, dh))
    p["att_v_bias"] = w((num_heads, dh))
    p["fc_w"] = w((dm, D)); p["fc_b"] = bvec((D,))

    p["final_ln_g"] = jnp.ones((D,), jnp.float32)
    p["final_ln_b"] = jnp.zeros((D,), jnp.float32)
    return p


def cnn_bilstm_sa_block_forward(x, p, num_heads):
    B, T, D = x.shape
    dm = 2 * D
    x2 = x.reshape(B * T, D)

    # ---- 1. FeedForward module, half-step residual (one fused kernel) ----
    x2 = ffn_block_pallas(x2, p["ff1_ln_g"], p["ff1_ln_b"],
                          p["ff1_w1"], p["ff1_b1"], p["ff1_w2"], p["ff1_b2"],
                          res_factor=0.5)

    # ---- 2. Conformer conv module, full residual (one fused kernel) ----
    x2 = conv_block_pallas(x2.reshape(B, T, D),
                           p["conv_ln_g"], p["conv_ln_b"],
                           p["conv_pw1_w"], p["conv_pw1_b"], p["conv_dw_w"],
                           p["bn_g"], p["bn_b"], p["bn_mean"], p["bn_var"],
                           p["conv_pw2_w"], p["conv_pw2_b"]).reshape(B * T, D)

    # ---- 3. BiLSTM + relative multi-head self-attention, full residual ----
    # 3a. LayerNorm + both directions' LSTM input projections in one matmul.
    w_ih = jnp.concatenate([p["lstm_wih_f"], p["lstm_wih_b"]], axis=1)   # (D, 8D)
    b_ih = jnp.concatenate([p["lstm_bih_f"] + p["lstm_bhh_f"],
                            p["lstm_bih_b"] + p["lstm_bhh_b"]])          # (8D,)
    xproj = linear_pallas(x2, w_ih, b_ih, pre_ln=(p["sa_ln_g"], p["sa_ln_b"]))
    xproj = xproj.reshape(B, T, 8 * D).transpose(1, 0, 2)                # (T, B, 8D)

    # 3b. Fused bidirectional recurrence (single kernel).
    lstm_out = bilstm_pallas(xproj, p["lstm_whh_f"], p["lstm_whh_b"])    # (T, B, 2D)
    lo2 = lstm_out.transpose(1, 0, 2).reshape(B * T, dm)

    # 3c. Fused Q/K/V projection; positional projection done once on (T, dm).
    w_qkv = jnp.concatenate([p["att_wq"], p["att_wk"], p["att_wv"]], axis=1)
    b_qkv = jnp.concatenate([p["att_bq"], p["att_bk"], p["att_bv"]])
    qkv = linear_pallas(lo2, w_qkv, b_qkv)                               # (BT, 3dm)
    pos = positional_encoding(T, dm)
    posp = linear_pallas(pos, p["att_wpos"], jnp.zeros((dm,), jnp.float32))

    # 3d. Fused attention core (scores + relative shift + softmax + attn@V).
    ctx = attention_core_pallas(qkv.reshape(B, T, 3 * dm), posp,
                                p["att_u_bias"], p["att_v_bias"],
                                num_heads, 1.0 / math.sqrt(dm))          # (B, T, dm)

    # 3e. out_proj -> fc -> residual, fused.
    x2 = attn_output_pallas(ctx.reshape(B * T, dm), x2,
                            p["att_wo"], p["att_bo"], p["fc_w"], p["fc_b"])

    # ---- 4 + 5. Second FeedForward (half-step residual) + final LayerNorm ----
    x2 = ffn_block_pallas(x2, p["ff2_ln_g"], p["ff2_ln_b"],
                          p["ff2_w1"], p["ff2_b1"], p["ff2_w2"], p["ff2_b2"],
                          res_factor=0.5,
                          final_ln=(p["final_ln_g"], p["final_ln_b"]))
    return x2.reshape(B, T, D)


# ----------------------------------------------------------------------------
# Pure-JAX (f32) reference of the same module, for a runtime sanity check.
# ----------------------------------------------------------------------------
def reference_forward(x, p, num_heads):
    B, T, D = x.shape
    dm = 2 * D
    dh = dm // num_heads

    def ln(v, g, b):
        mu = jnp.mean(v, -1, keepdims=True)
        var = jnp.mean(jnp.square(v - mu), -1, keepdims=True)
        return (v - mu) / jnp.sqrt(var + LN_EPS) * g + b

    def swish(v):
        return v * jax.nn.sigmoid(v)

    def ff(v, pre):
        y = ln(v, p[pre + "_ln_g"], p[pre + "_ln_b"])
        y = swish(y @ p[pre + "_w1"] + p[pre + "_b1"])
        return y @ p[pre + "_w2"] + p[pre + "_b2"]

    h = x
    h = h + 0.5 * ff(h, "ff1")

    # conv module
    c = ln(h, p["conv_ln_g"], p["conv_ln_b"])
    c = c @ p["conv_pw1_w"] + p["conv_pw1_b"]
    c = c[..., :D] * jax.nn.sigmoid(c[..., D:])
    K = p["conv_dw_w"].shape[0]
    pad = (K - 1) // 2
    cp = jnp.pad(c, ((0, 0), (pad, K - 1 - pad), (0, 0)))
    conv = sum(cp[:, k:k + T, :] * p["conv_dw_w"][k] for k in range(K))
    conv = (conv - p["bn_mean"]) / jnp.sqrt(p["bn_var"] + BN_EPS) * p["bn_g"] + p["bn_b"]
    conv = swish(conv)
    conv = conv @ p["conv_pw2_w"] + p["conv_pw2_b"]
    h = h + conv

    # BiLSTM + relative MHSA
    a = ln(h, p["sa_ln_g"], p["sa_ln_b"])

    def lstm_dir(seq, wih, whh, bih, bhh):     # seq: (B, T, D)
        def step(carry, xt):
            hh, cc = carry
            g = xt @ wih + bih + bhh + hh @ whh
            i = jax.nn.sigmoid(g[:, :D]); f = jax.nn.sigmoid(g[:, D:2 * D])
            gg = jnp.tanh(g[:, 2 * D:3 * D]); o = jax.nn.sigmoid(g[:, 3 * D:])
            cc = f * cc + i * gg
            hh = o * jnp.tanh(cc)
            return (hh, cc), hh
        z = jnp.zeros((B, D), jnp.float32)
        _, hs = lax.scan(step, (z, z), seq.transpose(1, 0, 2))
        return hs.transpose(1, 0, 2)

    hf = lstm_dir(a, p["lstm_wih_f"], p["lstm_whh_f"],
                  p["lstm_bih_f"], p["lstm_bhh_f"])
    hb = lstm_dir(a[:, ::-1], p["lstm_wih_b"], p["lstm_whh_b"],
                  p["lstm_bih_b"], p["lstm_bhh_b"])[:, ::-1]
    lo = jnp.concatenate([hf, hb], axis=-1)                       # (B, T, 2D)

    q = (lo @ p["att_wq"] + p["att_bq"]).reshape(B, T, num_heads, dh)
    k = (lo @ p["att_wk"] + p["att_bk"]).reshape(B, T, num_heads, dh)
    v = (lo @ p["att_wv"] + p["att_bv"]).reshape(B, T, num_heads, dh)
    pp = (positional_encoding(T, dm) @ p["att_wpos"]).reshape(T, num_heads, dh)

    content = jnp.einsum("bqhd,bkhd->bhqk", q + p["att_u_bias"], k)
    pos_raw = jnp.einsum("bqhd,khd->bhqk", q + p["att_v_bias"], pp)
    zeros = jnp.zeros((B, num_heads, T, 1), jnp.float32)
    padded = jnp.concatenate([zeros, pos_raw], axis=-1).reshape(B, num_heads, T + 1, T)
    pos_shift = padded[:, :, 1:].reshape(B, num_heads, T, T)
    score = (content + pos_shift) / math.sqrt(dm)
    attn = jax.nn.softmax(score, axis=-1)
    ctx = jnp.einsum("bhqk,bkhd->bqhd", attn, v).reshape(B, T, dm)
    att_o = ctx @ p["att_wo"] + p["att_bo"]
    att_o = att_o @ p["fc_w"] + p["fc_b"]
    h = h + att_o

    h = h + 0.5 * ff(h, "ff2")
    return ln(h, p["final_ln_g"], p["final_ln_b"])


# ----------------------------------------------------------------------------
if __name__ == "__main__":
    B, T, D = 2, 8, 32          # batch, seq, encoder_dim
    num_heads = 4               # attention d_model = 2*D = 64, d_head = 16
    conv_kernel_size = 7

    key = jax.random.PRNGKey(0)
    kx, kp = jax.random.split(key)
    x = jax.random.normal(kx, (B, T, D), jnp.float32)
    params = init_params(kp, D, num_heads, K=conv_kernel_size)

    fwd = jax.jit(lambda xx, pp: cnn_bilstm_sa_block_forward(xx, pp, num_heads))
    out = jax.block_until_ready(fwd(x, params))

    assert out.shape == (B, T, D)
    assert bool(jnp.all(jnp.isfinite(out)))

    # loose sanity check vs an f32 pure-JAX reference (kernels use bf16 MXU
    # operands and an approx reciprocal in softmax, hence the wide tolerance).
    ref = jax.jit(lambda xx, pp: reference_forward(xx, pp, num_heads))(x, params)
    err = float(jnp.max(jnp.abs(out - ref)))
    assert err < 3e-1, f"mismatch vs reference: {err}"

    print("KERNEL_OK")
</pallas_src>

<mosaic_0001>
module attributes {stable_mosaic.version = 11 : i64} {
  func.func @kernel(%arg0: i32, %arg1: memref<16x32xf32, #tpu.memory_space<vmem>>, %arg2: memref<1x32xf32, #tpu.memory_space<vmem>>, %arg3: memref<1x32xf32, #tpu.memory_space<vmem>>, %arg4: memref<32x128xbf16, #tpu.memory_space<vmem>>, %arg5: memref<1x128xf32, #tpu.memory_space<vmem>>, %arg6: memref<128x32xbf16, #tpu.memory_space<vmem>>, %arg7: memref<1x32xf32, #tpu.memory_space<vmem>>, %arg8: memref<1x32xf32, #tpu.memory_space<vmem>>, %arg9: memref<1x32xf32, #tpu.memory_space<vmem>>, %arg10: memref<16x32xf32, #tpu.memory_space<vmem>>) attributes {dimension_semantics = [#tpu.dimension_semantics<parallel>], iteration_bounds = array<i64: 1>, scalar_prefetch = 0 : i64, scratch_operands = 0 : i64, tpu.core_type = #tpu.core_type<tc>, window_params = [{transform_indices = @transform_0, window_bounds = array<i64: 16, 32>}, {pipeline_mode = #tpu.pipeline_mode<synchronous>, transform_indices = @transform_1, window_bounds = array<i64: 1, 32>}, {pipeline_mode = #tpu.pipeline_mode<synchronous>, transform_indices = @transform_2, window_bounds = array<i64: 1, 32>}, {pipeline_mode = #tpu.pipeline_mode<synchronous>, transform_indices = @transform_3, window_bounds = array<i64: 32, 128>}, {pipeline_mode = #tpu.pipeline_mode<synchronous>, transform_indices = @transform_4, window_bounds = array<i64: 1, 128>}, {pipeline_mode = #tpu.pipeline_mode<synchronous>, transform_indices = @transform_5, window_bounds = array<i64: 128, 32>}, {pipeline_mode = #tpu.pipeline_mode<synchronous>, transform_indices = @transform_6, window_bounds = array<i64: 1, 32>}, {pipeline_mode = #tpu.pipeline_mode<synchronous>, transform_indices = @transform_7, window_bounds = array<i64: 1, 32>}, {pipeline_mode = #tpu.pipeline_mode<synchronous>, transform_indices = @transform_8, window_bounds = array<i64: 1, 32>}, {transform_indices = @transform_9, window_bounds = array<i64: 16, 32>}]} {
    %c0 = arith.constant 0 : index
    %c0_0 = arith.constant 0 : index
    %0 = vector.load %arg1[%c0, %c0_0] : memref<16x32xf32, #tpu.memory_space<vmem>>, vector<16x32xf32>
    %cst = arith.constant dense<0.000000e+00> : vector<16xf32>
    %1 = vector.multi_reduction <add>, %0, %cst [1] : vector<16x32xf32> to vector<16xf32>
    %2 = vector.shape_cast %1 : vector<16xf32> to vector<16x1xf32>
    %cst_1 = arith.constant 3.200000e+01 : f32
    %3 = vector.broadcast %cst_1 : f32 to vector<16x1xf32>
    %4 = arith.divf %2, %3 : vector<16x1xf32>
    %5 = vector.broadcast %4 : vector<16x1xf32> to vector<16x32xf32>
    %6 = arith.subf %0, %5 : vector<16x32xf32>
    %7 = arith.mulf %6, %6 : vector<16x32xf32>
    %cst_2 = arith.constant dense<0.000000e+00> : vector<16xf32>
    %8 = vector.multi_reduction <add>, %7, %cst_2 [1] : vector<16x32xf32> to vector<16xf32>
    %9 = vector.shape_cast %8 : vector<16xf32> to vector<16x1xf32>
    %cst_3 = arith.constant 3.200000e+01 : f32
    %10 = vector.broadcast %cst_3 : f32 to vector<16x1xf32>
    %11 = arith.divf %9, %10 : vector<16x1xf32>
    %12 = vector.broadcast %4 : vector<16x1xf32> to vector<16x32xf32>
    %13 = arith.subf %0, %12 : vector<16x32xf32>
    %cst_4 = arith.constant 9.99999974E-6 : f32
    %14 = vector.broadcast %cst_4 : f32 to vector<16x1xf32>
    %15 = arith.addf %11, %14 : vector<16x1xf32>
    %16 = math.rsqrt %15 : vector<16x1xf32>
    %17 = vector.broadcast %16 : vector<16x1xf32> to vector<16x32xf32>
    %18 = arith.mulf %13, %17 : vector<16x32xf32>
    %c0_5 = arith.constant 0 : index
    %c0_6 = arith.constant 0 : index
    %19 = vector.load %arg2[%c0_5, %c0_6] : memref<1x32xf32, #tpu.memory_space<vmem>>, vector<1x32xf32>
    %20 = vector.broadcast %19 : vector<1x32xf32> to vector<16x32xf32>
    %21 = arith.mulf %18, %20 : vector<16x32xf32>
    %c0_7 = arith.constant 0 : index
    %c0_8 = arith.constant 0 : index
    %22 = vector.load %arg3[%c0_7, %c0_8] : memref<1x32xf32, #tpu.memory_space<vmem>>, vector<1x32xf32>
    %23 = vector.broadcast %22 : vector<1x32xf32> to vector<16x32xf32>
    %24 = arith.addf %21, %23 : vector<16x32xf32>
    %25 = arith.truncf %24 : vector<16x32xf32> to vector<16x32xbf16>
    %c0_9 = arith.constant 0 : index
    %c0_10 = arith.constant 0 : index
    %26 = vector.load %arg4[%c0_9, %c0_10] : memref<32x128xbf16, #tpu.memory_space<vmem>>, vector<32x128xbf16>
    %cst_11 = arith.constant dense<0.000000e+00> : vector<16x128xf32>
    %27 = tpu.matmul %25, %26, %cst_11 {dimension_numbers = #tpu.dot_dimension_numbers<[1], [0], [0], [1], [0, 0, 1, 1], [], []>} : vector<16x32xbf16>, vector<32x128xbf16>, vector<16x128xf32> -> vector<16x128xf32>
    %c0_12 = arith.constant 0 : index
    %c0_13 = arith.constant 0 : index
    %28 = vector.load %arg5[%c0_12, %c0_13] : memref<1x128xf32, #tpu.memory_space<vmem>>, vector<1x128xf32>
    %29 = vector.broadcast %28 : vector<1x128xf32> to vector<16x128xf32>
    %30 = arith.addf %27, %29 : vector<16x128xf32>
    %31 = arith.negf %30 : vector<16x128xf32>
    %32 = math.exp %31 : vector<16x128xf32>
    %cst_14 = arith.constant 1.000000e+00 : f32
    %33 = vector.broadcast %cst_14 : f32 to vector<16x128xf32>
    %34 = arith.addf %33, %32 : vector<16x128xf32>
    %35 = arith.divf %33, %34 : vector<16x128xf32>
    %36 = arith.mulf %30, %35 : vector<16x128xf32>
    %37 = arith.truncf %36 : vector<16x128xf32> to vector<16x128xbf16>
    %c0_15 = arith.constant 0 : index
    %c0_16 = arith.constant 0 : index
    %38 = vector.load %arg6[%c0_15, %c0_16] : memref<128x32xbf16, #tpu.memory_space<vmem>>, vector<128x32xbf16>
    %cst_17 = arith.constant dense<0.000000e+00> : vector<16x32xf32>
    %39 = tpu.matmul %37, %38, %cst_17 {dimension_numbers = #tpu.dot_dimension_numbers<[1], [0], [0], [1], [0, 0, 1, 1], [], []>} : vector<16x128xbf16>, vector<128x32xbf16>, vector<16x32xf32> -> vector<16x32xf32>
    %c0_18 = arith.constant 0 : index
    %c0_19 = arith.constant 0 : index
    %40 = vector.load %arg7[%c0_18, %c0_19] : memref<1x32xf32, #tpu.memory_space<vmem>>, vector<1x32xf32>
    %41 = vector.broadcast %40 : vector<1x32xf32> to vector<16x32xf32>
    %42 = arith.addf %39, %41 : vector<16x32xf32>
    %cst_20 = arith.constant 5.000000e-01 : f32
    %43 = vector.broadcast %cst_20 : f32 to vector<16x32xf32>
    %44 = arith.mulf %43, %42 : vector<16x32xf32>
    %45 = arith.addf %0, %44 : vector<16x32xf32>
    %c0_21 = arith.constant 0 : index
    %c0_22 = arith.constant 0 : index
    %46 = vector.load %arg10[%c0_21, %c0_22] : memref<16x32xf32, #tpu.memory_space<vmem>>, vector<16x32xf32>
    tpu.vector_store %arg10[%c0_21, %c0_22], %45 {strides = array<i32>} : memref<16x32xf32, #tpu.memory_space<vmem>>, vector<16x32xf32>,
    return
  }
  func.func @transform_0(%arg0: i32) -> (i32, i32) {
    %c0_i32 = arith.constant 0 : i32
    %c0_i32_0 = arith.constant 0 : i32
    return %arg0, %c0_i32 : i32, i32
  }
  func.func @transform_1(%arg0: i32) -> (i32, i32) {
    %c0_i32 = arith.constant 0 : i32
    %c0_i32_0 = arith.constant 0 : i32
    %c0_i32_1 = arith.constant 0 : i32
    return %c0_i32, %c0_i32_0 : i32, i32
  }
  func.func @transform_2(%arg0: i32) -> (i32, i32) {
    %c0_i32 = arith.constant 0 : i32
    %c0_i32_0 = arith.constant 0 : i32
    %c0_i32_1 = arith.constant 0 : i32
    return %c0_i32, %c0_i32_0 : i32, i32
  }
  func.func @transform_3(%arg0: i32) -> (i32, i32) {
    %c0_i32 = arith.constant 0 : i32
    %c0_i32_0 = arith.constant 0 : i32
    %c0_i32_1 = arith.constant 0 : i32
    return %c0_i32, %c0_i32_0 : i32, i32
  }
  func.func @transform_4(%arg0: i32) -> (i32, i32) {
    %c0_i32 = arith.constant 0 : i32
    %c0_i32_0 = arith.constant 0 : i32
    %c0_i32_1 = arith.constant 0 : i32
    return %c0_i32, %c0_i32_0 : i32, i32
  }
  func.func @transform_5(%arg0: i32) -> (i32, i32) {
    %c0_i32 = arith.constant 0 : i32
    %c0_i32_0 = arith.constant 0 : i32
    %c0_i32_1 = arith.constant 0 : i32
    return %c0_i32, %c0_i32_0 : i32, i32
  }
  func.func @transform_6(%arg0: i32) -> (i32, i32) {
    %c0_i32 = arith.constant 0 : i32
    %c0_i32_0 = arith.constant 0 : i32
    %c0_i32_1 = arith.constant 0 : i32
    return %c0_i32, %c0_i32_0 : i32, i32
  }
  func.func @transform_7(%arg0: i32) -> (i32, i32) {
    %c0_i32 = arith.constant 0 : i32
    %c0_i32_0 = arith.constant 0 : i32
    %c0_i32_1 = arith.constant 0 : i32
    return %c0_i32, %c0_i32_0 : i32, i32
  }
  func.func @transform_8(%arg0: i32) -> (i32, i32) {
    %c0_i32 = arith.constant 0 : i32
    %c0_i32_0 = arith.constant 0 : i32
    %c0_i32_1 = arith.constant 0 : i32
    return %c0_i32, %c0_i32_0 : i32, i32
  }
  func.func @transform_9(%arg0: i32) -> (i32, i32) {
    %c0_i32 = arith.constant 0 : i32
    %c0_i32_0 = arith.constant 0 : i32
    return %arg0, %c0_i32 : i32, i32
  }
}

module attributes {stable_mosaic.version = 11 : i64} {
  func.func @kernel(%arg0: i32, %arg1: memref<1x8x32xf32, #tpu.memory_space<vmem>>, %arg2: memref<1x32xf32, #tpu.memory_space<vmem>>, %arg3: memref<1x32xf32, #tpu.memory_space<vmem>>, %arg4: memref<32x32xbf16, #tpu.memory_space<vmem>>, %arg5: memref<1x32xf32, #tpu.memory_space<vmem>>, %arg6: memref<32x32xbf16, #tpu.memory_space<vmem>>, %arg7: memref<1x32xf32, #tpu.memory_space<vmem>>, %arg8: memref<7x32xf32, #tpu.memory_space<vmem>>, %arg9: memref<1x32xf32, #tpu.memory_space<vmem>>, %arg10: memref<1x32xf32, #tpu.memory_space<vmem>>, %arg11: memref<1x32xf32, #tpu.memory_space<vmem>>, %arg12: memref<1x32xf32, #tpu.memory_space<vmem>>, %arg13: memref<32x32xbf16, #tpu.memory_space<vmem>>, %arg14: memref<1x32xf32, #tpu.memory_space<vmem>>, %arg15: memref<1x8x32xf32, #tpu.memory_space<vmem>>) attributes {dimension_semantics = [#tpu.dimension_semantics<parallel>], iteration_bounds = array<i64: 2>, scalar_prefetch = 0 : i64, scratch_operands = 0 : i64, tpu.core_type = #tpu.core_type<tc>, window_params = [{transform_indices = @transform_0, window_bounds = array<i64: 1, 8, 32>}, {pipeline_mode = #tpu.pipeline_mode<synchronous>, transform_indices = @transform_1, window_bounds = array<i64: 1, 32>}, {pipeline_mode = #tpu.pipeline_mode<synchronous>, transform_indices = @transform_2, window_bounds = array<i64: 1, 32>}, {pipeline_mode = #tpu.pipeline_mode<synchronous>, transform_indices = @transform_3, window_bounds = array<i64: 32, 32>}, {pipeline_mode = #tpu.pipeline_mode<synchronous>, transform_indices = @transform_4, window_bounds = array<i64: 1, 32>}, {pipeline_mode = #tpu.pipeline_mode<synchronous>, transform_indices = @transform_5, window_bounds = array<i64: 32, 32>}, {pipeline_mode = #tpu.pipeline_mode<synchronous>, transform_indices = @transform_6, window_bounds = array<i64: 1, 32>}, {pipeline_mode = #tpu.pipeline_mode<synchronous>, transform_indices = @transform_7, window_bounds = array<i64: 7, 32>}, {pipeline_mode = #tpu.pipeline_mode<synchronous>, transform_indices = @transform_8, window_bounds = array<i64: 1, 32>}, {pipeline_mode = #tpu.pipeline_mode<synchronous>, transform_indices = @transform_9, window_bounds = array<i64: 1, 32>}, {pipeline_mode = #tpu.pipeline_mode<synchronous>, transform_indices = @transform_10, window_bounds = array<i64: 1, 32>}, {pipeline_mode = #tpu.pipeline_mode<synchronous>, transform_indices = @transform_11, window_bounds = array<i64: 1, 32>}, {pipeline_mode = #tpu.pipeline_mode<synchronous>, transform_indices = @transform_12, window_bounds = array<i64: 32, 32>}, {pipeline_mode = #tpu.pipeline_mode<synchronous>, transform_indices = @transform_13, window_bounds = array<i64: 1, 32>}, {transform_indices = @transform_14, window_bounds = array<i64: 1, 8, 32>}]} {
    %c0 = arith.constant 0 : index
    %c0_0 = arith.constant 0 : index
    %c0_1 = arith.constant 0 : index
    %0 = vector.load %arg1[%c0, %c0_0, %c0_1] : memref<1x8x32xf32, #tpu.memory_space<vmem>>, vector<1x8x32xf32>
    %1 = vector.shape_cast %0 : vector<1x8x32xf32> to vector<8x32xf32>
    %cst = arith.constant dense<0.000000e+00> : vector<8xf32>
    %2 = vector.multi_reduction <add>, %1, %cst [1] : vector<8x32xf32> to vector<8xf32>
    %3 = vector.shape_cast %2 : vector<8xf32> to vector<8x1xf32>
    %cst_2 = arith.constant 3.200000e+01 : f32
    %4 = vector.broadcast %cst_2 : f32 to vector<8x1xf32>
    %5 = arith.divf %3, %4 : vector<8x1xf32>
    %6 = vector.broadcast %5 : vector<8x1xf32> to vector<8x32xf32>
    %7 = arith.subf %1, %6 : vector<8x32xf32>
    %8 = arith.mulf %7, %7 : vector<8x32xf32>
    %cst_3 = arith.constant dense<0.000000e+00> : vector<8xf32>
    %9 = vector.multi_reduction <add>, %8, %cst_3 [1] : vector<8x32xf32> to vector<8xf32>
    %10 = vector.shape_cast %9 : vector<8xf32> to vector<8x1xf32>
    %cst_4 = arith.constant 3.200000e+01 : f32
    %11 = vector.broadcast %cst_4 : f32 to vector<8x1xf32>
    %12 = arith.divf %10, %11 : vector<8x1xf32>
    %13 = vector.broadcast %5 : vector<8x1xf32> to vector<8x32xf32>
    %14 = arith.subf %1, %13 : vector<8x32xf32>
    %cst_5 = arith.constant 9.99999974E-6 : f32
    %15 = vector.broadcast %cst_5 : f32 to vector<8x1xf32>
    %16 = arith.addf %12, %15 : vector<8x1xf32>
    %17 = math.rsqrt %16 : vector<8x1xf32>
    %18 = vector.broadcast %17 : vector<8x1xf32> to vector<8x32xf32>
    %19 = arith.mulf %14, %18 : vector<8x32xf32>
    %c0_6 = arith.constant 0 : index
    %c0_7 = arith.constant 0 : index
    %20 = vector.load %arg2[%c0_6, %c0_7] : memref<1x32xf32, #tpu.memory_space<vmem>>, vector<1x32xf32>
    %21 = vector.broadcast %20 : vector<1x32xf32> to vector<8x32xf32>
    %22 = arith.mulf %19, %21 : vector<8x32xf32>
    %c0_8 = arith.constant 0 : index
    %c0_9 = arith.constant 0 : index
    %23 = vector.load %arg3[%c0_8, %c0_9] : memref<1x32xf32, #tpu.memory_space<vmem>>, vector<1x32xf32>
    %24 = vector.broadcast %23 : vector<1x32xf32> to vector<8x32xf32>
    %25 = arith.addf %22, %24 : vector<8x32xf32>
    %26 = arith.truncf %25 : vector<8x32xf32> to vector<8x32xbf16>
    %c0_10 = arith.constant 0 : index
    %c0_11 = arith.constant 0 : index
    %27 = vector.load %arg4[%c0_10, %c0_11] : memref<32x32xbf16, #tpu.memory_space<vmem>>, vector<32x32xbf16>
    %cst_12 = arith.constant dense<0.000000e+00> : vector<8x32xf32>
    %28 = tpu.matmul %26, %27, %cst_12 {dimension_numbers = #tpu.dot_dimension_numbers<[1], [0], [0], [1], [0, 0, 1, 1], [], []>} : vector<8x32xbf16>, vector<32x32xbf16>, vector<8x32xf32> -> vector<8x32xf32>
    %c0_13 = arith.constant 0 : index
    %c0_14 = arith.constant 0 : index
    %29 = vector.load %arg5[%c0_13, %c0_14] : memref<1x32xf32, #tpu.memory_space<vmem>>, vector<1x32xf32>
    %30 = vector.broadcast %29 : vector<1x32xf32> to vector<8x32xf32>
    %31 = arith.addf %28, %30 : vector<8x32xf32>
    %c0_15 = arith.constant 0 : index
    %c0_16 = arith.constant 0 : index
    %32 = vector.load %arg6[%c0_15, %c0_16] : memref<32x32xbf16, #tpu.memory_space<vmem>>, vector<32x32xbf16>
    %cst_17 = arith.constant dense<0.000000e+00> : vector<8x32xf32>
    %33 = tpu.matmul %26, %32, %cst_17 {dimension_numbers = #tpu.dot_dimension_numbers<[1], [0], [0], [1], [0, 0, 1, 1], [], []>} : vector<8x32xbf16>, vector<32x32xbf16>, vector<8x32xf32> -> vector<8x32xf32>
    %c0_18 = arith.constant 0 : index
    %c0_19 = arith.constant 0 : index
    %34 = vector.load %arg7[%c0_18, %c0_19] : memref<1x32xf32, #tpu.memory_space<vmem>>, vector<1x32xf32>
    %35 = vector.broadcast %34 : vector<1x32xf32> to vector<8x32xf32>
    %36 = arith.addf %33, %35 : vector<8x32xf32>
    %37 = arith.negf %36 : vector<8x32xf32>
    %38 = math.exp %37 : vector<8x32xf32>
    %cst_20 = arith.constant 1.000000e+00 : f32
    %39 = vector.broadcast %cst_20 : f32 to vector<8x32xf32>
    %40 = arith.addf %39, %38 : vector<8x32xf32>
    %41 = arith.divf %39, %40 : vector<8x32xf32>
    %42 = arith.mulf %31, %41 : vector<8x32xf32>
    %cst_21 = arith.constant 0.000000e+00 : f32
    %43 = vector.broadcast %cst_21 : f32 to vector<3x32xf32>
    %cst_22 = arith.constant 0.000000e+00 : f32
    %44 = vector.broadcast %cst_22 : f32 to vector<3x32xf32>
    %45 = tpu.concatenate %43, %42, %44 in 0 : vector<3x32xf32>, vector<8x32xf32>, vector<3x32xf32> -> vector<14x32xf32>
    %c0_23 = arith.constant 0 : index
    %c0_24 = arith.constant 0 : index
    %46 = vector.load %arg8[%c0_23, %c0_24] : memref<7x32xf32, #tpu.memory_space<vmem>>, vector<7x32xf32>
    %cst_25 = arith.constant 0.000000e+00 : f32
    %47 = vector.broadcast %cst_25 : f32 to vector<8x32xf32>
    %48 = vector.extract_strided_slice %45 {offsets = [0, 0], sizes = [8, 32], strides = [1, 1]} : vector<14x32xf32> to vector<8x32xf32>
    %49 = vector.extract_strided_slice %46 {offsets = [0, 0], sizes = [1, 32], strides = [1, 1]} : vector<7x32xf32> to vector<1x32xf32>
    %50 = vector.broadcast %49 : vector<1x32xf32> to vector<8x32xf32>
    %51 = arith.mulf %48, %50 : vector<8x32xf32>
    %52 = arith.addf %47, %51 : vector<8x32xf32>
    %53 = vector.extract_strided_slice %45 {offsets = [1, 0], sizes = [8, 32], strides = [1, 1]} : vector<14x32xf32> to vector<8x32xf32>
    %54 = vector.extract_strided_slice %46 {offsets = [1, 0], sizes = [1, 32], strides = [1, 1]} : vector<7x32xf32> to vector<1x32xf32>
    %55 = vector.broadcast %54 : vector<1x32xf32> to vector<8x32xf32>
    %56 = arith.mulf %53, %55 : vector<8x32xf32>
    %57 = arith.addf %52, %56 : vector<8x32xf32>
    %58 = vector.extract_strided_slice %45 {offsets = [2, 0], sizes = [8, 32], strides = [1, 1]} : vector<14x32xf32> to vector<8x32xf32>
    %59 = vector.extract_strided_slice %46 {offsets = [2, 0], sizes = [1, 32], strides = [1, 1]} : vector<7x32xf32> to vector<1x32xf32>
    %60 = vector.broadcast %59 : vector<1x32xf32> to vector<8x32xf32>
    %61 = arith.mulf %58, %60 : vector<8x32xf32>
    %62 = arith.addf %57, %61 : vector<8x32xf32>
    %63 = vector.extract_strided_slice %45 {offsets = [3, 0], sizes = [8, 32], strides = [1, 1]} : vector<14x32xf32> to vector<8x32xf32>
    %64 = vector.extract_strided_slice %46 {offsets = [3, 0], sizes = [1, 32], strides = [1, 1]} : vector<7x32xf32> to vector<1x32xf32>
    %65 = vector.broadcast %64 : vector<1x32xf32> to vector<8x32xf32>
    %66 = arith.mulf %63, %65 : vector<8x32xf32>
    %67 = arith.addf %62, %66 : vector<8x32xf32>
    %68 = vector.extract_strided_slice %45 {offsets = [4, 0], sizes = [8, 32], strides = [1, 1]} : vector<14x32xf32> to vector<8x32xf32>
    %69 = vector.extract_strided_slice %46 {offsets = [4, 0], sizes = [1, 32], strides = [1, 1]} : vector<7x32xf32> to vector<1x32xf32>
    %70 = vector.broadcast %69 : vector<1x32xf32> to vector<8x32xf32>
    %71 = arith.mulf %68, %70 : vector<8x32xf32>
    %72 = arith.addf %67, %71 : vector<8x32xf32>
    %73 = vector.extract_strided_slice %45 {offsets = [5, 0], sizes = [8, 32], strides = [1, 1]} : vector<14x32xf32> to vector<8x32xf32>
    %74 = vector.extract_strided_slice %46 {offsets = [5, 0], sizes = [1, 32], strides = [1, 1]} : vector<7x32xf32> to vector<1x32xf32>
    %75 = vector.broadcast %74 : vector<1x32xf32> to vector<8x32xf32>
    %76 = arith.mulf %73, %75 : vector<8x32xf32>
    %77 = arith.addf %72, %76 : vector<8x32xf32>
    %78 = vector.extract_strided_slice %45 {offsets = [6, 0], sizes = [8, 32], strides = [1, 1]} : vector<14x32xf32> to vector<8x32xf32>
    %79 = vector.extract_strided_slice %46 {offsets = [6, 0], sizes = [1, 32], strides = [1, 1]} : vector<7x32xf32> to vector<1x32xf32>
    %80 = vector.broadcast %79 : vector<1x32xf32> to vector<8x32xf32>
    %81 = arith.mulf %78, %80 : vector<8x32xf32>
    %82 = arith.addf %77, %81 : vector<8x32xf32>
    %c0_26 = arith.constant 0 : index
    %c0_27 = arith.constant 0 : index
    %83 = vector.load %arg11[%c0_26, %c0_27] : memref<1x32xf32, #tpu.memory_space<vmem>>, vector<1x32xf32>
    %84 = vector.broadcast %83 : vector<1x32xf32> to vector<8x32xf32>
    %85 = arith.subf %82, %84 : vector<8x32xf32>
    %c0_28 = arith.constant 0 : index
    %c0_29 = arith.constant 0 : index
    %86 = vector.load %arg12[%c0_28, %c0_29] : memref<1x32xf32, #tpu.memory_space<vmem>>, vector<1x32xf32>
    %cst_30 = arith.constant 9.99999974E-6 : f32
    %87 = vector.broadcast %cst_30 : f32 to vector<1x32xf32>
    %88 = arith.addf %86, %87 : vector<1x32xf32>
    %89 = math.rsqrt %88 : vector<1x32xf32>
    %90 = vector.broadcast %89 : vector<1x32xf32> to vector<8x32xf32>
    %91 = arith.mulf %85, %90 : vector<8x32xf32>
    %c0_31 = arith.constant 0 : index
    %c0_32 = arith.constant 0 : index
    %92 = vector.load %arg9[%c0_31, %c0_32] : memref<1x32xf32, #tpu.memory_space<vmem>>, vector<1x32xf32>
    %93 = vector.broadcast %92 : vector<1x32xf32> to vector<8x32xf32>
    %94 = arith.mulf %91, %93 : vector<8x32xf32>
    %c0_33 = arith.constant 0 : index
    %c0_34 = arith.constant 0 : index
    %95 = vector.load %arg10[%c0_33, %c0_34] : memref<1x32xf32, #tpu.memory_space<vmem>>, vector<1x32xf32>
    %96 = vector.broadcast %95 : vector<1x32xf32> to vector<8x32xf32>
    %97 = arith.addf %94, %96 : vector<8x32xf32>
    %98 = arith.negf %97 : vector<8x32xf32>
    %99 = math.exp %98 : vector<8x32xf32>
    %cst_35 = arith.constant 1.000000e+00 : f32
    %100 = vector.broadcast %cst_35 : f32 to vector<8x32xf32>
    %101 = arith.addf %100, %99 : vector<8x32xf32>
    %102 = arith.divf %100, %101 : vector<8x32xf32>
    %103 = arith.mulf %97, %102 : vector<8x32xf32>
    %104 = arith.truncf %103 : vector<8x32xf32> to vector<8x32xbf16>
    %c0_36 = arith.constant 0 : index
    %c0_37 = arith.constant 0 : index
    %105 = vector.load %arg13[%c0_36, %c0_37] : memref<32x32xbf16, #tpu.memory_space<vmem>>, vector<32x32xbf16>
    %cst_38 = arith.constant dense<0.000000e+00> : vector<8x32xf32>
    %106 = tpu.matmul %104, %105, %cst_38 {dimension_numbers = #tpu.dot_dimension_numbers<[1], [0], [0], [1], [0, 0, 1, 1], [], []>} : vector<8x32xbf16>, vector<32x32xbf16>, vector<8x32xf32> -> vector<8x32xf32>
    %c0_39 = arith.constant 0 : index
    %c0_40 = arith.constant 0 : index
    %107 = vector.load %arg14[%c0_39, %c0_40] : memref<1x32xf32, #tpu.memory_space<vmem>>, vector<1x32xf32>
    %108 = vector.broadcast %107 : vector<1x32xf32> to vector<8x32xf32>
    %109 = arith.addf %106, %108 : vector<8x32xf32>
    %110 = arith.addf %1, %109 : vector<8x32xf32>
    %c0_41 = arith.constant 0 : index
    %c0_42 = arith.constant 0 : index
    %c0_43 = arith.constant 0 : index
    %111 = vector.load %arg15[%c0_41, %c0_42, %c0_43] : memref<1x8x32xf32, #tpu.memory_space<vmem>>, vector<1x8x32xf32>
    %112 = vector.shape_cast %111 : vector<1x8x32xf32> to vector<8x32xf32>
    %113 = vector.shape_cast %110 : vector<8x32xf32> to vector<1x8x32xf32>
    tpu.vector_store %arg15[%c0_41, %c0_42, %c0_43], %113 {strides = array<i32>} : memref<1x8x32xf32, #tpu.memory_space<vmem>>, vector<1x8x32xf32>,
    return
  }
  func.func @transform_0(%arg0: i32) -> (i32, i32, i32) {
    %c0_i32 = arith.constant 0 : i32
    %c0_i32_0 = arith.constant 0 : i32
    %c0_i32_1 = arith.constant 0 : i32
    return %arg0, %c0_i32, %c0_i32_0 : i32, i32, i32
  }
  func.func @transform_1(%arg0: i32) -> (i32, i32) {
    %c0_i32 = arith.constant 0 : i32
    %c0_i32_0 = arith.constant 0 : i32
    %c0_i32_1 = arith.constant 0 : i32
    return %c0_i32, %c0_i32_0 : i32, i32
  }
  func.func @transform_2(%arg0: i32) -> (i32, i32) {
    %c0_i32 = arith.constant 0 : i32
    %c0_i32_0 = arith.constant 0 : i32
    %c0_i32_1 = arith.constant 0 : i32
    return %c0_i32, %c0_i32_0 : i32, i32
  }
  func.func @transform_3(%arg0: i32) -> (i32, i32) {
    %c0_i32 = arith.constant 0 : i32
    %c0_i32_0 = arith.constant 0 : i32
    %c0_i32_1 = arith.constant 0 : i32
    return %c0_i32, %c0_i32_0 : i32, i32
  }
  func.func @transform_4(%arg0: i32) -> (i32, i32) {
    %c0_i32 = arith.constant 0 : i32
    %c0_i32_0 = arith.constant 0 : i32
    %c0_i32_1 = arith.constant 0 : i32
    return %c0_i32, %c0_i32_0 : i32, i32
  }
  func.func @transform_5(%arg0: i32) -> (i32, i32) {
    %c0_i32 = arith.constant 0 : i32
    %c0_i32_0 = arith.constant 0 : i32
    %c0_i32_1 = arith.constant 0 : i32
    return %c0_i32, %c0_i32_0 : i32, i32
  }
  func.func @transform_6(%arg0: i32) -> (i32, i32) {
    %c0_i32 = arith.constant 0 : i32
    %c0_i32_0 = arith.constant 0 : i32
    %c0_i32_1 = arith.constant 0 : i32
    return %c0_i32, %c0_i32_0 : i32, i32
  }
  func.func @transform_7(%arg0: i32) -> (i32, i32) {
    %c0_i32 = arith.constant 0 : i32
    %c0_i32_0 = arith.constant 0 : i32
    %c0_i32_1 = arith.constant 0 : i32
    return %c0_i32, %c0_i32_0 : i32, i32
  }
  func.func @transform_8(%arg0: i32) -> (i32, i32) {
    %c0_i32 = arith.constant 0 : i32
    %c0_i32_0 = arith.constant 0 : i32
    %c0_i32_1 = arith.constant 0 : i32
    return %c0_i32, %c0_i32_0 : i32, i32
  }
  func.func @transform_9(%arg0: i32) -> (i32, i32) {
    %c0_i32 = arith.constant 0 : i32
    %c0_i32_0 = arith.constant 0 : i32
    %c0_i32_1 = arith.constant 0 : i32
    return %c0_i32, %c0_i32_0 : i32, i32
  }
  func.func @transform_10(%arg0: i32) -> (i32, i32) {
    %c0_i32 = arith.constant 0 : i32
    %c0_i32_0 = arith.constant 0 : i32
    %c0_i32_1 = arith.constant 0 : i32
    return %c0_i32, %c0_i32_0 : i32, i32
  }
  func.func @transform_11(%arg0: i32) -> (i32, i32) {
    %c0_i32 = arith.constant 0 : i32
    %c0_i32_0 = arith.constant 0 : i32
    %c0_i32_1 = arith.constant 0 : i32
    return %c0_i32, %c0_i32_0 : i32, i32
  }
  func.func @transform_12(%arg0: i32) -> (i32, i32) {
    %c0_i32 = arith.constant 0 : i32
    %c0_i32_0 = arith.constant 0 : i32
    %c0_i32_1 = arith.constant 0 : i32
    return %c0_i32, %c0_i32_0 : i32, i32
  }
  func.func @transform_13(%arg0: i32) -> (i32, i32) {
    %c0_i32 = arith.constant 0 : i32
    %c0_i32_0 = arith.constant 0 : i32
    %c0_i32_1 = arith.constant 0 : i32
    return %c0_i32, %c0_i32_0 : i32, i32
  }
  func.func @transform_14(%arg0: i32) -> (i32, i32, i32) {
    %c0_i32 = arith.constant 0 : i32
    %c0_i32_0 = arith.constant 0 : i32
    %c0_i32_1 = arith.constant 0 : i32
    return %arg0, %c0_i32, %c0_i32_0 : i32, i32, i32
  }
}

module attributes {stable_mosaic.version = 11 : i64} {
  func.func @kernel(%arg0: i32, %arg1: memref<16x32xf32, #tpu.memory_space<vmem>>, %arg2: memref<1x32xf32, #tpu.memory_space<vmem>>, %arg3: memref<1x32xf32, #tpu.memory_space<vmem>>, %arg4: memref<32x256xbf16, #tpu.memory_space<vmem>>, %arg5: memref<1x256xf32, #tpu.memory_space<vmem>>, %arg6: memref<16x256xf32, #tpu.memory_space<vmem>>) attributes {dimension_semantics = [#tpu.dimension_semantics<parallel>], iteration_bounds = array<i64: 1>, scalar_prefetch = 0 : i64, scratch_operands = 0 : i64, tpu.core_type = #tpu.core_type<tc>, window_params = [{transform_indices = @transform_0, window_bounds = array<i64: 16, 32>}, {pipeline_mode = #tpu.pipeline_mode<synchronous>, transform_indices = @transform_1, window_bounds = array<i64: 1, 32>}, {pipeline_mode = #tpu.pipeline_mode<synchronous>, transform_indices = @transform_2, window_bounds = array<i64: 1, 32>}, {pipeline_mode = #tpu.pipeline_mode<synchronous>, transform_indices = @transform_3, window_bounds = array<i64: 32, 256>}, {pipeline_mode = #tpu.pipeline_mode<synchronous>, transform_indices = @transform_4, window_bounds = array<i64: 1, 256>}, {transform_indices = @transform_5, window_bounds = array<i64: 16, 256>}]} {
    %c0 = arith.constant 0 : index
    %c0_0 = arith.constant 0 : index
    %0 = vector.load %arg1[%c0, %c0_0] : memref<16x32xf32, #tpu.memory_space<vmem>>, vector<16x32xf32>
    %cst = arith.constant dense<0.000000e+00> : vector<16xf32>
    %1 = vector.multi_reduction <add>, %0, %cst [1] : vector<16x32xf32> to vector<16xf32>
    %2 = vector.shape_cast %1 : vector<16xf32> to vector<16x1xf32>
    %cst_1 = arith.constant 3.200000e+01 : f32
    %3 = vector.broadcast %cst_1 : f32 to vector<16x1xf32>
    %4 = arith.divf %2, %3 : vector<16x1xf32>
    %5 = vector.broadcast %4 : vector<16x1xf32> to vector<16x32xf32>
    %6 = arith.subf %0, %5 : vector<16x32xf32>
    %7 = arith.mulf %6, %6 : vector<16x32xf32>
    %cst_2 = arith.constant dense<0.000000e+00> : vector<16xf32>
    %8 = vector.multi_reduction <add>, %7, %cst_2 [1] : vector<16x32xf32> to vector<16xf32>
    %9 = vector.shape_cast %8 : vector<16xf32> to vector<16x1xf32>
    %cst_3 = arith.constant 3.200000e+01 : f32
    %10 = vector.broadcast %cst_3 : f32 to vector<16x1xf32>
    %11 = arith.divf %9, %10 : vector<16x1xf32>
    %12 = vector.broadcast %4 : vector<16x1xf32> to vector<16x32xf32>
    %13 = arith.subf %0, %12 : vector<16x32xf32>
    %cst_4 = arith.constant 9.99999974E-6 : f32
    %14 = vector.broadcast %cst_4 : f32 to vector<16x1xf32>
    %15 = arith.addf %11, %14 : vector<16x1xf32>
    %16 = math.rsqrt %15 : vector<16x1xf32>
    %17 = vector.broadcast %16 : vector<16x1xf32> to vector<16x32xf32>
    %18 = arith.mulf %13, %17 : vector<16x32xf32>
    %c0_5 = arith.constant 0 : index
    %c0_6 = arith.constant 0 : index
    %19 = vector.load %arg2[%c0_5, %c0_6] : memref<1x32xf32, #tpu.memory_space<vmem>>, vector<1x32xf32>
    %20 = vector.broadcast %19 : vector<1x32xf32> to vector<16x32xf32>
    %21 = arith.mulf %18, %20 : vector<16x32xf32>
    %c0_7 = arith.constant 0 : index
    %c0_8 = arith.constant 0 : index
    %22 = vector.load %arg3[%c0_7, %c0_8] : memref<1x32xf32, #tpu.memory_space<vmem>>, vector<1x32xf32>
    %23 = vector.broadcast %22 : vector<1x32xf32> to vector<16x32xf32>
    %24 = arith.addf %21, %23 : vector<16x32xf32>
    %25 = arith.truncf %24 : vector<16x32xf32> to vector<16x32xbf16>
    %c0_9 = arith.constant 0 : index
    %c0_10 = arith.constant 0 : index
    %26 = vector.load %arg4[%c0_9, %c0_10] : memref<32x256xbf16, #tpu.memory_space<vmem>>, vector<32x256xbf16>
    %cst_11 = arith.constant dense<0.000000e+00> : vector<16x256xf32>
    %27 = tpu.matmul %25, %26, %cst_11 {dimension_numbers = #tpu.dot_dimension_numbers<[1], [0], [0], [1], [0, 0, 1, 1], [], []>} : vector<16x32xbf16>, vector<32x256xbf16>, vector<16x256xf32> -> vector<16x256xf32>
    %c0_12 = arith.constant 0 : index
    %c0_13 = arith.constant 0 : index
    %28 = vector.load %arg5[%c0_12, %c0_13] : memref<1x256xf32, #tpu.memory_space<vmem>>, vector<1x256xf32>
    %29 = vector.broadcast %28 : vector<1x256xf32> to vector<16x256xf32>
    %30 = arith.addf %27, %29 : vector<16x256xf32>
    %c0_14 = arith.constant 0 : index
    %c0_15 = arith.constant 0 : index
    %31 = vector.load %arg6[%c0_14, %c0_15] : memref<16x256xf32, #tpu.memory_space<vmem>>, vector<16x256xf32>
    tpu.vector_store %arg6[%c0_14, %c0_15], %30 {strides = array<i32>} : memref<16x256xf32, #tpu.memory_space<vmem>>, vector<16x256xf32>,
    return
  }
  func.func @transform_0(%arg0: i32) -> (i32, i32) {
    %c0_i32 = arith.constant 0 : i32
    %c0_i32_0 = arith.constant 0 : i32
    return %arg0, %c0_i32 : i32, i32
  }
  func.func @transform_1(%arg0: i32) -> (i32, i32) {
    %c0_i32 = arith.constant 0 : i32
    %c0_i32_0 = arith.constant 0 : i32
    %c0_i32_1 = arith.constant 0 : i32
    return %c0_i32, %c0_i32_0 : i32, i32
  }
  func.func @transform_2(%arg0: i32) -> (i32, i32) {
    %c0_i32 = arith.constant 0 : i32
    %c0_i32_0 = arith.constant 0 : i32
    %c0_i32_1 = arith.constant 0 : i32
    return %c0_i32, %c0_i32_0 : i32, i32
  }
  func.func @transform_3(%arg0: i32) -> (i32, i32) {
    %c0_i32 = arith.constant 0 : i32
    %c0_i32_0 = arith.constant 0 : i32
    %c0_i32_1 = arith.constant 0 : i32
    return %c0_i32, %c0_i32_0 : i32, i32
  }
  func.func @transform_4(%arg0: i32) -> (i32, i32) {
    %c0_i32 = arith.constant 0 : i32
    %c0_i32_0 = arith.constant 0 : i32
    %c0_i32_1 = arith.constant 0 : i32
    return %c0_i32, %c0_i32_0 : i32, i32
  }
  func.func @transform_5(%arg0: i32) -> (i32, i32) {
    %c0_i32 = arith.constant 0 : i32
    %c0_i32_0 = arith.constant 0 : i32
    return %arg0, %c0_i32 : i32, i32
  }
}

module attributes {stable_mosaic.version = 11 : i64} {
  func.func @kernel(%arg0: i32, %arg1: memref<8x2x256xf32, #tpu.memory_space<vmem>>, %arg2: memref<64x128xbf16, #tpu.memory_space<vmem>>, %arg3: memref<8x2x64xf32, #tpu.memory_space<vmem>>) attributes {dimension_semantics = [#tpu.dimension_semantics<arbitrary>], iteration_bounds = array<i64: 1>, scalar_prefetch = 0 : i64, scratch_operands = 0 : i64, tpu.core_type = #tpu.core_type<tc>, window_params = [{pipeline_mode = #tpu.pipeline_mode<synchronous>, transform_indices = @transform_0, window_bounds = array<i64: 8, 2, 256>}, {pipeline_mode = #tpu.pipeline_mode<synchronous>, transform_indices = @transform_1, window_bounds = array<i64: 64, 128>}, {pipeline_mode = #tpu.pipeline_mode<synchronous>, transform_indices = @transform_2, window_bounds = array<i64: 8, 2, 64>}]} {
    %c0 = arith.constant 0 : index
    %c0_0 = arith.constant 0 : index
    %0 = vector.load %arg2[%c0, %c0_0] : memref<64x128xbf16, #tpu.memory_space<vmem>>, vector<64x128xbf16>
    %1 = tpu.iota {dimensions = array<i32: 0>} : vector<4x1xi32>
    %c2_i32 = arith.constant 2 : i32
    %2 = vector.broadcast %c2_i32 : i32 to vector<4x1xi32>
    %3 = arith.cmpi slt, %1, %2 : vector<4x1xi32>
    %4 = arith.extui %3 : vector<4x1xi1> to vector<4x1xi32>
    %5 = arith.sitofp %4 : vector<4x1xi32> to vector<4x1xf32>
    %cst = arith.constant 0.000000e+00 : f32
    %6 = vector.broadcast %cst : f32 to vector<4x32xf32>
    %c0_i32 = arith.constant 0 : i32
    %c8_i32 = arith.constant 8 : i32
    %7 = arith.addi %c0_i32, %c8_i32 : i32
    %c1_i32 = arith.constant 1 : i32
    %8:2 = scf.for %arg4 = %c0_i32 to %7 step %c1_i32 iter_args(%arg5 = %6, %arg6 = %6) -> (vector<4x32xf32>, vector<4x32xf32>)  : i32 {
      %c7_i32 = arith.constant 7 : i32
      %9 = arith.subi %c7_i32, %arg4 : i32
      %10 = arith.index_cast %arg4 : i32 to index
      %c0_2 = arith.constant 0 : index
      %c0_3 = arith.constant 0 : index
      %11 = vector.load %arg1[%10, %c0_2, %c0_3] : memref<8x2x256xf32, #tpu.memory_space<vmem>>, vector<1x2x256xf32>
      %12 = vector.shape_cast %11 : vector<1x2x256xf32> to vector<2x256xf32>
      %13 = arith.index_cast %9 : i32 to index
      %c0_4 = arith.constant 0 : index
      %c0_5 = arith.constant 0 : index
      %14 = vector.load %arg1[%13, %c0_4, %c0_5] : memref<8x2x256xf32, #tpu.memory_space<vmem>>, vector<1x2x256xf32>
      %15 = vector.shape_cast %14 : vector<1x2x256xf32> to vector<2x256xf32>
      %16 = vector.extract_strided_slice %12 {offsets = [0, 0], sizes = [2, 128], strides = [1, 1]} : vector<2x256xf32> to vector<2x128xf32>
      %17 = vector.extract_strided_slice %15 {offsets = [0, 128], sizes = [2, 128], strides = [1, 1]} : vector<2x256xf32> to vector<2x128xf32>
      %18 = tpu.concatenate %16, %17 in 0 : vector<2x128xf32>, vector<2x128xf32> -> vector<4x128xf32>
      %19 = vector.broadcast %5 : vector<4x1xf32> to vector<4x32xf32>
      %20 = arith.mulf %arg5, %19 : vector<4x32xf32>
      %cst_6 = arith.constant 1.000000e+00 : f32
      %21 = vector.broadcast %cst_6 : f32 to vector<4x1xf32>
      %22 = arith.subf %21, %5 : vector<4x1xf32>
      %23 = vector.broadcast %22 : vector<4x1xf32> to vector<4x32xf32>
      %24 = arith.mulf %arg5, %23 : vector<4x32xf32>
      %25 = tpu.concatenate %20, %24 in 1 : vector<4x32xf32>, vector<4x32xf32> -> vector<4x64xf32>
      %26 = arith.truncf %25 : vector<4x64xf32> to vector<4x64xbf16>
      %cst_7 = arith.constant dense<0.000000e+00> : vector<4x128xf32>
      %27 = tpu.matmul %26, %0, %cst_7 {dimension_numbers = #tpu.dot_dimension_numbers<[1], [0], [0], [1], [0, 0, 1, 1], [], []>} : vector<4x64xbf16>, vector<64x128xbf16>, vector<4x128xf32> -> vector<4x128xf32>
      %28 = arith.addf %18, %27 : vector<4x128xf32>
      %29 = vector.extract_strided_slice %28 {offsets = [0, 0], sizes = [4, 32], strides = [1, 1]} : vector<4x128xf32> to vector<4x32xf32>
      %30 = arith.negf %29 : vector<4x32xf32>
      %31 = math.exp %30 : vector<4x32xf32>
      %cst_8 = arith.constant 1.000000e+00 : f32
      %32 = vector.broadcast %cst_8 : f32 to vector<4x32xf32>
      %33 = arith.addf %32, %31 : vector<4x32xf32>
      %34 = arith.divf %32, %33 : vector<4x32xf32>
      %35 = vector.extract_strided_slice %28 {offsets = [0, 32], sizes = [4, 32], strides = [1, 1]} : vector<4x128xf32> to vector<4x32xf32>
      %36 = arith.negf %35 : vector<4x32xf32>
      %37 = math.exp %36 : vector<4x32xf32>
      %cst_9 = arith.constant 1.000000e+00 : f32
      %38 = vector.broadcast %cst_9 : f32 to vector<4x32xf32>
      %39 = arith.addf %38, %37 : vector<4x32xf32>
      %40 = arith.divf %38, %39 : vector<4x32xf32>
      %41 = vector.extract_strided_slice %28 {offsets = [0, 64], sizes = [4, 32], strides = [1, 1]} : vector<4x128xf32> to vector<4x32xf32>
      %42 = math.tanh %41 : vector<4x32xf32>
      %43 = vector.extract_strided_slice %28 {offsets = [0, 96], sizes = [4, 32], strides = [1, 1]} : vector<4x128xf32> to vector<4x32xf32>
      %44 = arith.negf %43 : vector<4x32xf32>
      %45 = math.exp %44 : vector<4x32xf32>
      %cst_10 = arith.constant 1.000000e+00 : f32
      %46 = vector.broadcast %cst_10 : f32 to vector<4x32xf32>
      %47 = arith.addf %46, %45 : vector<4x32xf32>
      %48 = arith.divf %46, %47 : vector<4x32xf32>
      %49 = arith.mulf %40, %arg6 : vector<4x32xf32>
      %50 = arith.mulf %34, %42 : vector<4x32xf32>
      %51 = arith.addf %49, %50 : vector<4x32xf32>
      %52 = math.tanh %51 : vector<4x32xf32>
      %53 = arith.mulf %48, %52 : vector<4x32xf32>
      %54 = vector.extract_strided_slice %53 {offsets = [0, 0], sizes = [2, 32], strides = [1, 1]} : vector<4x32xf32> to vector<2x32xf32>
      %55 = arith.index_cast %arg4 : i32 to index
      %c0_11 = arith.constant 0 : index
      %c0_12 = arith.constant 0 : index
      %56 = vector.load %arg3[%55, %c0_11, %c0_12] : memref<8x2x64xf32, #tpu.memory_space<vmem>>, vector<1x2x32xf32>
      %57 = vector.shape_cast %56 : vector<1x2x32xf32> to vector<2x32xf32>
      %58 = vector.shape_cast %54 : vector<2x32xf32> to vector<1x2x32xf32>
      tpu.vector_store %arg3[%55, %c0_11, %c0_12], %58 {strides = array<i32>} : memref<8x2x64xf32, #tpu.memory_space<vmem>>, vector<1x2x32xf32>,
      %59 = vector.extract_strided_slice %53 {offsets = [2, 0], sizes = [2, 32], strides = [1, 1]} : vector<4x32xf32> to vector<2x32xf32>
      %60 = arith.index_cast %9 : i32 to index
      %c0_13 = arith.constant 0 : index
      %c32 = arith.constant 32 : index
      %61 = vector.load %arg3[%60, %c0_13, %c32] : memref<8x2x64xf32, #tpu.memory_space<vmem>>, vector<1x2x32xf32>
      %62 = vector.shape_cast %61 : vector<1x2x32xf32> to vector<2x32xf32>
      %63 = vector.shape_cast %59 : vector<2x32xf32> to vector<1x2x32xf32>
      tpu.vector_store %arg3[%60, %c0_13, %c32], %63 {strides = array<i32>} : memref<8x2x64xf32, #tpu.memory_space<vmem>>, vector<1x2x32xf32>,
      scf.yield %53, %51 : vector<4x32xf32>, vector<4x32xf32>
    }
    %c8_i32_1 = arith.constant 8 : i32
    return
  }
  func.func @transform_0(%arg0: i32) -> (i32, i32, i32) {
    %c0_i32 = arith.constant 0 : i32
    %c0_i32_0 = arith.constant 0 : i32
    %c0_i32_1 = arith.constant 0 : i32
    %c0_i32_2 = arith.constant 0 : i32
    return %c0_i32, %c0_i32_0, %c0_i32_1 : i32, i32, i32
  }
  func.func @transform_1(%arg0: i32) -> (i32, i32) {
    %c0_i32 = arith.constant 0 : i32
    %c0_i32_0 = arith.constant 0 : i32
    %c0_i32_1 = arith.constant 0 : i32
    return %c0_i32, %c0_i32_0 : i32, i32
  }
  func.func @transform_2(%arg0: i32) -> (i32, i32, i32) {
    %c0_i32 = arith.constant 0 : i32
    %c0_i32_0 = arith.constant 0 : i32
    %c0_i32_1 = arith.constant 0 : i32
    %c0_i32_2 = arith.constant 0 : i32
    return %c0_i32, %c0_i32_0, %c0_i32_1 : i32, i32, i32
  }
}

module attributes {stable_mosaic.version = 11 : i64} {
  func.func @kernel(%arg0: i32, %arg1: memref<16x64xf32, #tpu.memory_space<vmem>>, %arg2: memref<1x64xf32, #tpu.memory_space<vmem>>, %arg3: memref<1x64xf32, #tpu.memory_space<vmem>>, %arg4: memref<64x192xbf16, #tpu.memory_space<vmem>>, %arg5: memref<1x192xf32, #tpu.memory_space<vmem>>, %arg6: memref<16x192xf32, #tpu.memory_space<vmem>>) attributes {dimension_semantics = [#tpu.dimension_semantics<parallel>], iteration_bounds = array<i64: 1>, scalar_prefetch = 0 : i64, scratch_operands = 0 : i64, tpu.core_type = #tpu.core_type<tc>, window_params = [{transform_indices = @transform_0, window_bounds = array<i64: 16, 64>}, {pipeline_mode = #tpu.pipeline_mode<synchronous>, transform_indices = @transform_1, window_bounds = array<i64: 1, 64>}, {pipeline_mode = #tpu.pipeline_mode<synchronous>, transform_indices = @transform_2, window_bounds = array<i64: 1, 64>}, {pipeline_mode = #tpu.pipeline_mode<synchronous>, transform_indices = @transform_3, window_bounds = array<i64: 64, 192>}, {pipeline_mode = #tpu.pipeline_mode<synchronous>, transform_indices = @transform_4, window_bounds = array<i64: 1, 192>}, {transform_indices = @transform_5, window_bounds = array<i64: 16, 192>}]} {
    %c0 = arith.constant 0 : index
    %c0_0 = arith.constant 0 : index
    %0 = vector.load %arg1[%c0, %c0_0] : memref<16x64xf32, #tpu.memory_space<vmem>>, vector<16x64xf32>
    %1 = arith.truncf %0 : vector<16x64xf32> to vector<16x64xbf16>
    %c0_1 = arith.constant 0 : index
    %c0_2 = arith.constant 0 : index
    %2 = vector.load %arg4[%c0_1, %c0_2] : memref<64x192xbf16, #tpu.memory_space<vmem>>, vector<64x192xbf16>
    %cst = arith.constant dense<0.000000e+00> : vector<16x192xf32>
    %3 = tpu.matmul %1, %2, %cst {dimension_numbers = #tpu.dot_dimension_numbers<[1], [0], [0], [1], [0, 0, 1, 1], [], []>} : vector<16x64xbf16>, vector<64x192xbf16>, vector<16x192xf32> -> vector<16x192xf32>
    %c0_3 = arith.constant 0 : index
    %c0_4 = arith.constant 0 : index
    %4 = vector.load %arg5[%c0_3, %c0_4] : memref<1x192xf32, #tpu.memory_space<vmem>>, vector<1x192xf32>
    %5 = vector.broadcast %4 : vector<1x192xf32> to vector<16x192xf32>
    %6 = arith.addf %3, %5 : vector<16x192xf32>
    %c0_5 = arith.constant 0 : index
    %c0_6 = arith.constant 0 : index
    %7 = vector.load %arg6[%c0_5, %c0_6] : memref<16x192xf32, #tpu.memory_space<vmem>>, vector<16x192xf32>
    tpu.vector_store %arg6[%c0_5, %c0_6], %6 {strides = array<i32>} : memref<16x192xf32, #tpu.memory_space<vmem>>, vector<16x192xf32>,
    return
  }
  func.func @transform_0(%arg0: i32) -> (i32, i32) {
    %c0_i32 = arith.constant 0 : i32
    %c0_i32_0 = arith.constant 0 : i32
    return %arg0, %c0_i32 : i32, i32
  }
  func.func @transform_1(%arg0: i32) -> (i32, i32) {
    %c0_i32 = arith.constant 0 : i32
    %c0_i32_0 = arith.constant 0 : i32
    %c0_i32_1 = arith.constant 0 : i32
    return %c0_i32, %c0_i32_0 : i32, i32
  }
  func.func @transform_2(%arg0: i32) -> (i32, i32) {
    %c0_i32 = arith.constant 0 : i32
    %c0_i32_0 = arith.constant 0 : i32
    %c0_i32_1 = arith.constant 0 : i32
    return %c0_i32, %c0_i32_0 : i32, i32
  }
  func.func @transform_3(%arg0: i32) -> (i32, i32) {
    %c0_i32 = arith.constant 0 : i32
    %c0_i32_0 = arith.constant 0 : i32
    %c0_i32_1 = arith.constant 0 : i32
    return %c0_i32, %c0_i32_0 : i32, i32
  }
  func.func @transform_4(%arg0: i32) -> (i32, i32) {
    %c0_i32 = arith.constant 0 : i32
    %c0_i32_0 = arith.constant 0 : i32
    %c0_i32_1 = arith.constant 0 : i32
    return %c0_i32, %c0_i32_0 : i32, i32
  }
  func.func @transform_5(%arg0: i32) -> (i32, i32) {
    %c0_i32 = arith.constant 0 : i32
    %c0_i32_0 = arith.constant 0 : i32
    return %arg0, %c0_i32 : i32, i32
  }
}

module attributes {stable_mosaic.version = 11 : i64} {
  func.func @kernel(%arg0: i32, %arg1: memref<8x64xf32, #tpu.memory_space<vmem>>, %arg2: memref<1x64xf32, #tpu.memory_space<vmem>>, %arg3: memref<1x64xf32, #tpu.memory_space<vmem>>, %arg4: memref<64x64xbf16, #tpu.memory_space<vmem>>, %arg5: memref<1x64xf32, #tpu.memory_space<vmem>>, %arg6: memref<8x64xf32, #tpu.memory_space<vmem>>) attributes {dimension_semantics = [#tpu.dimension_semantics<parallel>], iteration_bounds = array<i64: 1>, scalar_prefetch = 0 : i64, scratch_operands = 0 : i64, tpu.core_type = #tpu.core_type<tc>, window_params = [{transform_indices = @transform_0, window_bounds = array<i64: 8, 64>}, {pipeline_mode = #tpu.pipeline_mode<synchronous>, transform_indices = @transform_1, window_bounds = array<i64: 1, 64>}, {pipeline_mode = #tpu.pipeline_mode<synchronous>, transform_indices = @transform_2, window_bounds = array<i64: 1, 64>}, {pipeline_mode = #tpu.pipeline_mode<synchronous>, transform_indices = @transform_3, window_bounds = array<i64: 64, 64>}, {pipeline_mode = #tpu.pipeline_mode<synchronous>, transform_indices = @transform_4, window_bounds = array<i64: 1, 64>}, {transform_indices = @transform_5, window_bounds = array<i64: 8, 64>}]} {
    %c0 = arith.constant 0 : index
    %c0_0 = arith.constant 0 : index
    %0 = vector.load %arg1[%c0, %c0_0] : memref<8x64xf32, #tpu.memory_space<vmem>>, vector<8x64xf32>
    %1 = arith.truncf %0 : vector<8x64xf32> to vector<8x64xbf16>
    %c0_1 = arith.constant 0 : index
    %c0_2 = arith.constant 0 : index
    %2 = vector.load %arg4[%c0_1, %c0_2] : memref<64x64xbf16, #tpu.memory_space<vmem>>, vector<64x64xbf16>
    %cst = arith.constant dense<0.000000e+00> : vector<8x64xf32>
    %3 = tpu.matmul %1, %2, %cst {dimension_numbers = #tpu.dot_dimension_numbers<[1], [0], [0], [1], [0, 0, 1, 1], [], []>} : vector<8x64xbf16>, vector<64x64xbf16>, vector<8x64xf32> -> vector<8x64xf32>
    %c0_3 = arith.constant 0 : index
    %c0_4 = arith.constant 0 : index
    %4 = vector.load %arg5[%c0_3, %c0_4] : memref<1x64xf32, #tpu.memory_space<vmem>>, vector<1x64xf32>
    %5 = vector.broadcast %4 : vector<1x64xf32> to vector<8x64xf32>
    %6 = arith.addf %3, %5 : vector<8x64xf32>
    %c0_5 = arith.constant 0 : index
    %c0_6 = arith.constant 0 : index
    %7 = vector.load %arg6[%c0_5, %c0_6] : memref<8x64xf32, #tpu.memory_space<vmem>>, vector<8x64xf32>
    tpu.vector_store %arg6[%c0_5, %c0_6], %6 {strides = array<i32>} : memref<8x64xf32, #tpu.memory_space<vmem>>, vector<8x64xf32>,
    return
  }
  func.func @transform_0(%arg0: i32) -> (i32, i32) {
    %c0_i32 = arith.constant 0 : i32
    %c0_i32_0 = arith.constant 0 : i32
    return %arg0, %c0_i32 : i32, i32
  }
  func.func @transform_1(%arg0: i32) -> (i32, i32) {
    %c0_i32 = arith.constant 0 : i32
    %c0_i32_0 = arith.constant 0 : i32
    %c0_i32_1 = arith.constant 0 : i32
    return %c0_i32, %c0_i32_0 : i32, i32
  }
  func.func @transform_2(%arg0: i32) -> (i32, i32) {
    %c0_i32 = arith.constant 0 : i32
    %c0_i32_0 = arith.constant 0 : i32
    %c0_i32_1 = arith.constant 0 : i32
    return %c0_i32, %c0_i32_0 : i32, i32
  }
  func.func @transform_3(%arg0: i32) -> (i32, i32) {
    %c0_i32 = arith.constant 0 : i32
    %c0_i32_0 = arith.constant 0 : i32
    %c0_i32_1 = arith.constant 0 : i32
    return %c0_i32, %c0_i32_0 : i32, i32
  }
  func.func @transform_4(%arg0: i32) -> (i32, i32) {
    %c0_i32 = arith.constant 0 : i32
    %c0_i32_0 = arith.constant 0 : i32
    %c0_i32_1 = arith.constant 0 : i32
    return %c0_i32, %c0_i32_0 : i32, i32
  }
  func.func @transform_5(%arg0: i32) -> (i32, i32) {
    %c0_i32 = arith.constant 0 : i32
    %c0_i32_0 = arith.constant 0 : i32
    return %arg0, %c0_i32 : i32, i32
  }
}

module attributes {stable_mosaic.version = 11 : i64} {
  func.func @kernel(%arg0: i32, %arg1: memref<1x8x192xf32, #tpu.memory_space<vmem>>, %arg2: memref<8x64xf32, #tpu.memory_space<vmem>>, %arg3: memref<4x16xf32, #tpu.memory_space<vmem>>, %arg4: memref<4x16xf32, #tpu.memory_space<vmem>>, %arg5: memref<1x8x64xf32, #tpu.memory_space<vmem>>) attributes {dimension_semantics = [#tpu.dimension_semantics<parallel>], iteration_bounds = array<i64: 2>, scalar_prefetch = 0 : i64, scratch_operands = 0 : i64, tpu.core_type = #tpu.core_type<tc>, window_params = [{transform_indices = @transform_0, window_bounds = array<i64: 1, 8, 192>}, {pipeline_mode = #tpu.pipeline_mode<synchronous>, transform_indices = @transform_1, window_bounds = array<i64: 8, 64>}, {pipeline_mode = #tpu.pipeline_mode<synchronous>, transform_indices = @transform_2, window_bounds = array<i64: 4, 16>}, {pipeline_mode = #tpu.pipeline_mode<synchronous>, transform_indices = @transform_3, window_bounds = array<i64: 4, 16>}, {transform_indices = @transform_4, window_bounds = array<i64: 1, 8, 64>}]} {
    %c0 = arith.constant 0 : index
    %c0_0 = arith.constant 0 : index
    %c0_1 = arith.constant 0 : index
    %0 = vector.load %arg1[%c0, %c0_0, %c0_1] : memref<1x8x192xf32, #tpu.memory_space<vmem>>, vector<1x8x192xf32>
    %1 = vector.shape_cast %0 : vector<1x8x192xf32> to vector<8x192xf32>
    %c0_2 = arith.constant 0 : index
    %c0_3 = arith.constant 0 : index
    %2 = vector.load %arg2[%c0_2, %c0_3] : memref<8x64xf32, #tpu.memory_space<vmem>>, vector<8x64xf32>
    %3 = vector.extract_strided_slice %1 {offsets = [0, 0], sizes = [8, 64], strides = [1, 1]} : vector<8x192xf32> to vector<8x64xf32>
    %4 = vector.extract_strided_slice %1 {offsets = [0, 64], sizes = [8, 64], strides = [1, 1]} : vector<8x192xf32> to vector<8x64xf32>
    %5 = vector.extract_strided_slice %1 {offsets = [0, 128], sizes = [8, 64], strides = [1, 1]} : vector<8x192xf32> to vector<8x64xf32>
    %6 = vector.extract_strided_slice %3 {offsets = [0, 0], sizes = [8, 16], strides = [1, 1]} : vector<8x64xf32> to vector<8x16xf32>
    %7 = vector.extract_strided_slice %3 {offsets = [0, 16], sizes = [8, 16], strides = [1, 1]} : vector<8x64xf32> to vector<8x16xf32>
    %8 = vector.extract_strided_slice %3 {offsets = [0, 32], sizes = [8, 16], strides = [1, 1]} : vector<8x64xf32> to vector<8x16xf32>
    %9 = vector.extract_strided_slice %3 {offsets = [0, 48], sizes = [8, 16], strides = [1, 1]} : vector<8x64xf32> to vector<8x16xf32>
    %10 = vector.shape_cast %6 : vector<8x16xf32> to vector<1x8x16xf32>
    %11 = vector.shape_cast %7 : vector<8x16xf32> to vector<1x8x16xf32>
    %12 = vector.shape_cast %8 : vector<8x16xf32> to vector<1x8x16xf32>
    %13 = vector.shape_cast %9 : vector<8x16xf32> to vector<1x8x16xf32>
    %14 = tpu.concatenate %10, %11, %12, %13 in 0 : vector<1x8x16xf32>, vector<1x8x16xf32>, vector<1x8x16xf32>, vector<1x8x16xf32> -> vector<4x8x16xf32>
    %15 = vector.extract_strided_slice %4 {offsets = [0, 0], sizes = [8, 16], strides = [1, 1]} : vector<8x64xf32> to vector<8x16xf32>
    %16 = vector.extract_strided_slice %4 {offsets = [0, 16], sizes = [8, 16], strides = [1, 1]} : vector<8x64xf32> to vector<8x16xf32>
    %17 = vector.extract_strided_slice %4 {offsets = [0, 32], sizes = [8, 16], strides = [1, 1]} : vector<8x64xf32> to vector<8x16xf32>
    %18 = vector.extract_strided_slice %4 {offsets = [0, 48], sizes = [8, 16], strides = [1, 1]} : vector<8x64xf32> to vector<8x16xf32>
    %19 = vector.shape_cast %15 : vector<8x16xf32> to vector<1x8x16xf32>
    %20 = vector.shape_cast %16 : vector<8x16xf32> to vector<1x8x16xf32>
    %21 = vector.shape_cast %17 : vector<8x16xf32> to vector<1x8x16xf32>
    %22 = vector.shape_cast %18 : vector<8x16xf32> to vector<1x8x16xf32>
    %23 = tpu.concatenate %19, %20, %21, %22 in 0 : vector<1x8x16xf32>, vector<1x8x16xf32>, vector<1x8x16xf32>, vector<1x8x16xf32> -> vector<4x8x16xf32>
    %24 = arith.truncf %23 : vector<4x8x16xf32> to vector<4x8x16xbf16>
    %25 = vector.extract_strided_slice %5 {offsets = [0, 0], sizes = [8, 16], strides = [1, 1]} : vector<8x64xf32> to vector<8x16xf32>
    %26 = vector.extract_strided_slice %5 {offsets = [0, 16], sizes = [8, 16], strides = [1, 1]} : vector<8x64xf32> to vector<8x16xf32>
    %27 = vector.extract_strided_slice %5 {offsets = [0, 32], sizes = [8, 16], strides = [1, 1]} : vector<8x64xf32> to vector<8x16xf32>
    %28 = vector.extract_strided_slice %5 {offsets = [0, 48], sizes = [8, 16], strides = [1, 1]} : vector<8x64xf32> to vector<8x16xf32>
    %29 = vector.shape_cast %25 : vector<8x16xf32> to vector<1x8x16xf32>
    %30 = vector.shape_cast %26 : vector<8x16xf32> to vector<1x8x16xf32>
    %31 = vector.shape_cast %27 : vector<8x16xf32> to vector<1x8x16xf32>
    %32 = vector.shape_cast %28 : vector<8x16xf32> to vector<1x8x16xf32>
    %33 = tpu.concatenate %29, %30, %31, %32 in 0 : vector<1x8x16xf32>, vector<1x8x16xf32>, vector<1x8x16xf32>, vector<1x8x16xf32> -> vector<4x8x16xf32>
    %34 = arith.truncf %33 : vector<4x8x16xf32> to vector<4x8x16xbf16>
    %35 = vector.extract_strided_slice %2 {offsets = [0, 0], sizes = [8, 16], strides = [1, 1]} : vector<8x64xf32> to vector<8x16xf32>
    %36 = vector.extract_strided_slice %2 {offsets = [0, 16], sizes = [8, 16], strides = [1, 1]} : vector<8x64xf32> to vector<8x16xf32>
    %37 = vector.extract_strided_slice %2 {offsets = [0, 32], sizes = [8, 16], strides = [1, 1]} : vector<8x64xf32> to vector<8x16xf32>
    %38 = vector.extract_strided_slice %2 {offsets = [0, 48], sizes = [8, 16], strides = [1, 1]} : vector<8x64xf32> to vector<8x16xf32>
    %39 = vector.shape_cast %35 : vector<8x16xf32> to vector<1x8x16xf32>
    %40 = vector.shape_cast %36 : vector<8x16xf32> to vector<1x8x16xf32>
    %41 = vector.shape_cast %37 : vector<8x16xf32> to vector<1x8x16xf32>
    %42 = vector.shape_cast %38 : vector<8x16xf32> to vector<1x8x16xf32>
    %43 = tpu.concatenate %39, %40, %41, %42 in 0 : vector<1x8x16xf32>, vector<1x8x16xf32>, vector<1x8x16xf32>, vector<1x8x16xf32> -> vector<4x8x16xf32>
    %44 = arith.truncf %43 : vector<4x8x16xf32> to vector<4x8x16xbf16>
    %c0_4 = arith.constant 0 : index
    %c0_5 = arith.constant 0 : index
    %45 = vector.load %arg3[%c0_4, %c0_5] : memref<4x16xf32, #tpu.memory_space<vmem>>, vector<4x16xf32>
    %46 = vector.shape_cast %45 : vector<4x16xf32> to vector<4x1x16xf32>
    %c0_6 = arith.constant 0 : index
    %c0_7 = arith.constant 0 : index
    %47 = vector.load %arg4[%c0_6, %c0_7] : memref<4x16xf32, #tpu.memory_space<vmem>>, vector<4x16xf32>
    %48 = vector.shape_cast %47 : vector<4x16xf32> to vector<4x1x16xf32>
    %49 = vector.broadcast %46 : vector<4x1x16xf32> to vector<4x8x16xf32>
    %50 = arith.addf %14, %49 : vector<4x8x16xf32>
    %51 = arith.truncf %50 : vector<4x8x16xf32> to vector<4x8x16xbf16>
    "tpu.trace_start"() <{level = 10 : i32, message = "hqd,hkd->hqk"}> : () -> ()
    %cst = arith.constant dense<0.000000e+00> : vector<4x8x8xf32>
    %52 = tpu.matmul %51, %24, %cst {dimension_numbers = #tpu.dot_dimension_numbers<[2], [2], [1], [1], [0, 0, 0, 1, 1, 1], [0], [0]>} : vector<4x8x16xbf16>, vector<4x8x16xbf16>, vector<4x8x8xf32> -> vector<4x8x8xf32>
    "tpu.trace_stop"() : () -> ()
    %53 = vector.broadcast %48 : vector<4x1x16xf32> to vector<4x8x16xf32>
    %54 = arith.addf %14, %53 : vector<4x8x16xf32>
    %55 = arith.truncf %54 : vector<4x8x16xf32> to vector<4x8x16xbf16>
    "tpu.trace_start"() <{level = 10 : i32, message = "hqd,hkd->hqk"}> : () -> ()
    %cst_8 = arith.constant dense<0.000000e+00> : vector<4x8x8xf32>
    %56 = tpu.matmul %55, %44, %cst_8 {dimension_numbers = #tpu.dot_dimension_numbers<[2], [2], [1], [1], [0, 0, 0, 1, 1, 1], [0], [0]>} : vector<4x8x16xbf16>, vector<4x8x16xbf16>, vector<4x8x8xf32> -> vector<4x8x8xf32>
    "tpu.trace_stop"() : () -> ()
    %57 = vector.extract_strided_slice %56 {offsets = [0, 1, 0], sizes = [4, 7, 8], strides = [1, 1, 1]} : vector<4x8x8xf32> to vector<4x7x8xf32>
    %cst_9 = arith.constant 0.000000e+00 : f32
    %58 = vector.broadcast %cst_9 : f32 to vector<4x1x8xf32>
    %59 = tpu.concatenate %57, %58 in 1 : vector<4x7x8xf32>, vector<4x1x8xf32> -> vector<4x8x8xf32>
    %cst_10 = arith.constant 0.000000e+00 : f32
    %60 = vector.broadcast %cst_10 : f32 to vector<4x8x1xf32>
    %61 = tpu.concatenate %56, %60, %59 in 2 : vector<4x8x8xf32>, vector<4x8x1xf32>, vector<4x8x8xf32> -> vector<4x8x17xf32>
    %62 = vector.extract_strided_slice %61 {offsets = [0, 0, 7], sizes = [4, 1, 8], strides = [1, 1, 1]} : vector<4x8x17xf32> to vector<4x1x8xf32>
    %63 = vector.extract_strided_slice %61 {offsets = [0, 1, 6], sizes = [4, 1, 8], strides = [1, 1, 1]} : vector<4x8x17xf32> to vector<4x1x8xf32>
    %64 = vector.extract_strided_slice %61 {offsets = [0, 2, 5], sizes = [4, 1, 8], strides = [1, 1, 1]} : vector<4x8x17xf32> to vector<4x1x8xf32>
    %65 = vector.extract_strided_slice %61 {offsets = [0, 3, 4], sizes = [4, 1, 8], strides = [1, 1, 1]} : vector<4x8x17xf32> to vector<4x1x8xf32>
    %66 = vector.extract_strided_slice %61 {offsets = [0, 4, 3], sizes = [4, 1, 8], strides = [1, 1, 1]} : vector<4x8x17xf32> to vector<4x1x8xf32>
    %67 = vector.extract_strided_slice %61 {offsets = [0, 5, 2], sizes = [4, 1, 8], strides = [1, 1, 1]} : vector<4x8x17xf32> to vector<4x1x8xf32>
    %68 = vector.extract_strided_slice %61 {offsets = [0, 6, 1], sizes = [4, 1, 8], strides = [1, 1, 1]} : vector<4x8x17xf32> to vector<4x1x8xf32>
    %69 = vector.extract_strided_slice %61 {offsets = [0, 7, 0], sizes = [4, 1, 8], strides = [1, 1, 1]} : vector<4x8x17xf32> to vector<4x1x8xf32>
    %70 = tpu.concatenate %62, %63, %64, %65, %66, %67, %68, %69 in 1 : vector<4x1x8xf32>, vector<4x1x8xf32>, vector<4x1x8xf32>, vector<4x1x8xf32>, vector<4x1x8xf32>, vector<4x1x8xf32>, vector<4x1x8xf32>, vector<4x1x8xf32> -> vector<4x8x8xf32>
    %71 = arith.addf %52, %70 : vector<4x8x8xf32>
    %cst_11 = arith.constant 1.250000e-01 : f32
    %72 = vector.broadcast %cst_11 : f32 to vector<4x8x8xf32>
    %73 = arith.mulf %71, %72 : vector<4x8x8xf32>
    %cst_12 = arith.constant dense<0xFF800000> : vector<4x8xf32>
    %74 = vector.multi_reduction <maximumf>, %73, %cst_12 [2] : vector<4x8x8xf32> to vector<4x8xf32>
    %75 = vector.shape_cast %74 : vector<4x8xf32> to vector<4x8x1xf32>
    %76 = vector.broadcast %75 : vector<4x8x1xf32> to vector<4x8x8xf32>
    %77 = arith.subf %73, %76 : vector<4x8x8xf32>
    %78 = math.exp %77 : vector<4x8x8xf32>
    %cst_13 = arith.constant dense<0.000000e+00> : vector<4x8xf32>
    %79 = vector.multi_reduction <add>, %78, %cst_13 [2] : vector<4x8x8xf32> to vector<4x8xf32>
    %80 = vector.shape_cast %79 : vector<4x8xf32> to vector<4x8x1xf32>
    %81 = tpu.reciprocal %80 {approx = true} : vector<4x8x1xf32> -> vector<4x8x1xf32>
    %82 = vector.broadcast %81 : vector<4x8x1xf32> to vector<4x8x8xf32>
    %83 = arith.mulf %78, %82 : vector<4x8x8xf32>
    %84 = arith.truncf %83 : vector<4x8x8xf32> to vector<4x8x8xbf16>
    "tpu.trace_start"() <{level = 10 : i32, message = "hqk,hkd->hqd"}> : () -> ()
    %cst_14 = arith.constant dense<0.000000e+00> : vector<4x8x16xf32>
    %85 = tpu.matmul %84, %34, %cst_14 {dimension_numbers = #tpu.dot_dimension_numbers<[2], [1], [1], [2], [0, 0, 0, 1, 1, 2], [0], [0]>} : vector<4x8x8xbf16>, vector<4x8x16xbf16>, vector<4x8x16xf32> -> vector<4x8x16xf32>
    "tpu.trace_stop"() : () -> ()
    %86 = vector.extract_strided_slice %85 {offsets = [0, 0, 0], sizes = [1, 8, 16], strides = [1, 1, 1]} : vector<4x8x16xf32> to vector<1x8x16xf32>
    %87 = vector.shape_cast %86 : vector<1x8x16xf32> to vector<8x16xf32>
    %88 = vector.extract_strided_slice %85 {offsets = [1, 0, 0], sizes = [1, 8, 16], strides = [1, 1, 1]} : vector<4x8x16xf32> to vector<1x8x16xf32>
    %89 = vector.shape_cast %88 : vector<1x8x16xf32> to vector<8x16xf32>
    %90 = vector.extract_strided_slice %85 {offsets = [2, 0, 0], sizes = [1, 8, 16], strides = [1, 1, 1]} : vector<4x8x16xf32> to vector<1x8x16xf32>
    %91 = vector.shape_cast %90 : vector<1x8x16xf32> to vector<8x16xf32>
    %92 = vector.extract_strided_slice %85 {offsets = [3, 0, 0], sizes = [1, 8, 16], strides = [1, 1, 1]} : vector<4x8x16xf32> to vector<1x8x16xf32>
    %93 = vector.shape_cast %92 : vector<1x8x16xf32> to vector<8x16xf32>
    %94 = tpu.concatenate %87, %89, %91, %93 in 1 : vector<8x16xf32>, vector<8x16xf32>, vector<8x16xf32>, vector<8x16xf32> -> vector<8x64xf32>
    %c0_15 = arith.constant 0 : index
    %c0_16 = arith.constant 0 : index
    %c0_17 = arith.constant 0 : index
    %95 = vector.load %arg5[%c0_15, %c0_16, %c0_17] : memref<1x8x64xf32, #tpu.memory_space<vmem>>, vector<1x8x64xf32>
    %96 = vector.shape_cast %95 : vector<1x8x64xf32> to vector<8x64xf32>
    %97 = vector.shape_cast %94 : vector<8x64xf32> to vector<1x8x64xf32>
    tpu.vector_store %arg5[%c0_15, %c0_16, %c0_17], %97 {strides = array<i32>} : memref<1x8x64xf32, #tpu.memory_space<vmem>>, vector<1x8x64xf32>,
    return
  }
  func.func @transform_0(%arg0: i32) -> (i32, i32, i32) {
    %c0_i32 = arith.constant 0 : i32
    %c0_i32_0 = arith.constant 0 : i32
    %c0_i32_1 = arith.constant 0 : i32
    return %arg0, %c0_i32, %c0_i32_0 : i32, i32, i32
  }
  func.func @transform_1(%arg0: i32) -> (i32, i32) {
    %c0_i32 = arith.constant 0 : i32
    %c0_i32_0 = arith.constant 0 : i32
    %c0_i32_1 = arith.constant 0 : i32
    return %c0_i32, %c0_i32_0 : i32, i32
  }
  func.func @transform_2(%arg0: i32) -> (i32, i32) {
    %c0_i32 = arith.constant 0 : i32
    %c0_i32_0 = arith.constant 0 : i32
    %c0_i32_1 = arith.constant 0 : i32
    return %c0_i32, %c0_i32_0 : i32, i32
  }
  func.func @transform_3(%arg0: i32) -> (i32, i32) {
    %c0_i32 = arith.constant 0 : i32
    %c0_i32_0 = arith.constant 0 : i32
    %c0_i32_1 = arith.constant 0 : i32
    return %c0_i32, %c0_i32_0 : i32, i32
  }
  func.func @transform_4(%arg0: i32) -> (i32, i32, i32) {
    %c0_i32 = arith.constant 0 : i32
    %c0_i32_0 = arith.constant 0 : i32
    %c0_i32_1 = arith.constant 0 : i32
    return %arg0, %c0_i32, %c0_i32_0 : i32, i32, i32
  }
}

module attributes {stable_mosaic.version = 11 : i64} {
  func.func @kernel(%arg0: i32, %arg1: memref<16x32xf32, #tpu.memory_space<vmem>>, %arg2: memref<1x32xf32, #tpu.memory_space<vmem>>, %arg3: memref<1x32xf32, #tpu.memory_space<vmem>>, %arg4: memref<32x128xbf16, #tpu.memory_space<vmem>>, %arg5: memref<1x128xf32, #tpu.memory_space<vmem>>, %arg6: memref<128x32xbf16, #tpu.memory_space<vmem>>, %arg7: memref<1x32xf32, #tpu.memory_space<vmem>>, %arg8: memref<1x32xf32, #tpu.memory_space<vmem>>, %arg9: memref<1x32xf32, #tpu.memory_space<vmem>>, %arg10: memref<16x32xf32, #tpu.memory_space<vmem>>) attributes {dimension_semantics = [#tpu.dimension_semantics<parallel>], iteration_bounds = array<i64: 1>, scalar_prefetch = 0 : i64, scratch_operands = 0 : i64, tpu.core_type = #tpu.core_type<tc>, window_params = [{transform_indices = @transform_0, window_bounds = array<i64: 16, 32>}, {pipeline_mode = #tpu.pipeline_mode<synchronous>, transform_indices = @transform_1, window_bounds = array<i64: 1, 32>}, {pipeline_mode = #tpu.pipeline_mode<synchronous>, transform_indices = @transform_2, window_bounds = array<i64: 1, 32>}, {pipeline_mode = #tpu.pipeline_mode<synchronous>, transform_indices = @transform_3, window_bounds = array<i64: 32, 128>}, {pipeline_mode = #tpu.pipeline_mode<synchronous>, transform_indices = @transform_4, window_bounds = array<i64: 1, 128>}, {pipeline_mode = #tpu.pipeline_mode<synchronous>, transform_indices = @transform_5, window_bounds = array<i64: 128, 32>}, {pipeline_mode = #tpu.pipeline_mode<synchronous>, transform_indices = @transform_6, window_bounds = array<i64: 1, 32>}, {pipeline_mode = #tpu.pipeline_mode<synchronous>, transform_indices = @transform_7, window_bounds = array<i64: 1, 32>}, {pipeline_mode = #tpu.pipeline_mode<synchronous>, transform_indices = @transform_8, window_bounds = array<i64: 1, 32>}, {transform_indices = @transform_9, window_bounds = array<i64: 16, 32>}]} {
    %c0 = arith.constant 0 : index
    %c0_0 = arith.constant 0 : index
    %0 = vector.load %arg1[%c0, %c0_0] : memref<16x32xf32, #tpu.memory_space<vmem>>, vector<16x32xf32>
    %cst = arith.constant dense<0.000000e+00> : vector<16xf32>
    %1 = vector.multi_reduction <add>, %0, %cst [1] : vector<16x32xf32> to vector<16xf32>
    %2 = vector.shape_cast %1 : vector<16xf32> to vector<16x1xf32>
    %cst_1 = arith.constant 3.200000e+01 : f32
    %3 = vector.broadcast %cst_1 : f32 to vector<16x1xf32>
    %4 = arith.divf %2, %3 : vector<16x1xf32>
    %5 = vector.broadcast %4 : vector<16x1xf32> to vector<16x32xf32>
    %6 = arith.subf %0, %5 : vector<16x32xf32>
    %7 = arith.mulf %6, %6 : vector<16x32xf32>
    %cst_2 = arith.constant dense<0.000000e+00> : vector<16xf32>
    %8 = vector.multi_reduction <add>, %7, %cst_2 [1] : vector<16x32xf32> to vector<16xf32>
    %9 = vector.shape_cast %8 : vector<16xf32> to vector<16x1xf32>
    %cst_3 = arith.constant 3.200000e+01 : f32
    %10 = vector.broadcast %cst_3 : f32 to vector<16x1xf32>
    %11 = arith.divf %9, %10 : vector<16x1xf32>
    %12 = vector.broadcast %4 : vector<16x1xf32> to vector<16x32xf32>
    %13 = arith.subf %0, %12 : vector<16x32xf32>
    %cst_4 = arith.constant 9.99999974E-6 : f32
    %14 = vector.broadcast %cst_4 : f32 to vector<16x1xf32>
    %15 = arith.addf %11, %14 : vector<16x1xf32>
    %16 = math.rsqrt %15 : vector<16x1xf32>
    %17 = vector.broadcast %16 : vector<16x1xf32> to vector<16x32xf32>
    %18 = arith.mulf %13, %17 : vector<16x32xf32>
    %c0_5 = arith.constant 0 : index
    %c0_6 = arith.constant 0 : index
    %19 = vector.load %arg2[%c0_5, %c0_6] : memref<1x32xf32, #tpu.memory_space<vmem>>, vector<1x32xf32>
    %20 = vector.broadcast %19 : vector<1x32xf32> to vector<16x32xf32>
    %21 = arith.mulf %18, %20 : vector<16x32xf32>
    %c0_7 = arith.constant 0 : index
    %c0_8 = arith.constant 0 : index
    %22 = vector.load %arg3[%c0_7, %c0_8] : memref<1x32xf32, #tpu.memory_space<vmem>>, vector<1x32xf32>
    %23 = vector.broadcast %22 : vector<1x32xf32> to vector<16x32xf32>
    %24 = arith.addf %21, %23 : vector<16x32xf32>
    %25 = arith.truncf %24 : vector<16x32xf32> to vector<16x32xbf16>
    %c0_9 = arith.constant 0 : index
    %c0_10 = arith.constant 0 : index
    %26 = vector.load %arg4[%c0_9, %c0_10] : memref<32x128xbf16, #tpu.memory_space<vmem>>, vector<32x128xbf16>
    %cst_11 = arith.constant dense<0.000000e+00> : vector<16x128xf32>
    %27 = tpu.matmul %25, %26, %cst_11 {dimension_numbers = #tpu.dot_dimension_numbers<[1], [0], [0], [1], [0, 0, 1, 1], [], []>} : vector<16x32xbf16>, vector<32x128xbf16>, vector<16x128xf32> -> vector<16x128xf32>
    %c0_12 = arith.constant 0 : index
    %c0_13 = arith.constant 0 : index
    %28 = vector.load %arg5[%c0_12, %c0_13] : memref<1x128xf32, #tpu.memory_space<vmem>>, vector<1x128xf32>
    %29 = vector.broadcast %28 : vector<1x128xf32> to vector<16x128xf32>
    %30 = arith.addf %27, %29 : vector<16x128xf32>
    %31 = arith.negf %30 : vector<16x128xf32>
    %32 = math.exp %31 : vector<16x128xf32>
    %cst_14 = arith.constant 1.000000e+00 : f32
    %33 = vector.broadcast %cst_14 : f32 to vector<16x128xf32>
    %34 = arith.addf %33, %32 : vector<16x128xf32>
    %35 = arith.divf %33, %34 : vector<16x128xf32>
    %36 = arith.mulf %30, %35 : vector<16x128xf32>
    %37 = arith.truncf %36 : vector<16x128xf32> to vector<16x128xbf16>
    %c0_15 = arith.constant 0 : index
    %c0_16 = arith.constant 0 : index
    %38 = vector.load %arg6[%c0_15, %c0_16] : memref<128x32xbf16, #tpu.memory_space<vmem>>, vector<128x32xbf16>
    %cst_17 = arith.constant dense<0.000000e+00> : vector<16x32xf32>
    %39 = tpu.matmul %37, %38, %cst_17 {dimension_numbers = #tpu.dot_dimension_numbers<[1], [0], [0], [1], [0, 0, 1, 1], [], []>} : vector<16x128xbf16>, vector<128x32xbf16>, vector<16x32xf32> -> vector<16x32xf32>
    %c0_18 = arith.constant 0 : index
    %c0_19 = arith.constant 0 : index
    %40 = vector.load %arg7[%c0_18, %c0_19] : memref<1x32xf32, #tpu.memory_space<vmem>>, vector<1x32xf32>
    %41 = vector.broadcast %40 : vector<1x32xf32> to vector<16x32xf32>
    %42 = arith.addf %39, %41 : vector<16x32xf32>
    %cst_20 = arith.constant 5.000000e-01 : f32
    %43 = vector.broadcast %cst_20 : f32 to vector<16x32xf32>
    %44 = arith.mulf %43, %42 : vector<16x32xf32>
    %45 = arith.addf %0, %44 : vector<16x32xf32>
    %cst_21 = arith.constant dense<0.000000e+00> : vector<16xf32>
    %46 = vector.multi_reduction <add>, %45, %cst_21 [1] : vector<16x32xf32> to vector<16xf32>
    %47 = vector.shape_cast %46 : vector<16xf32> to vector<16x1xf32>
    %cst_22 = arith.constant 3.200000e+01 : f32
    %48 = vector.broadcast %cst_22 : f32 to vector<16x1xf32>
    %49 = arith.divf %47, %48 : vector<16x1xf32>
    %50 = vector.broadcast %49 : vector<16x1xf32> to vector<16x32xf32>
    %51 = arith.subf %45, %50 : vector<16x32xf32>
    %52 = arith.mulf %51, %51 : vector<16x32xf32>
    %cst_23 = arith.constant dense<0.000000e+00> : vector<16xf32>
    %53 = vector.multi_reduction <add>, %52, %cst_23 [1] : vector<16x32xf32> to vector<16xf32>
    %54 = vector.shape_cast %53 : vector<16xf32> to vector<16x1xf32>
    %cst_24 = arith.constant 3.200000e+01 : f32
    %55 = vector.broadcast %cst_24 : f32 to vector<16x1xf32>
    %56 = arith.divf %54, %55 : vector<16x1xf32>
    %57 = vector.broadcast %49 : vector<16x1xf32> to vector<16x32xf32>
    %58 = arith.subf %45, %57 : vector<16x32xf32>
    %cst_25 = arith.constant 9.99999974E-6 : f32
    %59 = vector.broadcast %cst_25 : f32 to vector<16x1xf32>
    %60 = arith.addf %56, %59 : vector<16x1xf32>
    %61 = math.rsqrt %60 : vector<16x1xf32>
    %62 = vector.broadcast %61 : vector<16x1xf32> to vector<16x32xf32>
    %63 = arith.mulf %58, %62 : vector<16x32xf32>
    %c0_26 = arith.constant 0 : index
    %c0_27 = arith.constant 0 : index
    %64 = vector.load %arg8[%c0_26, %c0_27] : memref<1x32xf32, #tpu.memory_space<vmem>>, vector<1x32xf32>
    %65 = vector.broadcast %64 : vector<1x32xf32> to vector<16x32xf32>
    %66 = arith.mulf %63, %65 : vector<16x32xf32>
    %c0_28 = arith.constant 0 : index
    %c0_29 = arith.constant 0 : index
    %67 = vector.load %arg9[%c0_28, %c0_29] : memref<1x32xf32, #tpu.memory_space<vmem>>, vector<1x32xf32>
    %68 = vector.broadcast %67 : vector<1x32xf32> to vector<16x32xf32>
    %69 = arith.addf %66, %68 : vector<16x32xf32>
    %c0_30 = arith.constant 0 : index
    %c0_31 = arith.constant 0 : index
    %70 = vector.load %arg10[%c0_30, %c0_31] : memref<16x32xf32, #tpu.memory_space<vmem>>, vector<16x32xf32>
    tpu.vector_store %arg10[%c0_30, %c0_31], %69 {strides = array<i32>} : memref<16x32xf32, #tpu.memory_space<vmem>>, vector<16x32xf32>,
    return
  }
  func.func @transform_0(%arg0: i32) -> (i32, i32) {
    %c0_i32 = arith.constant 0 : i32
    %c0_i32_0 = arith.constant 0 : i32
    return %arg0, %c0_i32 : i32, i32
  }
  func.func @transform_1(%arg0: i32) -> (i32, i32) {
    %c0_i32 = arith.constant 0 : i32
    %c0_i32_0 = arith.constant 0 : i32
    %c0_i32_1 = arith.constant 0 : i32
    return %c0_i32, %c0_i32_0 : i32, i32
  }
  func.func @transform_2(%arg0: i32) -> (i32, i32) {
    %c0_i32 = arith.constant 0 : i32
    %c0_i32_0 = arith.constant 0 : i32
    %c0_i32_1 = arith.constant 0 : i32
    return %c0_i32, %c0_i32_0 : i32, i32
  }
  func.func @transform_3(%arg0: i32) -> (i32, i32) {
    %c0_i32 = arith.constant 0 : i32
    %c0_i32_0 = arith.constant 0 : i32
    %c0_i32_1 = arith.constant 0 : i32
    return %c0_i32, %c0_i32_0 : i32, i32
  }
  func.func @transform_4(%arg0: i32) -> (i32, i32) {
    %c0_i32 = arith.constant 0 : i32
    %c0_i32_0 = arith.constant 0 : i32
    %c0_i32_1 = arith.constant 0 : i32
    return %c0_i32, %c0_i32_0 : i32, i32
  }
  func.func @transform_5(%arg0: i32) -> (i32, i32) {
    %c0_i32 = arith.constant 0 : i32
    %c0_i32_0 = arith.constant 0 : i32
    %c0_i32_1 = arith.constant 0 : i32
    return %c0_i32, %c0_i32_0 : i32, i32
  }
  func.func @transform_6(%arg0: i32) -> (i32, i32) {
    %c0_i32 = arith.constant 0 : i32
    %c0_i32_0 = arith.constant 0 : i32
    %c0_i32_1 = arith.constant 0 : i32
    return %c0_i32, %c0_i32_0 : i32, i32
  }
  func.func @transform_7(%arg0: i32) -> (i32, i32) {
    %c0_i32 = arith.constant 0 : i32
    %c0_i32_0 = arith.constant 0 : i32
    %c0_i32_1 = arith.constant 0 : i32
    return %c0_i32, %c0_i32_0 : i32, i32
  }
  func.func @transform_8(%arg0: i32) -> (i32, i32) {
    %c0_i32 = arith.constant 0 : i32
    %c0_i32_0 = arith.constant 0 : i32
    %c0_i32_1 = arith.constant 0 : i32
    return %c0_i32, %c0_i32_0 : i32, i32
  }
  func.func @transform_9(%arg0: i32) -> (i32, i32) {
    %c0_i32 = arith.constant 0 : i32
    %c0_i32_0 = arith.constant 0 : i32
    return %arg0, %c0_i32 : i32, i32
  }
}

module attributes {stable_mosaic.version = 11 : i64} {
  func.func @kernel(%arg0: i32, %arg1: memref<16x64xf32, #tpu.memory_space<vmem>>, %arg2: memref<16x32xf32, #tpu.memory_space<vmem>>, %arg3: memref<64x64xbf16, #tpu.memory_space<vmem>>, %arg4: memref<1x64xf32, #tpu.memory_space<vmem>>, %arg5: memref<64x32xbf16, #tpu.memory_space<vmem>>, %arg6: memref<1x32xf32, #tpu.memory_space<vmem>>, %arg7: memref<16x32xf32, #tpu.memory_space<vmem>>) attributes {dimension_semantics = [#tpu.dimension_semantics<parallel>], iteration_bounds = array<i64: 1>, scalar_prefetch = 0 : i64, scratch_operands = 0 : i64, tpu.core_type = #tpu.core_type<tc>, window_params = [{transform_indices = @transform_0, window_bounds = array<i64: 16, 64>}, {transform_indices = @transform_1, window_bounds = array<i64: 16, 32>}, {pipeline_mode = #tpu.pipeline_mode<synchronous>, transform_indices = @transform_2, window_bounds = array<i64: 64, 64>}, {pipeline_mode = #tpu.pipeline_mode<synchronous>, transform_indices = @transform_3, window_bounds = array<i64: 1, 64>}, {pipeline_mode = #tpu.pipeline_mode<synchronous>, transform_indices = @transform_4, window_bounds = array<i64: 64, 32>}, {pipeline_mode = #tpu.pipeline_mode<synchronous>, transform_indices = @transform_5, window_bounds = array<i64: 1, 32>}, {transform_indices = @transform_6, window_bounds = array<i64: 16, 32>}]} {
    %c0 = arith.constant 0 : index
    %c0_0 = arith.constant 0 : index
    %0 = vector.load %arg1[%c0, %c0_0] : memref<16x64xf32, #tpu.memory_space<vmem>>, vector<16x64xf32>
    %1 = arith.truncf %0 : vector<16x64xf32> to vector<16x64xbf16>
    %c0_1 = arith.constant 0 : index
    %c0_2 = arith.constant 0 : index
    %2 = vector.load %arg3[%c0_1, %c0_2] : memref<64x64xbf16, #tpu.memory_space<vmem>>, vector<64x64xbf16>
    %cst = arith.constant dense<0.000000e+00> : vector<16x64xf32>
    %3 = tpu.matmul %1, %2, %cst {dimension_numbers = #tpu.dot_dimension_numbers<[1], [0], [0], [1], [0, 0, 1, 1], [], []>} : vector<16x64xbf16>, vector<64x64xbf16>, vector<16x64xf32> -> vector<16x64xf32>
    %c0_3 = arith.constant 0 : index
    %c0_4 = arith.constant 0 : index
    %4 = vector.load %arg4[%c0_3, %c0_4] : memref<1x64xf32, #tpu.memory_space<vmem>>, vector<1x64xf32>
    %5 = vector.broadcast %4 : vector<1x64xf32> to vector<16x64xf32>
    %6 = arith.addf %3, %5 : vector<16x64xf32>
    %7 = arith.truncf %6 : vector<16x64xf32> to vector<16x64xbf16>
    %c0_5 = arith.constant 0 : index
    %c0_6 = arith.constant 0 : index
    %8 = vector.load %arg5[%c0_5, %c0_6] : memref<64x32xbf16, #tpu.memory_space<vmem>>, vector<64x32xbf16>
    %cst_7 = arith.constant dense<0.000000e+00> : vector<16x32xf32>
    %9 = tpu.matmul %7, %8, %cst_7 {dimension_numbers = #tpu.dot_dimension_numbers<[1], [0], [0], [1], [0, 0, 1, 1], [], []>} : vector<16x64xbf16>, vector<64x32xbf16>, vector<16x32xf32> -> vector<16x32xf32>
    %c0_8 = arith.constant 0 : index
    %c0_9 = arith.constant 0 : index
    %10 = vector.load %arg6[%c0_8, %c0_9] : memref<1x32xf32, #tpu.memory_space<vmem>>, vector<1x32xf32>
    %11 = vector.broadcast %10 : vector<1x32xf32> to vector<16x32xf32>
    %12 = arith.addf %9, %11 : vector<16x32xf32>
    %c0_10 = arith.constant 0 : index
    %c0_11 = arith.constant 0 : index
    %13 = vector.load %arg2[%c0_10, %c0_11] : memref<16x32xf32, #tpu.memory_space<vmem>>, vector<16x32xf32>
    %14 = arith.addf %13, %12 : vector<16x32xf32>
    %c0_12 = arith.constant 0 : index
    %c0_13 = arith.constant 0 : index
    %15 = vector.load %arg7[%c0_12, %c0_13] : memref<16x32xf32, #tpu.memory_space<vmem>>, vector<16x32xf32>
    tpu.vector_store %arg7[%c0_12, %c0_13], %14 {strides = array<i32>} : memref<16x32xf32, #tpu.memory_space<vmem>>, vector<16x32xf32>,
    return
  }
  func.func @transform_0(%arg0: i32) -> (i32, i32) {
    %c0_i32 = arith.constant 0 : i32
    %c0_i32_0 = arith.constant 0 : i32
    return %arg0, %c0_i32 : i32, i32
  }
  func.func @transform_1(%arg0: i32) -> (i32, i32) {
    %c0_i32 = arith.constant 0 : i32
    %c0_i32_0 = arith.constant 0 : i32
    return %arg0, %c0_i32 : i32, i32
  }
  func.func @transform_2(%arg0: i32) -> (i32, i32) {
    %c0_i32 = arith.constant 0 : i32
    %c0_i32_0 = arith.constant 0 : i32
    %c0_i32_1 = arith.constant 0 : i32
    return %c0_i32, %c0_i32_0 : i32, i32
  }
  func.func @transform_3(%arg0: i32) -> (i32, i32) {
    %c0_i32 = arith.constant 0 : i32
    %c0_i32_0 = arith.constant 0 : i32
    %c0_i32_1 = arith.constant 0 : i32
    return %c0_i32, %c0_i32_0 : i32, i32
  }
  func.func @transform_4(%arg0: i32) -> (i32, i32) {
    %c0_i32 = arith.constant 0 : i32
    %c0_i32_0 = arith.constant 0 : i32
    %c0_i32_1 = arith.constant 0 : i32
    return %c0_i32, %c0_i32_0 : i32, i32
  }
  func.func @transform_5(%arg0: i32) -> (i32, i32) {
    %c0_i32 = arith.constant 0 : i32
    %c0_i32_0 = arith.constant 0 : i32
    %c0_i32_1 = arith.constant 0 : i32
    return %c0_i32, %c0_i32_0 : i32, i32
  }
  func.func @transform_6(%arg0: i32) -> (i32, i32) {
    %c0_i32 = arith.constant 0 : i32
    %c0_i32_0 = arith.constant 0 : i32
    return %arg0, %c0_i32 : i32, i32
  }
}

</mosaic_0001>

<llo_original>
// kernel: _lambda_.9
$region0: #{_lambda_.9}
  #allocation0 [shape = 'u32[]', space=smem, size = 0x4, offset = 0x4, fixed_abs, tag = 'smem constant byte address 0x4 - core index']
  #allocation1 [shape = 'u32[144,128]{1,0:T(1,128)}', space=vmem, size = 0x12000, scoped, tag = 'internal scratch']
  %s0 = inlined_call_operand.vmem [shape: f32[16,32], index: 0, kind: input, shape index: {}]
  %s1 = inlined_call_operand.vmem [shape: f32[1,32], index: 1, kind: input, shape index: {}]
  %s2 = inlined_call_operand.vmem [shape: f32[1,32], index: 2, kind: input, shape index: {}]
  %s3 = inlined_call_operand.vmem [shape: bf16[32,128], index: 3, kind: input, shape index: {}]
  %s4 = inlined_call_operand.vmem [shape: f32[1,128], index: 4, kind: input, shape index: {}]
  %s5 = inlined_call_operand.vmem [shape: bf16[128,32], index: 5, kind: input, shape index: {}]
  %s6 = inlined_call_operand.vmem [shape: f32[1,32], index: 6, kind: input, shape index: {}]
  %s7 = inlined_call_operand.vmem [shape: f32[1,32], index: 7, kind: input, shape index: {}]
  %s8 = inlined_call_operand.vmem [shape: f32[1,32], index: 8, kind: input, shape index: {}]
  %s9 = inlined_call_operand.vmem [shape: f32[16,32], index: 9, kind: output, shape index: {}]
  %s10 = sld [smem:[#allocation0]]
  $region46: #{_lambda_.9} parent=0
    _
  %s12 = ssub.s32 1, %s10
  %s13 = scalar_select 0, %s12, %s10
  // Predicated region
  $region2: #{_lambda_.9} parent=0 // pred_check
    _
  $region3: #{_lambda_.9} parent=0 // pred_check_branch
    %15 = sbr.rel (0) target = $region5
  $region4: #{_lambda_.9} parent=0 // pred_region
    _
  $region5: #{_lambda_.9} parent=0 // pred_fallthru
    _
  // Predicated region
  $region6: #{_lambda_.9} parent=0 // pred_check
    _
  $region7: #{_lambda_.9} parent=0 // pred_check_branch
    %17 = sbr.rel (0) target = $region9
  $region8: #{_lambda_.9} parent=0 // pred_region
    _
  $region9: #{_lambda_.9} parent=0 // pred_fallthru
    _
  // Predicated region
  $region10: #{_lambda_.9} parent=0 // pred_check
    _
  $region11: #{_lambda_.9} parent=0 // pred_check_branch
    %19 = sbr.rel (0) target = $region13
  $region12: #{_lambda_.9} parent=0 // pred_region
    _
  $region13: #{_lambda_.9} parent=0 // pred_fallthru
    _
  // Predicated region
  $region14: #{_lambda_.9} parent=0 // pred_check
    _
  $region15: #{_lambda_.9} parent=0 // pred_check_branch
    %21 = sbr.rel (0) target = $region17
  $region16: #{_lambda_.9} parent=0 // pred_region
    _
  $region17: #{_lambda_.9} parent=0 // pred_fallthru
    _
  // Predicated region
  $region18: #{_lambda_.9} parent=0 // pred_check
    _
  $region19: #{_lambda_.9} parent=0 // pred_check_branch
    %23 = sbr.rel (0) target = $region21
  $region20: #{_lambda_.9} parent=0 // pred_region
    _
  $region21: #{_lambda_.9} parent=0 // pred_fallthru
    _
  // Predicated region
  $region22: #{_lambda_.9} parent=0 // pred_check
    _
  $region23: #{_lambda_.9} parent=0 // pred_check_branch
    %25 = sbr.rel (0) target = $region25
  $region24: #{_lambda_.9} parent=0 // pred_region
    _
  $region25: #{_lambda_.9} parent=0 // pred_fallthru
    _
  // Predicated region
  $region26: #{_lambda_.9} parent=0 // pred_check
    _
  $region27: #{_lambda_.9} parent=0 // pred_check_branch
    %27 = sbr.rel (0) target = $region29
  $region28: #{_lambda_.9} parent=0 // pred_region
    _
  $region29: #{_lambda_.9} parent=0 // pred_fallthru
    _
  // Predicated region
  $region30: #{_lambda_.9} parent=0 // pred_check
    _
  $region31: #{_lambda_.9} parent=0 // pred_check_branch
    %29 = sbr.rel (0) target = $region33
  $region32: #{_lambda_.9} parent=0 // pred_region
    _
  $region33: #{_lambda_.9} parent=0 // pred_fallthru
    _
  // Predicated region
  $region34: #{_lambda_.9} parent=0 // pred_check
    _
  $region35: #{_lambda_.9} parent=0 // pred_check_branch
    %31 = sbr.rel (0) target = $region37
  $region36: #{_lambda_.9} parent=0 // pred_region
    _
  $region37: #{_lambda_.9} parent=0 // pred_fallthru
    _
  %v33 = vld [vmem:[%s0] sm:$0xff]
  %v34 = vld [vmem:[%s0 + $0x8] sm:$0xff]
  %vm35 = vcmask 261120
  %v36 = vsel %vm35, %v33, 0.0
  %37 = vadd.xlane.f32.xlu0 %v36
  %v38 = vpop.xlane.xlu0 %37
  %v39 = vsel %vm35, %v34, 0.0
  %40 = vadd.xlane.f32.xlu0 %v39
  %v41 = vpop.xlane.xlu0 %40
  %v42 = vrcp.pop 32.0
  %v43 = vmul.f32 %v38, %v42
  %v44 = vmul.f32 %v41, %v42
  %v45 = vsub.f32 %v33, %v43
  %v46 = vsub.f32 %v34, %v44
  %v47 = vmul.f32 %v45, %v45
  %v48 = vmul.f32 %v46, %v46
  %v49 = vsel %vm35, %v47, 0.0
  %50 = vadd.xlane.f32.xlu0 %v49
  %v51 = vpop.xlane.xlu0 %50
  %v52 = vsel %vm35, %v48, 0.0
  %53 = vadd.xlane.f32.xlu0 %v52
  %v54 = vpop.xlane.xlu0 %53
  %v55 = vmul.f32 %v51, %v42
  %v56 = vmul.f32 %v54, %v42
  %v57 = vadd.f32 %v55, 1e-05
  %v58 = vadd.f32 %v56, 1e-05
  %v59 = vrsqrt.pop %v57
  %v60 = vrsqrt.pop %v58
  %v61 = vmul.f32 %v45, %v59
  %v62 = vmul.f32 %v46, %v60
  %v63 = vld [vmem:[%s1] sm:$0x1]
  %v65 = vlaneseq
  %v66 = vshrl.u32 %v65, 7
  %v67 = vsub.s32 0, %v66
  %v68 = vrot.slane %v63, %v67
  %v70 = vmul.f32 %v61, %v68
  %v71 = vmul.f32 %v62, %v68
  %v72 = vld [vmem:[%s2] sm:$0x1]
  %v74 = vlaneseq
  %v75 = vshrl.u32 %v74, 7
  %v76 = vsub.s32 0, %v75
  %v77 = vrot.slane %v72, %v76
  %v79 = vadd.f32 %v70, %v77
  %v80 = vadd.f32 %v71, %v77
  %v81 = vpack.c.bf16 %v80, %v79
  %v82 = vld [vmem:[%s3] sm:$0xf]
  %v83 = vld [vmem:[%s3 + $0x4] sm:$0xf]
  %v84 = vld [vmem:[%s3 + $0x8] sm:$0xf]
  %v85 = vld [vmem:[%s3 + $0xc] sm:$0xf]
  %v86 = vld [vmem:[%s4] sm:$0x1]
  %v88 = vlaneseq
  %v89 = vshrl.u32 %v88, 7
  %v90 = vsub.s32 0, %v89
  %v91 = vrot.slane %v86, %v90
  %v97 = vunpack.c.l.b16 %v82
  %v98 = vunpack.c.l.b16 %v83
  %v99 = vunpack.c.l.b16 %v84
  %v100 = vunpack.c.l.b16 %v85
  %v101 = vpack.c.b16 %v98, %v97
  %v102 = vpack.c.b16 %v100, %v99
  %v106 = vsel %vm35, %v81, 0
  %108 = vmatprep.subr.bf16.mxu0 0
  %109 = vmatpush1.bf16.msra.mxu0 %v101
  %110 = vmatprep.subr.bf16.mxu0 0
  %111 = vmatpush1.bf16.msra.mxu0 %v102
  %112 = vmatprep.subr.bf16.mxu0 0
  %113 = vmatpush1.bf16.msra.mxu0 0
  %114 = vmatprep.subr.bf16.mxu0 0
  %115 = vmatpush1.bf16.msra.mxu0 0
  %116 = vmatprep.subr.bf16.mxu0 0
  %117 = vmatpush1.bf16.msra.mxu0 0
  %118 = vmatprep.subr.bf16.mxu0 0
  %119 = vmatpush1.bf16.msra.mxu0 0
  %120 = vmatprep.subr.bf16.mxu0 0
  %121 = vmatpush1.bf16.msra.mxu0 0
  %122 = vmatprep.subr.bf16.mxu0 0
  %123 = vmatpush1.bf16.msra.mxu0 0
  %124 = vmatprep.subr.bf16.mxu0 0
  %125 = vmatpush1.bf16.msra.mxu0 0
  %126 = vmatprep.subr.bf16.mxu0 0
  %127 = vmatpush1.bf16.msra.mxu0 0
  %128 = vmatprep.subr.bf16.mxu0 0
  %129 = vmatpush1.bf16.msra.mxu0 0
  %130 = vmatprep.subr.bf16.mxu0 0
  %131 = vmatpush1.bf16.msra.mxu0 0
  %132 = vmatprep.subr.bf16.mxu0 0
  %133 = vmatpush1.bf16.msra.mxu0 0
  %134 = vmatprep.subr.bf16.mxu0 0
  %135 = vmatpush1.bf16.msra.mxu0 0
  %136 = vmatprep.subr.bf16.mxu0 0
  %137 = vmatpush1.bf16.msra.mxu0 0
  %138 = vmatprep.subr.bf16.mxu0 0
  %139 = vmatpush1.bf16.msra.mxu0 0
  %140 = vmatprep.mubr.bf16.mxu0 0
  %141 = vmatmul.mubr.bf16.gmra.mrb[0].mxu0 %v106
  %v142 = vpop.f32.mrb[0].mxu0
  %v143 = vadd.f32 %v91, %v142
  %v144 = vpop.f32.mrb[0].mxu0
  %v145 = vpop.f32.mrb[0].mxu0
  %v146 = vadd.f32 %v91, %v145
  %v147 = vpop.f32.mrb[0].mxu0
  %148 = vdwg.mxu0
  %v149 = vxor.u32 %v143, 2147483648
  %v150 = vxor.u32 %v146, 2147483648
  %v151 = vmul.f32 %v149, 1.442695
  %v152 = vpow.pop %v151
  %v153 = vmul.f32 %v150, 1.442695
  %v154 = vpow.pop %v153
  %v155 = vadd.f32 %v152, 1.0
  %v156 = vadd.f32 %v154, 1.0
  %v157 = vrcp.pop %v155
  %v158 = vmul.f32 1.0, %v157
  %v159 = vrcp.pop %v156
  %v160 = vmul.f32 1.0, %v159
  %v161 = vmul.f32 %v143, %v158
  %v162 = vmul.f32 %v146, %v160
  %v163 = vpack.c.bf16 %v162, %v161
  %v164 = vld [vmem:[%s5] sm:$0xf]
  %v165 = vld [vmem:[%s5 + $0x4] sm:$0xf]
  %v166 = vld [vmem:[%s5 + $0x8] sm:$0xf]
  %v167 = vld [vmem:[%s5 + $0xc] sm:$0xf]
  %v168 = vld [vmem:[%s5 + $0x10] sm:$0xf]
  %v169 = vld [vmem:[%s5 + $0x14] sm:$0xf]
  %v170 = vld [vmem:[%s5 + $0x18] sm:$0xf]
  %v171 = vld [vmem:[%s5 + $0x1c] sm:$0xf]
  %v172 = vld [vmem:[%s5 + $0x20] sm:$0xf]
  %v173 = vld [vmem:[%s5 + $0x24] sm:$0xf]
  %v174 = vld [vmem:[%s5 + $0x28] sm:$0xf]
  %v175 = vld [vmem:[%s5 + $0x2c] sm:$0xf]
  %v176 = vld [vmem:[%s5 + $0x30] sm:$0xf]
  %v177 = vld [vmem:[%s5 + $0x34] sm:$0xf]
  %v178 = vld [vmem:[%s5 + $0x38] sm:$0xf]
  %v179 = vld [vmem:[%s5 + $0x3c] sm:$0xf]
  %v180 = vld [vmem:[%s6] sm:$0x1]
  %v182 = vlaneseq
  %v183 = vshrl.u32 %v182, 7
  %v184 = vsub.s32 0, %v183
  %v185 = vrot.slane %v180, %v184
  %v203 = vunpack.c.l.b16 %v164
  %v204 = vunpack.c.l.b16 %v165
  %v205 = vunpack.c.l.b16 %v166
  %v206 = vunpack.c.l.b16 %v167
  %v207 = vunpack.c.l.b16 %v168
  %v208 = vunpack.c.l.b16 %v169
  %v209 = vunpack.c.l.b16 %v170
  %v210 = vunpack.c.l.b16 %v171
  %v211 = vunpack.c.l.b16 %v172
  %v212 = vunpack.c.l.b16 %v173
  %v213 = vunpack.c.l.b16 %v174
  %v214 = vunpack.c.l.b16 %v175
  %v215 = vunpack.c.l.b16 %v176
  %v216 = vunpack.c.l.b16 %v177
  %v217 = vunpack.c.l.b16 %v178
  %v218 = vunpack.c.l.b16 %v179
  %v219 = vpack.c.b16 %v204, %v203
  %v220 = vpack.c.b16 %v206, %v205
  %v221 = vpack.c.b16 %v208, %v207
  %v222 = vpack.c.b16 %v210, %v209
  %v223 = vpack.c.b16 %v212, %v211
  %v224 = vpack.c.b16 %v214, %v213
  %v225 = vpack.c.b16 %v216, %v215
  %v226 = vpack.c.b16 %v218, %v217
  %235 = vmatprep.subr.bf16.mxu0 0
  %236 = vmatpush1.bf16.msra.mxu0 %v219
  %237 = vmatprep.subr.bf16.mxu0 0
  %238 = vmatpush1.bf16.msra.mxu0 %v220
  %239 = vmatprep.subr.bf16.mxu0 0
  %240 = vmatpush1.bf16.msra.mxu0 %v221
  %241 = vmatprep.subr.bf16.mxu0 0
  %242 = vmatpush1.bf16.msra.mxu0 %v222
  %243 = vmatprep.subr.bf16.mxu0 0
  %244 = vmatpush1.bf16.msra.mxu0 %v223
  %245 = vmatprep.subr.bf16.mxu0 0
  %246 = vmatpush1.bf16.msra.mxu0 %v224
  %247 = vmatprep.subr.bf16.mxu0 0
  %248 = vmatpush1.bf16.msra.mxu0 %v225
  %249 = vmatprep.subr.bf16.mxu0 0
  %250 = vmatpush1.bf16.msra.mxu0 %v226
  %251 = vmatprep.subr.bf16.mxu0 0
  %252 = vmatpush1.bf16.msra.mxu0 0
  %253 = vmatprep.subr.bf16.mxu0 0
  %254 = vmatpush1.bf16.msra.mxu0 0
  %255 = vmatprep.subr.bf16.mxu0 0
  %256 = vmatpush1.bf16.msra.mxu0 0
  %257 = vmatprep.subr.bf16.mxu0 0
  %258 = vmatpush1.bf16.msra.mxu0 0
  %259 = vmatprep.subr.bf16.mxu0 0
  %260 = vmatpush1.bf16.msra.mxu0 0
  %261 = vmatprep.subr.bf16.mxu0 0
  %262 = vmatpush1.bf16.msra.mxu0 0
  %263 = vmatprep.subr.bf16.mxu0 0
  %264 = vmatpush1.bf16.msra.mxu0 0
  %265 = vmatprep.subr.bf16.mxu0 0
  %266 = vmatpush1.bf16.msra.mxu0 0
  %267 = vmatprep.mubr.bf16.mxu0 0
  %268 = vmatmul.mubr.bf16.gmra.mrb[0].mxu0 %v163
  %v269 = vpop.f32.mrb[0].mxu0
  %v270 = vadd.f32 %v185, %v269
  %v271 = vpop.f32.mrb[0].mxu0
  %v272 = vpop.f32.mrb[0].mxu0
  %v273 = vadd.f32 %v185, %v272
  %v274 = vpop.f32.mrb[0].mxu0
  %275 = vdwg.mxu0
  %v276 = vmul.f32 %v270, 0.5
  %v277 = vmul.f32 %v273, 0.5
  %v278 = vadd.f32 %v33, %v276
  %v279 = vadd.f32 %v34, %v277
  %280 = vst.msk [vmem:[%s9] sm:$0xff] %vm35, %v278
  %281 = vst.msk [vmem:[%s9 + $0x8] sm:$0xff] %vm35, %v279
  // Predicated region
  $region38: #{_lambda_.9} parent=0 // pred_check
    _
  $region39: #{_lambda_.9} parent=0 // pred_check_branch
    %283 = sbr.rel (0) target = $region41
  $region40: #{_lambda_.9} parent=0 // pred_region
    _
  $region41: #{_lambda_.9} parent=0 // pred_fallthru
    _
  // Predicated region
  $region42: #{_lambda_.9} parent=0 // pred_check
    _
  $region43: #{_lambda_.9} parent=0 // pred_check_branch
    %285 = sbr.rel (0) target = $region45
  $region44: #{_lambda_.9} parent=0 // pred_region
    _
  $region45: #{_lambda_.9} parent=0 // pred_fallthru
    _

// kernel: _lambda_.12
$region0: #{_lambda_.12}
  #allocation0 [shape = 'u32[]', space=smem, size = 0x4, offset = 0x4, fixed_abs, tag = 'smem constant byte address 0x4 - core index']
  #allocation1 [shape = 'u32[144,128]{1,0:T(1,128)}', space=vmem, size = 0x12000, scoped, tag = 'internal scratch']
  %s0 = inlined_call_operand.vmem [shape: f32[8,2,256], index: 0, kind: input, shape index: {}]
  %s1 = inlined_call_operand.vmem [shape: bf16[64,128], index: 1, kind: input, shape index: {}]
  %s2 = inlined_call_operand.vmem [shape: f32[8,2,64], index: 2, kind: output, shape index: {}]
  %s3 = sld [smem:[#allocation0]]
  $region25: #{_lambda_.12} parent=0
    _
  %s5 = ssub.s32 1, %s3
  %s6 = scalar_select 0, %s5, %s3
  // Predicated region
  $region2: #{_lambda_.12} parent=0 // pred_check
    _
  $region3: #{_lambda_.12} parent=0 // pred_check_branch
    %8 = sbr.rel (0) target = $region5
  $region4: #{_lambda_.12} parent=0 // pred_region
    _
  $region5: #{_lambda_.12} parent=0 // pred_fallthru
    _
  // Predicated region
  $region6: #{_lambda_.12} parent=0 // pred_check
    _
  $region7: #{_lambda_.12} parent=0 // pred_check_branch
    %10 = sbr.rel (0) target = $region9
  $region8: #{_lambda_.12} parent=0 // pred_region
    _
  $region9: #{_lambda_.12} parent=0 // pred_fallthru
    _
  %v12 = vld [vmem:[%s1] sm:$0xf]
  %v13 = vld [vmem:[%s1 + $0x4] sm:$0xf]
  %v14 = vld [vmem:[%s1 + $0x8] sm:$0xf]
  %v15 = vld [vmem:[%s1 + $0xc] sm:$0xf]
  %v16 = vld [vmem:[%s1 + $0x10] sm:$0xf]
  %v17 = vld [vmem:[%s1 + $0x14] sm:$0xf]
  %v18 = vld [vmem:[%s1 + $0x18] sm:$0xf]
  %v19 = vld [vmem:[%s1 + $0x1c] sm:$0xf]
  %v20 = vlaneseq
  %v21 = vshrl.u32 %v20, 7
  %vm22 = vcmp.lt.s32.totalorder %v21, 2
  %v23 = vsel %vm22, 1, 0
  %v24 = vcvt.s32.f32 %v23
  loop: start=0, step=1, limit=8
  $region10: #{_lambda_.12} parent=0 // loop_pre_header
    _
  $region11: #{_lambda_.12} parent=0 // loop_header
    %s26 = sphi 0, %s30
    %p27 = scmp.ge.s32.totalorder %s26, 8
    %v31 = vphi 0.0, %v161
    %v32 = vphi 0.0, %v155
  $region12: #{_lambda_.12} parent=0 // loop_header_branch
    %29 = sbr.rel (%p27) target = $region16
  $region13: #{_lambda_.12} parent=0 // loop_body
    %s33 = ssub.s32 7, %s26
    %s34 = smul.u32 %s26, 2
    %s35 = smul.addr %s34, 2
    %s36 = scalar_lea.vmem %s0, %s35
    %v37 = vld [vmem:[%s36] sm:$0xf]
    %s38 = smul.u32 %s33, 2
    %s39 = smul.addr %s38, 2
    %s40 = scalar_lea.vmem %s0, %s39
    %v41 = vld [vmem:[%s40] sm:$0xf]
    %v43 = vcombine.low %v41, %v41
    %v45 = vunpack.c.l.s4 1983009808
    %v46 = vunpack.c.0.s8 %v45
    %v47 = vlaneseq
    %v48 = vshrl.u32 %v47, 7
    %v49 = vsub.s32 %v46, %v48
    %v50 = vrot.slane %v43, %v49
    %v51 = vcombine.high %v50, %v50
    %vm53 = vcmask 1041408
    %v54 = vsel %vm53, %v37, %v51
    %v55 = vmul.f32 %v31, %v24
    %v56 = vsub.f32 1.0, %v24
    %v57 = vmul.f32 %v31, %v56
    %59 = vrot.lane.b32.xlu0 %v55, 32
    %v60 = vpop.permute.xlu0 %59
    %63 = vrot.lane.b32.xlu0 %v57, 64
    %v64 = vpop.permute.xlu0 %63
    %vm66 = vcmask 261120
    %v67 = vsel %vm66, %v60, %v64
    %v68 = vpack.c.bf16 %v67, %v67
    %v77 = vunpack.c.l.b16 %v12
    %v78 = vunpack.c.l.b16 %v13
    %v79 = vunpack.c.l.b16 %v14
    %v80 = vunpack.c.l.b16 %v15
    %v81 = vunpack.c.l.b16 %v16
    %v82 = vunpack.c.l.b16 %v17
    %v83 = vunpack.c.l.b16 %v18
    %v84 = vunpack.c.l.b16 %v19
    %v85 = vpack.c.b16 %v78, %v77
    %v86 = vpack.c.b16 %v80, %v79
    %v87 = vpack.c.b16 %v82, %v81
    %v88 = vpack.c.b16 %v84, %v83
    %vm93 = vcmask 523264
    %v95 = vsel %vm93, %v68, 0
    %97 = vmatprep.subr.bf16.mxu0 0
    %98 = vmatpush1.bf16.msra.mxu0 %v85
    %99 = vmatprep.subr.bf16.mxu0 0
    %100 = vmatpush1.bf16.msra.mxu0 %v86
    %101 = vmatprep.subr.bf16.mxu0 0
    %102 = vmatpush1.bf16.msra.mxu0 %v87
    %103 = vmatprep.subr.bf16.mxu0 0
    %104 = vmatpush1.bf16.msra.mxu0 %v88
    %105 = vmatprep.subr.bf16.mxu0 0
    %106 = vmatpush1.bf16.msra.mxu0 0
    %107 = vmatprep.subr.bf16.mxu0 0
    %108 = vmatpush1.bf16.msra.mxu0 0
    %109 = vmatprep.subr.bf16.mxu0 0
    %110 = vmatpush1.bf16.msra.mxu0 0
    %111 = vmatprep.subr.bf16.mxu0 0
    %112 = vmatpush1.bf16.msra.mxu0 0
    %113 = vmatprep.subr.bf16.mxu0 0
    %114 = vmatpush1.bf16.msra.mxu0 0
    %115 = vmatprep.subr.bf16.mxu0 0
    %116 = vmatpush1.bf16.msra.mxu0 0
    %117 = vmatprep.subr.bf16.mxu0 0
    %118 = vmatpush1.bf16.msra.mxu0 0
    %119 = vmatprep.subr.bf16.mxu0 0
    %120 = vmatpush1.bf16.msra.mxu0 0
    %121 = vmatprep.subr.bf16.mxu0 0
    %122 = vmatpush1.bf16.msra.mxu0 0
    %123 = vmatprep.subr.bf16.mxu0 0
    %124 = vmatpush1.bf16.msra.mxu0 0
    %125 = vmatprep.subr.bf16.mxu0 0
    %126 = vmatpush1.bf16.msra.mxu0 0
    %127 = vmatprep.subr.bf16.mxu0 0
    %128 = vmatpush1.bf16.msra.mxu0 0
    %129 = vmatprep.mubr.bf16.mxu0 0
    %130 = vmatmul.mubr.bf16.gmra.mrb[0].mxu0 %v95
    %v131 = vpop.f32.mrb[0].mxu0
    %v132 = vadd.f32 0.0, %v131
    %v133 = vpop.f32.mrb[0].mxu0
    %v134 = vpop.f32.mrb[0].mxu0
    %v135 = vpop.f32.mrb[0].mxu0
    %136 = vdwg.mxu0
    %v137 = vadd.f32 %v54, %v132
    %v138 = vxor.u32 %v137, 2147483648
    %v139 = vmul.f32 %v138, 1.442695
    %v140 = vpow.pop %v139
    %v141 = vadd.f32 %v140, 1.0
    %v142 = vrcp.pop %v141
    %v143 = vmul.f32 1.0, %v142
    %v144 = vtanh.pop %v137
    %v145 = vmul.f32 %v143, %v32
    %147 = vrot.lane.b32.xlu0 %v144, 64
    %v148 = vpop.permute.xlu0 %147
    %v150 = vmul.f32 %v143, %v148
    %152 = vrot.lane.b32.xlu0 %v150, 32
    %v153 = vpop.permute.xlu0 %152
    %v155 = vadd.f32 %v145, %v153
    %v156 = vtanh.pop %v155
    %158 = vrot.lane.b32.xlu0 %v156, 64
    %v159 = vpop.permute.xlu0 %158
    %v161 = vmul.f32 %v143, %v159
    %163 = vrot.lane.b32.xlu0 %v161, 32
    %v164 = vpop.permute.xlu0 %163
    %s166 = scalar_lea.vmem %s2, %s34
    %vm167 = vcmask 254976
    %168 = vst.msk [vmem:[%s166] sm:$0x3] %vm167, %v164
    %169 = vrot.lane.b32.xlu0 %v161, 64
    %v170 = vpop.permute.xlu0 %169
    %s172 = scalar_lea.vmem %s2, %s38
    %vm173 = vcmask 519426
    %174 = vst.msk [vmem:[%s172 - $0x2] sm:$0xc] %vm173, %v170
  $region14: #{_lambda_.12} parent=0 // loop_footer
    %s30 = sadd.s32 1, %s26
  $region15: #{_lambda_.12} parent=0 // loop_footer_branch
    %25 = sbr.rel target = $region11
  $region16: #{_lambda_.12} parent=0 // loop_exit
    _
  // Predicated region
  $region17: #{_lambda_.12} parent=0 // pred_check
    _
  $region18: #{_lambda_.12} parent=0 // pred_check_branch
    %176 = sbr.rel (0) target = $region20
  $region19: #{_lambda_.12} parent=0 // pred_region
    _
  $region20: #{_lambda_.12} parent=0 // pred_fallthru
    _
  // Predicated region
  $region21: #{_lambda_.12} parent=0 // pred_check
    _
  $region22: #{_lambda_.12} parent=0 // pred_check_branch
    %178 = sbr.rel (0) target = $region24
  $region23: #{_lambda_.12} parent=0 // pred_region
    _
  $region24: #{_lambda_.12} parent=0 // pred_fallthru
    _

// kernel: _lambda_.11
$region0: #{_lambda_.11}
  #allocation0 [shape = 'u32[]', space=smem, size = 0x4, offset = 0x4, fixed_abs, tag = 'smem constant byte address 0x4 - core index']
  #allocation1 [shape = 'u32[144,128]{1,0:T(1,128)}', space=vmem, size = 0x12000, scoped, tag = 'internal scratch']
  %s0 = inlined_call_operand.vmem [shape: f32[16,32], index: 0, kind: input, shape index: {}]
  %s1 = inlined_call_operand.vmem [shape: f32[1,32], index: 1, kind: input, shape index: {}]
  %s2 = inlined_call_operand.vmem [shape: f32[1,32], index: 2, kind: input, shape index: {}]
  %s3 = inlined_call_operand.vmem [shape: bf16[32,256], index: 3, kind: input, shape index: {}]
  %s4 = inlined_call_operand.vmem [shape: f32[1,256], index: 4, kind: input, shape index: {}]
  %s5 = inlined_call_operand.vmem [shape: f32[16,256], index: 5, kind: output, shape index: {}]
  %s6 = sld [smem:[#allocation0]]
  $region30: #{_lambda_.11} parent=0
    _
  %s8 = ssub.s32 1, %s6
  %s9 = scalar_select 0, %s8, %s6
  // Predicated region
  $region2: #{_lambda_.11} parent=0 // pred_check
    _
  $region3: #{_lambda_.11} parent=0 // pred_check_branch
    %11 = sbr.rel (0) target = $region5
  $region4: #{_lambda_.11} parent=0 // pred_region
    _
  $region5: #{_lambda_.11} parent=0 // pred_fallthru
    _
  // Predicated region
  $region6: #{_lambda_.11} parent=0 // pred_check
    _
  $region7: #{_lambda_.11} parent=0 // pred_check_branch
    %13 = sbr.rel (0) target = $region9
  $region8: #{_lambda_.11} parent=0 // pred_region
    _
  $region9: #{_lambda_.11} parent=0 // pred_fallthru
    _
  // Predicated region
  $region10: #{_lambda_.11} parent=0 // pred_check
    _
  $region11: #{_lambda_.11} parent=0 // pred_check_branch
    %15 = sbr.rel (0) target = $region13
  $region12: #{_lambda_.11} parent=0 // pred_region
    _
  $region13: #{_lambda_.11} parent=0 // pred_fallthru
    _
  // Predicated region
  $region14: #{_lambda_.11} parent=0 // pred_check
    _
  $region15: #{_lambda_.11} parent=0 // pred_check_branch
    %17 = sbr.rel (0) target = $region17
  $region16: #{_lambda_.11} parent=0 // pred_region
    _
  $region17: #{_lambda_.11} parent=0 // pred_fallthru
    _
  // Predicated region
  $region18: #{_lambda_.11} parent=0 // pred_check
    _
  $region19: #{_lambda_.11} parent=0 // pred_check_branch
    %19 = sbr.rel (0) target = $region21
  $region20: #{_lambda_.11} parent=0 // pred_region
    _
  $region21: #{_lambda_.11} parent=0 // pred_fallthru
    _
  %v21 = vld [vmem:[%s0] sm:$0xff]
  %v22 = vld [vmem:[%s0 + $0x8] sm:$0xff]
  %vm23 = vcmask 261120
  %v24 = vsel %vm23, %v21, 0.0
  %25 = vadd.xlane.f32.xlu0 %v24
  %v26 = vpop.xlane.xlu0 %25
  %v27 = vsel %vm23, %v22, 0.0
  %28 = vadd.xlane.f32.xlu0 %v27
  %v29 = vpop.xlane.xlu0 %28
  %v30 = vrcp.pop 32.0
  %v31 = vmul.f32 %v26, %v30
  %v32 = vmul.f32 %v29, %v30
  %v33 = vsub.f32 %v21, %v31
  %v34 = vsub.f32 %v22, %v32
  %v35 = vmul.f32 %v33, %v33
  %v36 = vmul.f32 %v34, %v34
  %v37 = vsel %vm23, %v35, 0.0
  %38 = vadd.xlane.f32.xlu0 %v37
  %v39 = vpop.xlane.xlu0 %38
  %v40 = vsel %vm23, %v36, 0.0
  %41 = vadd.xlane.f32.xlu0 %v40
  %v42 = vpop.xlane.xlu0 %41
  %v43 = vmul.f32 %v39, %v30
  %v44 = vmul.f32 %v42, %v30
  %v45 = vadd.f32 %v43, 1e-05
  %v46 = vadd.f32 %v44, 1e-05
  %v47 = vrsqrt.pop %v45
  %v48 = vrsqrt.pop %v46
  %v49 = vmul.f32 %v33, %v47
  %v50 = vmul.f32 %v34, %v48
  %v51 = vld [vmem:[%s1] sm:$0x1]
  %v53 = vlaneseq
  %v54 = vshrl.u32 %v53, 7
  %v55 = vsub.s32 0, %v54
  %v56 = vrot.slane %v51, %v55
  %v58 = vmul.f32 %v49, %v56
  %v59 = vmul.f32 %v50, %v56
  %v60 = vld [vmem:[%s2] sm:$0x1]
  %v62 = vlaneseq
  %v63 = vshrl.u32 %v62, 7
  %v64 = vsub.s32 0, %v63
  %v65 = vrot.slane %v60, %v64
  %v67 = vadd.f32 %v58, %v65
  %v68 = vadd.f32 %v59, %v65
  %v69 = vpack.c.bf16 %v68, %v67
  %v70 = vld [vmem:[%s3] sm:$0xff]
  %v71 = vld [vmem:[%s3 + $0x8] sm:$0xff]
  %v72 = vld [vmem:[%s3 + $0x10] sm:$0xff]
  %v73 = vld [vmem:[%s3 + $0x18] sm:$0xff]
  %v74 = vld [vmem:[%s4] sm:$0x3]
  %v76 = vlaneseq
  %v77 = vshrl.u32 %v76, 7
  %v78 = vsub.s32 0, %v77
  %v79 = vrot.slane %v74, %v78
  %v80 = vlaneseq
  %v81 = vshrl.u32 %v80, 7
  %v82 = vsub.s32 1, %v81
  %v83 = vrot.slane %v74, %v82
  %v90 = vunpack.c.l.b16 %v70
  %v91 = vunpack.c.h.b16 %v70
  %v92 = vunpack.c.l.b16 %v71
  %v93 = vunpack.c.h.b16 %v71
  %v94 = vunpack.c.l.b16 %v72
  %v95 = vunpack.c.h.b16 %v72
  %v96 = vunpack.c.l.b16 %v73
  %v97 = vunpack.c.h.b16 %v73
  %v98 = vpack.c.b16 %v92, %v90
  %v99 = vpack.c.b16 %v93, %v91
  %v100 = vpack.c.b16 %v96, %v94
  %v101 = vpack.c.b16 %v97, %v95
  %v107 = vsel %vm23, %v69, 0
  %109 = vmatprep.subr.bf16.mxu0 %v99
  %110 = vmatpush1.bf16.msra.mxu0 %v98
  %111 = vmatprep.subr.bf16.mxu0 %v101
  %112 = vmatpush1.bf16.msra.mxu0 %v100
  %113 = vmatprep.subr.bf16.mxu0 0
  %114 = vmatpush1.bf16.msra.mxu0 0
  %115 = vmatprep.subr.bf16.mxu0 0
  %116 = vmatpush1.bf16.msra.mxu0 0
  %117 = vmatprep.subr.bf16.mxu0 0
  %118 = vmatpush1.bf16.msra.mxu0 0
  %119 = vmatprep.subr.bf16.mxu0 0
  %120 = vmatpush1.bf16.msra.mxu0 0
  %121 = vmatprep.subr.bf16.mxu0 0
  %122 = vmatpush1.bf16.msra.mxu0 0
  %123 = vmatprep.subr.bf16.mxu0 0
  %124 = vmatpush1.bf16.msra.mxu0 0
  %125 = vmatprep.subr.bf16.mxu0 0
  %126 = vmatpush1.bf16.msra.mxu0 0
  %127 = vmatprep.subr.bf16.mxu0 0
  %128 = vmatpush1.bf16.msra.mxu0 0
  %129 = vmatprep.subr.bf16.mxu0 0
  %130 = vmatpush1.bf16.msra.mxu0 0
  %131 = vmatprep.subr.bf16.mxu0 0
  %132 = vmatpush1.bf16.msra.mxu0 0
  %133 = vmatprep.subr.bf16.mxu0 0
  %134 = vmatpush1.bf16.msra.mxu0 0
  %135 = vmatprep.subr.bf16.mxu0 0
  %136 = vmatpush1.bf16.msra.mxu0 0
  %137 = vmatprep.subr.bf16.mxu0 0
  %138 = vmatpush1.bf16.msra.mxu0 0
  %139 = vmatprep.subr.bf16.mxu0 0
  %140 = vmatpush1.bf16.msra.mxu0 0
  %141 = vmatprep.mubr.bf16.mxu0 0
  %142 = vmatmul.mubr.bf16.gmra.mrb[0].mxu0 %v107
  %v143 = vpop.f32.mrb[0].mxu0
  %v144 = vadd.f32 %v79, %v143
  %v145 = vpop.f32.mrb[0].mxu0
  %v146 = vadd.f32 %v83, %v145
  %v147 = vpop.f32.mrb[0].mxu0
  %v148 = vadd.f32 %v79, %v147
  %v149 = vpop.f32.mrb[0].mxu0
  %v150 = vadd.f32 %v83, %v149
  %151 = vdwg.mxu0
  %152 = vst [vmem:[%s5] sm:$0xff] %v144
  %153 = vst [vmem:[%s5 + $0x8] sm:$0xff] %v146
  %154 = vst [vmem:[%s5 + $0x10] sm:$0xff] %v148
  %155 = vst [vmem:[%s5 + $0x18] sm:$0xff] %v150
  // Predicated region
  $region22: #{_lambda_.11} parent=0 // pred_check
    _
  $region23: #{_lambda_.11} parent=0 // pred_check_branch
    %157 = sbr.rel (0) target = $region25
  $region24: #{_lambda_.11} parent=0 // pred_region
    _
  $region25: #{_lambda_.11} parent=0 // pred_fallthru
    _
  // Predicated region
  $region26: #{_lambda_.11} parent=0 // pred_check
    _
  $region27: #{_lambda_.11} parent=0 // pred_check_branch
    %159 = sbr.rel (0) target = $region29
  $region28: #{_lambda_.11} parent=0 // pred_region
    _
  $region29: #{_lambda_.11} parent=0 // pred_fallthru
    _

// kernel: _lambda_.10
$region0: #{_lambda_.10}
  #allocation0 [shape = 'u32[]', space=smem, size = 0x4, offset = 0x4, fixed_abs, tag = 'smem constant byte address 0x4 - core index']
  #allocation1 [shape = 'u32[144,128]{1,0:T(1,128)}', space=vmem, size = 0x12000, scoped, tag = 'internal scratch']
  %s0 = inlined_call_operand.vmem [shape: f32[2,8,32], index: 0, kind: input, shape index: {}]
  %s1 = inlined_call_operand.vmem [shape: f32[1,32], index: 1, kind: input, shape index: {}]
  %s2 = inlined_call_operand.vmem [shape: f32[1,32], index: 2, kind: input, shape index: {}]
  %s3 = inlined_call_operand.vmem [shape: bf16[32,32], index: 3, kind: input, shape index: {}]
  %s4 = inlined_call_operand.vmem [shape: f32[1,32], index: 4, kind: input, shape index: {}]
  %s5 = inlined_call_operand.vmem [shape: bf16[32,32], index: 5, kind: input, shape index: {}]
  %s6 = inlined_call_operand.vmem [shape: f32[1,32], index: 6, kind: input, shape index: {}]
  %s7 = inlined_call_operand.vmem [shape: f32[7,32], index: 7, kind: input, shape index: {}]
  %s8 = inlined_call_operand.vmem [shape: f32[1,32], index: 8, kind: input, shape index: {}]
  %s9 = inlined_call_operand.vmem [shape: f32[1,32], index: 9, kind: input, shape index: {}]
  %s10 = inlined_call_operand.vmem [shape: f32[1,32], index: 10, kind: input, shape index: {}]
  %s11 = inlined_call_operand.vmem [shape: f32[1,32], index: 11, kind: input, shape index: {}]
  %s12 = inlined_call_operand.vmem [shape: bf16[32,32], index: 12, kind: input, shape index: {}]
  %s13 = inlined_call_operand.vmem [shape: f32[1,32], index: 13, kind: input, shape index: {}]
  %s14 = inlined_call_operand.vmem [shape: f32[2,8,32], index: 14, kind: output, shape index: {}]
  %s15 = sld [smem:[#allocation0]]
  $region89: #{_lambda_.10} parent=0
    _
  %s17 = ssub.s32 1, %s15
  %s18 = scalar_select 0, %s17, %s15
  loop: start=0, step=1, limit=4
  $region2: #{_lambda_.10} parent=0 // loop_pre_header
    _
  $region3: #{_lambda_.10} parent=0 // loop_header
    %s20 = sphi 0, %s24
    %p21 = scmp.ge.s32.totalorder %s20, 4
    %s30 = sphi 0, %s32
    %s33 = sphi 0, %s30
    %s34 = sphi 0, %s33
    %s50 = sphi 0, %s34
    %s54 = sphi 0, %s54
    %s56 = sphi 0, %s54
    %s57 = sphi 0, %s56
    %s71 = sphi 0, %s57
    %s75 = sphi 0, %s75
    %s77 = sphi 0, %s75
    %s78 = sphi 0, %s77
    %s92 = sphi 0, %s78
    %s96 = sphi 0, %s96
    %s98 = sphi 0, %s96
    %s99 = sphi 0, %s98
    %s113 = sphi 0, %s99
    %s117 = sphi 0, %s117
    %s119 = sphi 0, %s117
    %s120 = sphi 0, %s119
    %s134 = sphi 0, %s120
    %s138 = sphi 0, %s138
    %s140 = sphi 0, %s138
    %s141 = sphi 0, %s140
    %s155 = sphi 0, %s141
    %s159 = sphi 0, %s159
    %s161 = sphi 0, %s159
    %s162 = sphi 0, %s161
    %s176 = sphi 0, %s162
    %s180 = sphi 0, %s180
    %s182 = sphi 0, %s180
    %s183 = sphi 0, %s182
    %s197 = sphi 0, %s183
    %s201 = sphi 0, %s201
    %s203 = sphi 0, %s201
    %s204 = sphi 0, %s203
    %s218 = sphi 0, %s204
    %s222 = sphi 0, %s222
    %s224 = sphi 0, %s222
    %s225 = sphi 0, %s224
    %s239 = sphi 0, %s225
    %s243 = sphi 0, %s243
    %s245 = sphi 0, %s243
    %s246 = sphi 0, %s245
    %s260 = sphi 0, %s246
    %s264 = sphi 0, %s264
    %s266 = sphi 0, %s264
    %s267 = sphi 0, %s266
    %s281 = sphi 0, %s267
    %s285 = sphi 0, %s285
    %s287 = sphi 0, %s285
    %s288 = sphi 0, %s287
    %s302 = sphi 0, %s288
    %s306 = sphi 0, %s306
    %s308 = sphi 0, %s306
    %s309 = sphi 0, %s308
    %s323 = sphi 0, %s309
    %s329 = sphi 0, %s331
    %s332 = sphi 0, %s329
    %s333 = sphi 0, %s332
    %s349 = sphi 0, %s333
  $region4: #{_lambda_.10} parent=0 // loop_header_branch
    %23 = sbr.rel (%p21) target = $region8
  $region5: #{_lambda_.10} parent=0 // loop_body
    %s25 = ssub.s32 %s20, 1
    %s26 = ssub.s32 %s20, 2
    %s27 = sadd.s32 %s20, 1
    %s28 = ssub.s32 %s20, %s27
    %p29 = scmp.eq.s32.totalorder %s28, 0
    %s31 = sadd.s32 %s30, 1
    %s32 = scalar_select %p29, %s30, %s31
    %p35 = pneg %p29
    %p36 = scmp.eq.s32.totalorder %s20, 1
    %p37 = por %p35, %p36
    %p38 = scmp.ne.s32.totalorder %s30, %s33
    %p39 = scmp.eq.s32.totalorder %s20, 0
    %p40 = por %p38, %p39
    %p41 = scmp.ne.s32.totalorder %s30, %s33
    %p42 = scmp.eq.s32.totalorder %s25, 1
    %p43 = por %p41, %p42
    %p44 = scmp.ne.s32.totalorder %s33, %s34
    %p45 = scmp.eq.s32.totalorder %s25, 0
    %p46 = por %p44, %p45
    %p47 = scmp.ne.s32.totalorder %s33, %s34
    %p48 = scmp.eq.s32.totalorder %s26, 1
    %p49 = por %p47, %p48
    %p51 = scmp.ne.s32.totalorder %s34, %s50
    %p52 = scmp.eq.s32.totalorder %s26, 0
    %p53 = por %p51, %p52
    %s55 = sadd.s32 %s54, 1
    %p58 = scmp.eq.s32.totalorder %s20, 1
    %p59 = scmp.ne.s32.totalorder %s54, %s56
    %p60 = scmp.eq.s32.totalorder %s20, 0
    %p61 = por %p59, %p60
    %p62 = scmp.ne.s32.totalorder %s54, %s56
    %p63 = scmp.eq.s32.totalorder %s25, 1
    %p64 = por %p62, %p63
    %p65 = scmp.ne.s32.totalorder %s56, %s57
    %p66 = scmp.eq.s32.totalorder %s25, 0
    %p67 = por %p65, %p66
    %p68 = scmp.ne.s32.totalorder %s56, %s57
    %p69 = scmp.eq.s32.totalorder %s26, 1
    %p70 = por %p68, %p69
    %p72 = scmp.ne.s32.totalorder %s57, %s71
    %p73 = scmp.eq.s32.totalorder %s26, 0
    %p74 = por %p72, %p73
    %s76 = sadd.s32 %s75, 1
    %p79 = scmp.eq.s32.totalorder %s20, 1
    %p80 = scmp.ne.s32.totalorder %s75, %s77
    %p81 = scmp.eq.s32.totalorder %s20, 0
    %p82 = por %p80, %p81
    %p83 = scmp.ne.s32.totalorder %s75, %s77
    %p84 = scmp.eq.s32.totalorder %s25, 1
    %p85 = por %p83, %p84
    %p86 = scmp.ne.s32.totalorder %s77, %s78
    %p87 = scmp.eq.s32.totalorder %s25, 0
    %p88 = por %p86, %p87
    %p89 = scmp.ne.s32.totalorder %s77, %s78
    %p90 = scmp.eq.s32.totalorder %s26, 1
    %p91 = por %p89, %p90
    %p93 = scmp.ne.s32.totalorder %s78, %s92
    %p94 = scmp.eq.s32.totalorder %s26, 0
    %p95 = por %p93, %p94
    %s97 = sadd.s32 %s96, 1
    %p100 = scmp.eq.s32.totalorder %s20, 1
    %p101 = scmp.ne.s32.totalorder %s96, %s98
    %p102 = scmp.eq.s32.totalorder %s20, 0
    %p103 = por %p101, %p102
    %p104 = scmp.ne.s32.totalorder %s96, %s98
    %p105 = scmp.eq.s32.totalorder %s25, 1
    %p106 = por %p104, %p105
    %p107 = scmp.ne.s32.totalorder %s98, %s99
    %p108 = scmp.eq.s32.totalorder %s25, 0
    %p109 = por %p107, %p108
    %p110 = scmp.ne.s32.totalorder %s98, %s99
    %p111 = scmp.eq.s32.totalorder %s26, 1
    %p112 = por %p110, %p111
    %p114 = scmp.ne.s32.totalorder %s99, %s113
    %p115 = scmp.eq.s32.totalorder %s26, 0
    %p116 = por %p114, %p115
    %s118 = sadd.s32 %s117, 1
    %p121 = scmp.eq.s32.totalorder %s20, 1
    %p122 = scmp.ne.s32.totalorder %s117, %s119
    %p123 = scmp.eq.s32.totalorder %s20, 0
    %p124 = por %p122, %p123
    %p125 = scmp.ne.s32.totalorder %s117, %s119
    %p126 = scmp.eq.s32.totalorder %s25, 1
    %p127 = por %p125, %p126
    %p128 = scmp.ne.s32.totalorder %s119, %s120
    %p129 = scmp.eq.s32.totalorder %s25, 0
    %p130 = por %p128, %p129
    %p131 = scmp.ne.s32.totalorder %s119, %s120
    %p132 = scmp.eq.s32.totalorder %s26, 1
    %p133 = por %p131, %p132
    %p135 = scmp.ne.s32.totalorder %s120, %s134
    %p136 = scmp.eq.s32.totalorder %s26, 0
    %p137 = por %p135, %p136
    %s139 = sadd.s32 %s138, 1
    %p142 = scmp.eq.s32.totalorder %s20, 1
    %p143 = scmp.ne.s32.totalorder %s138, %s140
    %p144 = scmp.eq.s32.totalorder %s20, 0
    %p145 = por %p143, %p144
    %p146 = scmp.ne.s32.totalorder %s138, %s140
    %p147 = scmp.eq.s32.totalorder %s25, 1
    %p148 = por %p146, %p147
    %p149 = scmp.ne.s32.totalorder %s140, %s141
    %p150 = scmp.eq.s32.totalorder %s25, 0
    %p151 = por %p149, %p150
    %p152 = scmp.ne.s32.totalorder %s140, %s141
    %p153 = scmp.eq.s32.totalorder %s26, 1
    %p154 = por %p152, %p153
    %p156 = scmp.ne.s32.totalorder %s141, %s155
    %p157 = scmp.eq.s32.totalorder %s26, 0
    %p158 = por %p156, %p157
    %s160 = sadd.s32 %s159, 1
    %p163 = scmp.eq.s32.totalorder %s20, 1
    %p164 = scmp.ne.s32.totalorder %s159, %s161
    %p165 = scmp.eq.s32.totalorder %s20, 0
    %p166 = por %p164, %p165
    %p167 = scmp.ne.s32.totalorder %s159, %s161
    %p168 = scmp.eq.s32.totalorder %s25, 1
    %p169 = por %p167, %p168
    %p170 = scmp.ne.s32.totalorder %s161, %s162
    %p171 = scmp.eq.s32.totalorder %s25, 0
    %p172 = por %p170, %p171
    %p173 = scmp.ne.s32.totalorder %s161, %s162
    %p174 = scmp.eq.s32.totalorder %s26, 1
    %p175 = por %p173, %p174
    %p177 = scmp.ne.s32.totalorder %s162, %s176
    %p178 = scmp.eq.s32.totalorder %s26, 0
    %p179 = por %p177, %p178
    %s181 = sadd.s32 %s180, 1
    %p184 = scmp.eq.s32.totalorder %s20, 1
    %p185 = scmp.ne.s32.totalorder %s180, %s182
    %p186 = scmp.eq.s32.totalorder %s20, 0
    %p187 = por %p185, %p186
    %p188 = scmp.ne.s32.totalorder %s180, %s182
    %p189 = scmp.eq.s32.totalorder %s25, 1
    %p190 = por %p188, %p189
    %p191 = scmp.ne.s32.totalorder %s182, %s183
    %p192 = scmp.eq.s32.totalorder %s25, 0
    %p193 = por %p191, %p192
    %p194 = scmp.ne.s32.totalorder %s182, %s183
    %p195 = scmp.eq.s32.totalorder %s26, 1
    %p196 = por %p194, %p195
    %p198 = scmp.ne.s32.totalorder %s183, %s197
    %p199 = scmp.eq.s32.totalorder %s26, 0
    %p200 = por %p198, %p199
    %s202 = sadd.s32 %s201, 1
    %p205 = scmp.eq.s32.totalorder %s20, 1
    %p206 = scmp.ne.s32.totalorder %s201, %s203
    %p207 = scmp.eq.s32.totalorder %s20, 0
    %p208 = por %p206, %p207
    %p209 = scmp.ne.s32.totalorder %s201, %s203
    %p210 = scmp.eq.s32.totalorder %s25, 1
    %p211 = por %p209, %p210
    %p212 = scmp.ne.s32.totalorder %s203, %s204
    %p213 = scmp.eq.s32.totalorder %s25, 0
    %p214 = por %p212, %p213
    %p215 = scmp.ne.s32.totalorder %s203, %s204
    %p216 = scmp.eq.s32.totalorder %s26, 1
    %p217 = por %p215, %p216
    %p219 = scmp.ne.s32.totalorder %s204, %s218
    %p220 = scmp.eq.s32.totalorder %s26, 0
    %p221 = por %p219, %p220
    %s223 = sadd.s32 %s222, 1
    %p226 = scmp.eq.s32.totalorder %s20, 1
    %p227 = scmp.ne.s32.totalorder %s222, %s224
    %p228 = scmp.eq.s32.totalorder %s20, 0
    %p229 = por %p227, %p228
    %p230 = scmp.ne.s32.totalorder %s222, %s224
    %p231 = scmp.eq.s32.totalorder %s25, 1
    %p232 = por %p230, %p231
    %p233 = scmp.ne.s32.totalorder %s224, %s225
    %p234 = scmp.eq.s32.totalorder %s25, 0
    %p235 = por %p233, %p234
    %p236 = scmp.ne.s32.totalorder %s224, %s225
    %p237 = scmp.eq.s32.totalorder %s26, 1
    %p238 = por %p236, %p237
    %p240 = scmp.ne.s32.totalorder %s225, %s239
    %p241 = scmp.eq.s32.totalorder %s26, 0
    %p242 = por %p240, %p241
    %s244 = sadd.s32 %s243, 1
    %p247 = scmp.eq.s32.totalorder %s20, 1
    %p248 = scmp.ne.s32.totalorder %s243, %s245
    %p249 = scmp.eq.s32.totalorder %s20, 0
    %p250 = por %p248, %p249
    %p251 = scmp.ne.s32.totalorder %s243, %s245
    %p252 = scmp.eq.s32.totalorder %s25, 1
    %p253 = por %p251, %p252
    %p254 = scmp.ne.s32.totalorder %s245, %s246
    %p255 = scmp.eq.s32.totalorder %s25, 0
    %p256 = por %p254, %p255
    %p257 = scmp.ne.s32.totalorder %s245, %s246
    %p258 = scmp.eq.s32.totalorder %s26, 1
    %p259 = por %p257, %p258
    %p261 = scmp.ne.s32.totalorder %s246, %s260
    %p262 = scmp.eq.s32.totalorder %s26, 0
    %p263 = por %p261, %p262
    %s265 = sadd.s32 %s264, 1
    %p268 = scmp.eq.s32.totalorder %s20, 1
    %p269 = scmp.ne.s32.totalorder %s264, %s266
    %p270 = scmp.eq.s32.totalorder %s20, 0
    %p271 = por %p269, %p270
    %p272 = scmp.ne.s32.totalorder %s264, %s266
    %p273 = scmp.eq.s32.totalorder %s25, 1
    %p274 = por %p272, %p273
    %p275 = scmp.ne.s32.totalorder %s266, %s267
    %p276 = scmp.eq.s32.totalorder %s25, 0
    %p277 = por %p275, %p276
    %p278 = scmp.ne.s32.totalorder %s266, %s267
    %p279 = scmp.eq.s32.totalorder %s26, 1
    %p280 = por %p278, %p279
    %p282 = scmp.ne.s32.totalorder %s267, %s281
    %p283 = scmp.eq.s32.totalorder %s26, 0
    %p284 = por %p282, %p283
    %s286 = sadd.s32 %s285, 1
    %p289 = scmp.eq.s32.totalorder %s20, 1
    %p290 = scmp.ne.s32.totalorder %s285, %s287
    %p291 = scmp.eq.s32.totalorder %s20, 0
    %p292 = por %p290, %p291
    %p293 = scmp.ne.s32.totalorder %s285, %s287
    %p294 = scmp.eq.s32.totalorder %s25, 1
    %p295 = por %p293, %p294
    %p296 = scmp.ne.s32.totalorder %s287, %s288
    %p297 = scmp.eq.s32.totalorder %s25, 0
    %p298 = por %p296, %p297
    %p299 = scmp.ne.s32.totalorder %s287, %s288
    %p300 = scmp.eq.s32.totalorder %s26, 1
    %p301 = por %p299, %p300
    %p303 = scmp.ne.s32.totalorder %s288, %s302
    %p304 = scmp.eq.s32.totalorder %s26, 0
    %p305 = por %p303, %p304
    %s307 = sadd.s32 %s306, 1
    %p310 = scmp.eq.s32.totalorder %s20, 1
    %p311 = scmp.ne.s32.totalorder %s306, %s308
    %p312 = scmp.eq.s32.totalorder %s20, 0
    %p313 = por %p311, %p312
    %p314 = scmp.ne.s32.totalorder %s306, %s308
    %p315 = scmp.eq.s32.totalorder %s25, 1
    %p316 = por %p314, %p315
    %p317 = scmp.ne.s32.totalorder %s308, %s309
    %p318 = scmp.eq.s32.totalorder %s25, 0
    %p319 = por %p317, %p318
    %p320 = scmp.ne.s32.totalorder %s308, %s309
    %p321 = scmp.eq.s32.totalorder %s26, 1
    %p322 = por %p320, %p321
    %p324 = scmp.ne.s32.totalorder %s309, %s323
    %p325 = scmp.eq.s32.totalorder %s26, 0
    %p326 = por %p324, %p325
    %s327 = ssub.s32 %s20, %s27
    %p328 = scmp.eq.s32.totalorder %s327, 0
    %s330 = sadd.s32 %s329, 1
    %s331 = scalar_select %p328, %s329, %s330
    %p334 = pneg %p328
    %p335 = scmp.eq.s32.totalorder %s20, 1
    %p336 = por %p334, %p335
    %p337 = scmp.ne.s32.totalorder %s329, %s332
    %p338 = scmp.eq.s32.totalorder %s20, 0
    %p339 = por %p337, %p338
    %p340 = scmp.ne.s32.totalorder %s329, %s332
    %p341 = scmp.eq.s32.totalorder %s25, 1
    %p342 = por %p340, %p341
    %p343 = scmp.ne.s32.totalorder %s332, %s333
    %p344 = scmp.eq.s32.totalorder %s25, 0
    %p345 = por %p343, %p344
    %p346 = scmp.ne.s32.totalorder %s332, %s333
    %p347 = scmp.eq.s32.totalorder %s26, 1
    %p348 = por %p346, %p347
    %p350 = scmp.ne.s32.totalorder %s333, %s349
    %p351 = scmp.eq.s32.totalorder %s26, 0
    %p352 = por %p350, %p351
    %p353 = scmp.le.s32.totalorder 1, %s20
    %p354 = scmp.lt.s32.totalorder %s20, 3
    %p355 = pnand %p353, %p354
    %p356 = pneg %p355
    // Predicated region
    $region9: #{_lambda_.10} parent=5 // pred_check
      _
    $region10: #{_lambda_.10} parent=5 // pred_check_branch
      %358 = sbr.rel (%p355) target = $region12
    $region11: #{_lambda_.10} parent=5 // pred_region
      %s359 = ssub.s32 %s20, 1
      // Predicated region
      $region13: #{_lambda_.10} parent=11 // pred_check
        %p360 = pneg %p67
      $region14: #{_lambda_.10} parent=11 // pred_check_branch
        %362 = sbr.rel (%p360) target = $region16
      $region15: #{_lambda_.10} parent=11 // pred_region
        _
      $region16: #{_lambda_.10} parent=11 // pred_fallthru
        _
      // Predicated region
      $region17: #{_lambda_.10} parent=11 // pred_check
        %p363 = pneg %p88
      $region18: #{_lambda_.10} parent=11 // pred_check_branch
        %365 = sbr.rel (%p363) target = $region20
      $region19: #{_lambda_.10} parent=11 // pred_region
        _
      $region20: #{_lambda_.10} parent=11 // pred_fallthru
        _
      // Predicated region
      $region21: #{_lambda_.10} parent=11 // pred_check
        %p366 = pneg %p109
      $region22: #{_lambda_.10} parent=11 // pred_check_branch
        %368 = sbr.rel (%p366) target = $region24
      $region23: #{_lambda_.10} parent=11 // pred_region
        _
      $region24: #{_lambda_.10} parent=11 // pred_fallthru
        _
      // Predicated region
      $region25: #{_lambda_.10} parent=11 // pred_check
        %p369 = pneg %p130
      $region26: #{_lambda_.10} parent=11 // pred_check_branch
        %371 = sbr.rel (%p369) target = $region28
      $region27: #{_lambda_.10} parent=11 // pred_region
        _
      $region28: #{_lambda_.10} parent=11 // pred_fallthru
        _
      // Predicated region
      $region29: #{_lambda_.10} parent=11 // pred_check
        %p372 = pneg %p151
      $region30: #{_lambda_.10} parent=11 // pred_check_branch
        %374 = sbr.rel (%p372) target = $region32
      $region31: #{_lambda_.10} parent=11 // pred_region
        _
      $region32: #{_lambda_.10} parent=11 // pred_fallthru
        _
      // Predicated region
      $region33: #{_lambda_.10} parent=11 // pred_check
        %p375 = pneg %p172
      $region34: #{_lambda_.10} parent=11 // pred_check_branch
        %377 = sbr.rel (%p375) target = $region36
      $region35: #{_lambda_.10} parent=11 // pred_region
        _
      $region36: #{_lambda_.10} parent=11 // pred_fallthru
        _
      // Predicated region
      $region37: #{_lambda_.10} parent=11 // pred_check
        %p378 = pneg %p193
      $region38: #{_lambda_.10} parent=11 // pred_check_branch
        %380 = sbr.rel (%p378) target = $region40
      $region39: #{_lambda_.10} parent=11 // pred_region
        _
      $region40: #{_lambda_.10} parent=11 // pred_fallthru
        _
      // Predicated region
      $region41: #{_lambda_.10} parent=11 // pred_check
        %p381 = pneg %p214
      $region42: #{_lambda_.10} parent=11 // pred_check_branch
        %383 = sbr.rel (%p381) target = $region44
      $region43: #{_lambda_.10} parent=11 // pred_region
        _
      $region44: #{_lambda_.10} parent=11 // pred_fallthru
        _
      // Predicated region
      $region45: #{_lambda_.10} parent=11 // pred_check
        %p384 = pneg %p235
      $region46: #{_lambda_.10} parent=11 // pred_check_branch
        %386 = sbr.rel (%p384) target = $region48
      $region47: #{_lambda_.10} parent=11 // pred_region
        _
      $region48: #{_lambda_.10} parent=11 // pred_fallthru
        _
      // Predicated region
      $region49: #{_lambda_.10} parent=11 // pred_check
        %p387 = pneg %p256
      $region50: #{_lambda_.10} parent=11 // pred_check_branch
        %389 = sbr.rel (%p387) target = $region52
      $region51: #{_lambda_.10} parent=11 // pred_region
        _
      $region52: #{_lambda_.10} parent=11 // pred_fallthru
        _
      // Predicated region
      $region53: #{_lambda_.10} parent=11 // pred_check
        %p390 = pneg %p277
      $region54: #{_lambda_.10} parent=11 // pred_check_branch
        %392 = sbr.rel (%p390) target = $region56
      $region55: #{_lambda_.10} parent=11 // pred_region
        _
      $region56: #{_lambda_.10} parent=11 // pred_fallthru
        _
      // Predicated region
      $region57: #{_lambda_.10} parent=11 // pred_check
        %p393 = pneg %p298
      $region58: #{_lambda_.10} parent=11 // pred_check_branch
        %395 = sbr.rel (%p393) target = $region60
      $region59: #{_lambda_.10} parent=11 // pred_region
        _
      $region60: #{_lambda_.10} parent=11 // pred_fallthru
        _
      // Predicated region
      $region61: #{_lambda_.10} parent=11 // pred_check
        %p396 = pneg %p319
      $region62: #{_lambda_.10} parent=11 // pred_check_branch
        %398 = sbr.rel (%p396) target = $region64
      $region63: #{_lambda_.10} parent=11 // pred_region
        _
      $region64: #{_lambda_.10} parent=11 // pred_fallthru
        _
    $region12: #{_lambda_.10} parent=5 // pred_fallthru
      _
    %p399 = scmp.lt.s32.totalorder %s20, 2
    // Predicated region
    $region65: #{_lambda_.10} parent=5 // pred_check
      %p400 = pneg %p399
    $region66: #{_lambda_.10} parent=5 // pred_check_branch
      %402 = sbr.rel (%p400) target = $region68
    $region67: #{_lambda_.10} parent=5 // pred_region
      // Predicated region
      $region69: #{_lambda_.10} parent=67 // pred_check
        %p403 = pneg %p40
      $region70: #{_lambda_.10} parent=67 // pred_check_branch
        %405 = sbr.rel (%p403) target = $region72
      $region71: #{_lambda_.10} parent=67 // pred_region
        %p406 = scmp.lt.s32.totalorder %s20, 1
        %s407 = scalar_select %p406, %s20, 1
        %s408 = smul.addr %s407, 8
        %s409 = scalar_lea.vmem %s0, %s408
      $region72: #{_lambda_.10} parent=67 // pred_fallthru
        _
    $region68: #{_lambda_.10} parent=5 // pred_fallthru
      _
    %p410 = scmp.le.s32.totalorder 1, %s20
    %p411 = scmp.lt.s32.totalorder %s20, 3
    %p412 = pnand %p410, %p411
    %p413 = pneg %p412
    // Predicated region
    $region73: #{_lambda_.10} parent=5 // pred_check
      _
    $region74: #{_lambda_.10} parent=5 // pred_check_branch
      %415 = sbr.rel (%p412) target = $region76
    $region75: #{_lambda_.10} parent=5 // pred_region
      %s416 = ssub.s32 %s20, 1
      %p417 = scmp.lt.s32.totalorder %s25, 1
      %s418 = scalar_select %p417, %s25, 1
      %s419 = smul.addr %s418, 8
      %s420 = scalar_lea.vmem %s0, %s419
      %p421 = pneg %p46
      %p422 = pneg %p43
      %p423 = pneg %p67
      %p424 = pneg %p64
      %p425 = pneg %p88
      %p426 = pneg %p85
      %p427 = pneg %p109
      %p428 = pneg %p106
      %p429 = pneg %p130
      %p430 = pneg %p127
      %p431 = pneg %p151
      %p432 = pneg %p148
      %p433 = pneg %p172
      %p434 = pneg %p169
      %p435 = pneg %p193
      %p436 = pneg %p190
      %p437 = pneg %p214
      %p438 = pneg %p211
      %p439 = pneg %p235
      %p440 = pneg %p232
      %p441 = pneg %p256
      %p442 = pneg %p253
      %p443 = pneg %p277
      %p444 = pneg %p274
      %p445 = pneg %p298
      %p446 = pneg %p295
      %p447 = pneg %p319
      %p448 = pneg %p316
      %p449 = pneg %p345
      %p450 = pneg %p342
      %p451 = scmp.lt.s32.totalorder %s25, 1
      %s452 = scalar_select %p451, %s25, 1
      %s453 = smul.addr %s452, 8
      %s454 = scalar_lea.vmem %s14, %s453
      %p455 = scmp.lt.s32.totalorder %s25, 1
      %s456 = scalar_select %p455, %s25, 1
      %s457 = smul.addr %s456, 8
      %s458 = scalar_lea.vmem %s0, %s457
      %p459 = scmp.lt.s32.totalorder %s25, 1
      %s460 = scalar_select %p459, %s25, 1
      %s461 = smul.addr %s460, 8
      %s462 = scalar_lea.vmem %s14, %s461
      %v464 = vld [vmem:[%s458] sm:$0xff]
      %vm465 = vcmask 261120
      %v466 = vsel %vm465, %v464, 0.0
      %467 = vadd.xlane.f32.xlu0 %v466
      %v468 = vpop.xlane.xlu0 %467
      %v469 = vrcp.pop 32.0
      %v470 = vmul.f32 %v468, %v469
      %v471 = vsub.f32 %v464, %v470
      %v472 = vmul.f32 %v471, %v471
      %v473 = vsel %vm465, %v472, 0.0
      %474 = vadd.xlane.f32.xlu0 %v473
      %v475 = vpop.xlane.xlu0 %474
      %v476 = vmul.f32 %v475, %v469
      %v477 = vadd.f32 %v476, 1e-05
      %v478 = vrsqrt.pop %v477
      %v479 = vmul.f32 %v471, %v478
      %v480 = vld [vmem:[%s1] sm:$0x1]
      %v482 = vlaneseq
      %v483 = vshrl.u32 %v482, 7
      %v484 = vsub.s32 0, %v483
      %v485 = vrot.slane %v480, %v484
      %v487 = vmul.f32 %v479, %v485
      %v488 = vld [vmem:[%s2] sm:$0x1]
      %v490 = vlaneseq
      %v491 = vshrl.u32 %v490, 7
      %v492 = vsub.s32 0, %v491
      %v493 = vrot.slane %v488, %v492
      %v495 = vadd.f32 %v487, %v493
      %v496 = vpack.c.bf16 %v495, %v495
      %v497 = vld [vmem:[%s3] sm:$0xf]
      %v498 = vld [vmem:[%s3 + $0x4] sm:$0xf]
      %v499 = vld [vmem:[%s3 + $0x8] sm:$0xf]
      %v500 = vld [vmem:[%s3 + $0xc] sm:$0xf]
      %v501 = vld [vmem:[%s4] sm:$0x1]
      %v503 = vlaneseq
      %v504 = vshrl.u32 %v503, 7
      %v505 = vsub.s32 0, %v504
      %v506 = vrot.slane %v501, %v505
      %v512 = vunpack.c.l.b16 %v497
      %v513 = vunpack.c.l.b16 %v498
      %v514 = vunpack.c.l.b16 %v499
      %v515 = vunpack.c.l.b16 %v500
      %v516 = vpack.c.b16 %v513, %v512
      %v517 = vpack.c.b16 %v515, %v514
      %v521 = vsel %vm465, %v496, 0
      %523 = vmatprep.subr.bf16.mxu0 0
      %524 = vmatpush1.bf16.msra.mxu0 %v516
      %525 = vmatprep.subr.bf16.mxu0 0
      %526 = vmatpush1.bf16.msra.mxu0 %v517
      %527 = vmatprep.subr.bf16.mxu0 0
      %528 = vmatpush1.bf16.msra.mxu0 0
      %529 = vmatprep.subr.bf16.mxu0 0
      %530 = vmatpush1.bf16.msra.mxu0 0
      %531 = vmatprep.subr.bf16.mxu0 0
      %532 = vmatpush1.bf16.msra.mxu0 0
      %533 = vmatprep.subr.bf16.mxu0 0
      %534 = vmatpush1.bf16.msra.mxu0 0
      %535 = vmatprep.subr.bf16.mxu0 0
      %536 = vmatpush1.bf16.msra.mxu0 0
      %537 = vmatprep.subr.bf16.mxu0 0
      %538 = vmatpush1.bf16.msra.mxu0 0
      %539 = vmatprep.subr.bf16.mxu0 0
      %540 = vmatpush1.bf16.msra.mxu0 0
      %541 = vmatprep.subr.bf16.mxu0 0
      %542 = vmatpush1.bf16.msra.mxu0 0
      %543 = vmatprep.subr.bf16.mxu0 0
      %544 = vmatpush1.bf16.msra.mxu0 0
      %545 = vmatprep.subr.bf16.mxu0 0
      %546 = vmatpush1.bf16.msra.mxu0 0
      %547 = vmatprep.subr.bf16.mxu0 0
      %548 = vmatpush1.bf16.msra.mxu0 0
      %549 = vmatprep.subr.bf16.mxu0 0
      %550 = vmatpush1.bf16.msra.mxu0 0
      %551 = vmatprep.subr.bf16.mxu0 0
      %552 = vmatpush1.bf16.msra.mxu0 0
      %553 = vmatprep.subr.bf16.mxu0 0
      %554 = vmatpush1.bf16.msra.mxu0 0
      %555 = vmatprep.mubr.bf16.mxu0 0
      %556 = vmatmul.mubr.bf16.gmra.mrb[0].mxu0 %v521
      %v557 = vpop.f32.mrb[0].mxu0
      %v558 = vadd.f32 %v506, %v557
      %v559 = vpop.f32.mrb[0].mxu0
      %v560 = vpop.f32.mrb[0].mxu0
      %v561 = vpop.f32.mrb[0].mxu0
      %562 = vdwg.mxu0
      %v563 = vld [vmem:[%s5] sm:$0xf]
      %v564 = vld [vmem:[%s5 + $0x4] sm:$0xf]
      %v565 = vld [vmem:[%s5 + $0x8] sm:$0xf]
      %v566 = vld [vmem:[%s5 + $0xc] sm:$0xf]
      %v567 = vld [vmem:[%s6] sm:$0x1]
      %v569 = vlaneseq
      %v570 = vshrl.u32 %v569, 7
      %v571 = vsub.s32 0, %v570
      %v572 = vrot.slane %v567, %v571
      %v578 = vunpack.c.l.b16 %v563
      %v579 = vunpack.c.l.b16 %v564
      %v580 = vunpack.c.l.b16 %v565
      %v581 = vunpack.c.l.b16 %v566
      %v582 = vpack.c.b16 %v579, %v578
      %v583 = vpack.c.b16 %v581, %v580
      %586 = vmatprep.subr.bf16.mxu0 0
      %587 = vmatpush1.bf16.msra.mxu0 %v582
      %588 = vmatprep.subr.bf16.mxu0 0
      %589 = vmatpush1.bf16.msra.mxu0 %v583
      %590 = vmatprep.subr.bf16.mxu0 0
      %591 = vmatpush1.bf16.msra.mxu0 0
      %592 = vmatprep.subr.bf16.mxu0 0
      %593 = vmatpush1.bf16.msra.mxu0 0
      %594 = vmatprep.subr.bf16.mxu0 0
      %595 = vmatpush1.bf16.msra.mxu0 0
      %596 = vmatprep.subr.bf16.mxu0 0
      %597 = vmatpush1.bf16.msra.mxu0 0
      %598 = vmatprep.subr.bf16.mxu0 0
      %599 = vmatpush1.bf16.msra.mxu0 0
      %600 = vmatprep.subr.bf16.mxu0 0
      %601 = vmatpush1.bf16.msra.mxu0 0
      %602 = vmatprep.subr.bf16.mxu0 0
      %603 = vmatpush1.bf16.msra.mxu0 0
      %604 = vmatprep.subr.bf16.mxu0 0
      %605 = vmatpush1.bf16.msra.mxu0 0
      %606 = vmatprep.subr.bf16.mxu0 0
      %607 = vmatpush1.bf16.msra.mxu0 0
      %608 = vmatprep.subr.bf16.mxu0 0
      %609 = vmatpush1.bf16.msra.mxu0 0
      %610 = vmatprep.subr.bf16.mxu0 0
      %611 = vmatpush1.bf16.msra.mxu0 0
      %612 = vmatprep.subr.bf16.mxu0 0
      %613 = vmatpush1.bf16.msra.mxu0 0
      %614 = vmatprep.subr.bf16.mxu0 0
      %615 = vmatpush1.bf16.msra.mxu0 0
      %616 = vmatprep.subr.bf16.mxu0 0
      %617 = vmatpush1.bf16.msra.mxu0 0
      %618 = vmatprep.mubr.bf16.mxu0 0
      %619 = vmatmul.mubr.bf16.gmra.mrb[0].mxu0 %v521
      %v620 = vpop.f32.mrb[0].mxu0
      %v621 = vadd.f32 %v572, %v620
      %v622 = vpop.f32.mrb[0].mxu0
      %v623 = vpop.f32.mrb[0].mxu0
      %v624 = vpop.f32.mrb[0].mxu0
      %625 = vdwg.mxu0
      %v626 = vxor.u32 %v621, 2147483648
      %v627 = vmul.f32 %v626, 1.442695
      %v628 = vpow.pop %v627
      %v629 = vadd.f32 %v628, 1.0
      %v630 = vrcp.pop %v629
      %v631 = vmul.f32 1.0, %v630
      %v632 = vmul.f32 %v558, %v631
      %v634 = vrot.slane %v632, 5
      %vm636 = vcmask 1042432
      %v637 = vsel %vm636, 0.0, %v634
      %v638 = vsel %vm636, %v634, 0.0
      %v639 = vld [vmem:[%s7] sm:$0x7f]
      %v640 = vlaneseq
      %v641 = vshrl.u32 %v640, 7
      %v642 = vsub.s32 0, %v641
      %v643 = vrot.slane %v639, %v642
      %v644 = vmul.f32 %v637, %v643
      %v645 = vadd.f32 %v644, 0.0
      %v646 = vlaneseq
      %v647 = vshrl.u32 %v646, 7
      %v648 = vsub.s32 1, %v647
      %v649 = vrot.slane %v639, %v648
      %v650 = vmul.f32 %v637, %v649
      %v651 = vmul.f32 %v638, %v649
      %vm654 = vcmask 1046528
      %v655 = vrot.slane %v650, 1
      %v656 = vrot.slane %v651, 1
      %v657 = vsel %vm654, %v655, %v656
      %v659 = vadd.f32 %v645, %v657
      %v660 = vlaneseq
      %v661 = vshrl.u32 %v660, 7
      %v662 = vsub.s32 2, %v661
      %v663 = vrot.slane %v639, %v662
      %v664 = vmul.f32 %v637, %v663
      %v665 = vmul.f32 %v638, %v663
      %vm668 = vcmask 1045504
      %v669 = vrot.slane %v664, 2
      %v670 = vrot.slane %v665, 2
      %v671 = vsel %vm668, %v669, %v670
      %v673 = vadd.f32 %v659, %v671
      %v674 = vlaneseq
      %v675 = vshrl.u32 %v674, 7
      %v676 = vsub.s32 3, %v675
      %v677 = vrot.slane %v639, %v676
      %v678 = vmul.f32 %v637, %v677
      %v679 = vmul.f32 %v638, %v677
      %vm682 = vcmask 1044480
      %v683 = vrot.slane %v678, 3
      %v684 = vrot.slane %v679, 3
      %v685 = vsel %vm682, %v683, %v684
      %v687 = vadd.f32 %v673, %v685
      %v688 = vlaneseq
      %v689 = vshrl.u32 %v688, 7
      %v690 = vsub.s32 4, %v689
      %v691 = vrot.slane %v639, %v690
      %v692 = vmul.f32 %v637, %v691
      %v693 = vmul.f32 %v638, %v691
      %vm696 = vcmask 1043456
      %v697 = vrot.slane %v692, 4
      %v698 = vrot.slane %v693, 4
      %v699 = vsel %vm696, %v697, %v698
      %v701 = vadd.f32 %v687, %v699
      %v702 = vlaneseq
      %v703 = vshrl.u32 %v702, 7
      %v704 = vsub.s32 5, %v703
      %v705 = vrot.slane %v639, %v704
      %v706 = vmul.f32 %v637, %v705
      %v707 = vmul.f32 %v638, %v705
      %v710 = vrot.slane %v706, 5
      %v711 = vrot.slane %v707, 5
      %v712 = vsel %vm636, %v710, %v711
      %v714 = vadd.f32 %v701, %v712
      %v715 = vlaneseq
      %v716 = vshrl.u32 %v715, 7
      %v717 = vsub.s32 6, %v716
      %v718 = vrot.slane %v639, %v717
      %v719 = vmul.f32 %v637, %v718
      %v720 = vmul.f32 %v638, %v718
      %vm723 = vcmask 1041408
      %v724 = vrot.slane %v719, 6
      %v725 = vrot.slane %v720, 6
      %v726 = vsel %vm723, %v724, %v725
      %v728 = vadd.f32 %v714, %v726
      %v729 = vld [vmem:[%s10] sm:$0x1]
      %v731 = vlaneseq
      %v732 = vshrl.u32 %v731, 7
      %v733 = vsub.s32 0, %v732
      %v734 = vrot.slane %v729, %v733
      %v736 = vsub.f32 %v728, %v734
      %v737 = vld [vmem:[%s11] sm:$0x1]
      %v738 = vadd.f32 %v737, 1e-05
      %v739 = vrsqrt.pop %v738
      %v741 = vlaneseq
      %v742 = vshrl.u32 %v741, 7
      %v743 = vsub.s32 0, %v742
      %v744 = vrot.slane %v739, %v743
      %v746 = vmul.f32 %v736, %v744
      %v747 = vld [vmem:[%s8] sm:$0x1]
      %v749 = vlaneseq
      %v750 = vshrl.u32 %v749, 7
      %v751 = vsub.s32 0, %v750
      %v752 = vrot.slane %v747, %v751
      %v754 = vmul.f32 %v746, %v752
      %v755 = vld [vmem:[%s9] sm:$0x1]
      %v757 = vlaneseq
      %v758 = vshrl.u32 %v757, 7
      %v759 = vsub.s32 0, %v758
      %v760 = vrot.slane %v755, %v759
      %v762 = vadd.f32 %v754, %v760
      %v763 = vxor.u32 %v762, 2147483648
      %v764 = vmul.f32 %v763, 1.442695
      %v765 = vpow.pop %v764
      %v766 = vadd.f32 %v765, 1.0
      %v767 = vrcp.pop %v766
      %v768 = vmul.f32 1.0, %v767
      %v769 = vmul.f32 %v762, %v768
      %v770 = vpack.c.bf16 %v769, %v769
      %v771 = vld [vmem:[%s12] sm:$0xf]
      %v772 = vld [vmem:[%s12 + $0x4] sm:$0xf]
      %v773 = vld [vmem:[%s12 + $0x8] sm:$0xf]
      %v774 = vld [vmem:[%s12 + $0xc] sm:$0xf]
      %v775 = vld [vmem:[%s13] sm:$0x1]
      %v777 = vlaneseq
      %v778 = vshrl.u32 %v777, 7
      %v779 = vsub.s32 0, %v778
      %v780 = vrot.slane %v775, %v779
      %v786 = vunpack.c.l.b16 %v771
      %v787 = vunpack.c.l.b16 %v772
      %v788 = vunpack.c.l.b16 %v773
      %v789 = vunpack.c.l.b16 %v774
      %v790 = vpack.c.b16 %v787, %v786
      %v791 = vpack.c.b16 %v789, %v788
      %v795 = vsel %vm465, %v770, 0
      %797 = vmatprep.subr.bf16.mxu0 0
      %798 = vmatpush1.bf16.msra.mxu0 %v790
      %799 = vmatprep.subr.bf16.mxu0 0
      %800 = vmatpush1.bf16.msra.mxu0 %v791
      %801 = vmatprep.subr.bf16.mxu0 0
      %802 = vmatpush1.bf16.msra.mxu0 0
      %803 = vmatprep.subr.bf16.mxu0 0
      %804 = vmatpush1.bf16.msra.mxu0 0
      %805 = vmatprep.subr.bf16.mxu0 0
      %806 = vmatpush1.bf16.msra.mxu0 0
      %807 = vmatprep.subr.bf16.mxu0 0
      %808 = vmatpush1.bf16.msra.mxu0 0
      %809 = vmatprep.subr.bf16.mxu0 0
      %810 = vmatpush1.bf16.msra.mxu0 0
      %811 = vmatprep.subr.bf16.mxu0 0
      %812 = vmatpush1.bf16.msra.mxu0 0
      %813 = vmatprep.subr.bf16.mxu0 0
      %814 = vmatpush1.bf16.msra.mxu0 0
      %815 = vmatprep.subr.bf16.mxu0 0
      %816 = vmatpush1.bf16.msra.mxu0 0
      %817 = vmatprep.subr.bf16.mxu0 0
      %818 = vmatpush1.bf16.msra.mxu0 0
      %819 = vmatprep.subr.bf16.mxu0 0
      %820 = vmatpush1.bf16.msra.mxu0 0
      %821 = vmatprep.subr.bf16.mxu0 0
      %822 = vmatpush1.bf16.msra.mxu0 0
      %823 = vmatprep.subr.bf16.mxu0 0
      %824 = vmatpush1.bf16.msra.mxu0 0
      %825 = vmatprep.subr.bf16.mxu0 0
      %826 = vmatpush1.bf16.msra.mxu0 0
      %827 = vmatprep.subr.bf16.mxu0 0
      %828 = vmatpush1.bf16.msra.mxu0 0
      %829 = vmatprep.mubr.bf16.mxu0 0
      %830 = vmatmul.mubr.bf16.gmra.mrb[0].mxu0 %v795
      %v831 = vpop.f32.mrb[0].mxu0
      %v832 = vadd.f32 %v780, %v831
      %v833 = vpop.f32.mrb[0].mxu0
      %v834 = vpop.f32.mrb[0].mxu0
      %v835 = vpop.f32.mrb[0].mxu0
      %836 = vdwg.mxu0
      %v837 = vadd.f32 %v464, %v832
      %838 = vst.msk [vmem:[%s462] sm:$0xff] %vm465, %v837
      %p839 = scmp.lt.s32.totalorder %s25, 1
      %s840 = scalar_select %p839, %s25, 1
      %s841 = smul.addr %s840, 8
      %s842 = scalar_lea.vmem %s14, %s841
      // Predicated region
      $region77: #{_lambda_.10} parent=75 // pred_check
        %p843 = pneg %p342
      $region78: #{_lambda_.10} parent=75 // pred_check_branch
        %845 = sbr.rel (%p843) target = $region80
      $region79: #{_lambda_.10} parent=75 // pred_region
        _
      $region80: #{_lambda_.10} parent=75 // pred_fallthru
        _
    $region76: #{_lambda_.10} parent=5 // pred_fallthru
      _
    %p846 = scmp.le.s32.totalorder 2, %s20
    // Predicated region
    $region81: #{_lambda_.10} parent=5 // pred_check
      %p847 = pneg %p846
    $region82: #{_lambda_.10} parent=5 // pred_check_branch
      %849 = sbr.rel (%p847) target = $region84
    $region83: #{_lambda_.10} parent=5 // pred_region
      %s850 = ssub.s32 %s20, 2
      // Predicated region
      $region85: #{_lambda_.10} parent=83 // pred_check
        %p851 = pneg %p348
      $region86: #{_lambda_.10} parent=83 // pred_check_branch
        %853 = sbr.rel (%p851) target = $region88
      $region87: #{_lambda_.10} parent=83 // pred_region
        %p854 = scmp.lt.s32.totalorder %s26, 1
        %s855 = scalar_select %p854, %s26, 1
        %s856 = smul.addr %s855, 8
        %s857 = scalar_lea.vmem %s14, %s856
      $region88: #{_lambda_.10} parent=83 // pred_fallthru
        _
    $region84: #{_lambda_.10} parent=5 // pred_fallthru
      _
  $region6: #{_lambda_.10} parent=0 // loop_footer
    %s24 = sadd.s32 1, %s20
  $region7: #{_lambda_.10} parent=0 // loop_footer_branch
    %19 = sbr.rel target = $region3
  $region8: #{_lambda_.10} parent=0 // loop_exit
    _

// kernel: _lambda_.13
$region0: #{_lambda_.13}
  #allocation0 [shape = 'u32[]', space=smem, size = 0x4, offset = 0x4, fixed_abs, tag = 'smem constant byte address 0x4 - core index']
  #allocation1 [shape = 'u32[144,128]{1,0:T(1,128)}', space=vmem, size = 0x12000, scoped, tag = 'internal scratch']
  %s0 = inlined_call_operand.vmem [shape: f32[16,64], index: 0, kind: input, shape index: {}]
  %s1 = inlined_call_operand.vmem [shape: f32[1,64], index: 1, kind: input, shape index: {}]
  %s2 = inlined_call_operand.vmem [shape: f32[1,64], index: 2, kind: input, shape index: {}]
  %s3 = inlined_call_operand.vmem [shape: bf16[64,192], index: 3, kind: input, shape index: {}]
  %s4 = inlined_call_operand.vmem [shape: f32[1,192], index: 4, kind: input, shape index: {}]
  %s5 = inlined_call_operand.vmem [shape: f32[16,192], index: 5, kind: output, shape index: {}]
  %s6 = sld [smem:[#allocation0]]
  $region30: #{_lambda_.13} parent=0
    _
  %s8 = ssub.s32 1, %s6
  %s9 = scalar_select 0, %s8, %s6
  // Predicated region
  $region2: #{_lambda_.13} parent=0 // pred_check
    _
  $region3: #{_lambda_.13} parent=0 // pred_check_branch
    %11 = sbr.rel (0) target = $region5
  $region4: #{_lambda_.13} parent=0 // pred_region
    _
  $region5: #{_lambda_.13} parent=0 // pred_fallthru
    _
  // Predicated region
  $region6: #{_lambda_.13} parent=0 // pred_check
    _
  $region7: #{_lambda_.13} parent=0 // pred_check_branch
    %13 = sbr.rel (0) target = $region9
  $region8: #{_lambda_.13} parent=0 // pred_region
    _
  $region9: #{_lambda_.13} parent=0 // pred_fallthru
    _
  // Predicated region
  $region10: #{_lambda_.13} parent=0 // pred_check
    _
  $region11: #{_lambda_.13} parent=0 // pred_check_branch
    %15 = sbr.rel (0) target = $region13
  $region12: #{_lambda_.13} parent=0 // pred_region
    _
  $region13: #{_lambda_.13} parent=0 // pred_fallthru
    _
  // Predicated region
  $region14: #{_lambda_.13} parent=0 // pred_check
    _
  $region15: #{_lambda_.13} parent=0 // pred_check_branch
    %17 = sbr.rel (0) target = $region17
  $region16: #{_lambda_.13} parent=0 // pred_region
    _
  $region17: #{_lambda_.13} parent=0 // pred_fallthru
    _
  // Predicated region
  $region18: #{_lambda_.13} parent=0 // pred_check
    _
  $region19: #{_lambda_.13} parent=0 // pred_check_branch
    %19 = sbr.rel (0) target = $region21
  $region20: #{_lambda_.13} parent=0 // pred_region
    _
  $region21: #{_lambda_.13} parent=0 // pred_fallthru
    _
  %v21 = vld [vmem:[%s0] sm:$0xff]
  %v22 = vld [vmem:[%s0 + $0x8] sm:$0xff]
  %v23 = vpack.c.bf16 %v22, %v21
  %v24 = vld [vmem:[%s3] sm:$0xff]
  %v25 = vld [vmem:[%s3 + $0x8] sm:$0xff]
  %v26 = vld [vmem:[%s3 + $0x10] sm:$0xff]
  %v27 = vld [vmem:[%s3 + $0x18] sm:$0xff]
  %v28 = vld [vmem:[%s3 + $0x20] sm:$0xff]
  %v29 = vld [vmem:[%s3 + $0x28] sm:$0xff]
  %v30 = vld [vmem:[%s3 + $0x30] sm:$0xff]
  %v31 = vld [vmem:[%s3 + $0x38] sm:$0xff]
  %v32 = vld [vmem:[%s4] sm:$0x3]
  %v34 = vlaneseq
  %v35 = vshrl.u32 %v34, 7
  %v36 = vsub.s32 0, %v35
  %v37 = vrot.slane %v32, %v36
  %v38 = vlaneseq
  %v39 = vshrl.u32 %v38, 7
  %v40 = vsub.s32 1, %v39
  %v41 = vrot.slane %v32, %v40
  %v52 = vunpack.c.l.b16 %v24
  %v53 = vunpack.c.h.b16 %v24
  %v54 = vunpack.c.l.b16 %v25
  %v55 = vunpack.c.h.b16 %v25
  %v56 = vunpack.c.l.b16 %v26
  %v57 = vunpack.c.h.b16 %v26
  %v58 = vunpack.c.l.b16 %v27
  %v59 = vunpack.c.h.b16 %v27
  %v60 = vunpack.c.l.b16 %v28
  %v61 = vunpack.c.h.b16 %v28
  %v62 = vunpack.c.l.b16 %v29
  %v63 = vunpack.c.h.b16 %v29
  %v64 = vunpack.c.l.b16 %v30
  %v65 = vunpack.c.h.b16 %v30
  %v66 = vunpack.c.l.b16 %v31
  %v67 = vunpack.c.h.b16 %v31
  %v68 = vpack.c.b16 %v54, %v52
  %v69 = vpack.c.b16 %v55, %v53
  %v70 = vpack.c.b16 %v58, %v56
  %v71 = vpack.c.b16 %v59, %v57
  %v72 = vpack.c.b16 %v62, %v60
  %v73 = vpack.c.b16 %v63, %v61
  %v74 = vpack.c.b16 %v66, %v64
  %v75 = vpack.c.b16 %v67, %v65
  %vm84 = vcmask 523264
  %v86 = vsel %vm84, %v23, 0
  %88 = vmatprep.subr.bf16.mxu0 %v69
  %89 = vmatpush1.bf16.msra.mxu0 %v68
  %90 = vmatprep.subr.bf16.mxu0 %v71
  %91 = vmatpush1.bf16.msra.mxu0 %v70
  %92 = vmatprep.subr.bf16.mxu0 %v73
  %93 = vmatpush1.bf16.msra.mxu0 %v72
  %94 = vmatprep.subr.bf16.mxu0 %v75
  %95 = vmatpush1.bf16.msra.mxu0 %v74
  %96 = vmatprep.subr.bf16.mxu0 0
  %97 = vmatpush1.bf16.msra.mxu0 0
  %98 = vmatprep.subr.bf16.mxu0 0
  %99 = vmatpush1.bf16.msra.mxu0 0
  %100 = vmatprep.subr.bf16.mxu0 0
  %101 = vmatpush1.bf16.msra.mxu0 0
  %102 = vmatprep.subr.bf16.mxu0 0
  %103 = vmatpush1.bf16.msra.mxu0 0
  %104 = vmatprep.subr.bf16.mxu0 0
  %105 = vmatpush1.bf16.msra.mxu0 0
  %106 = vmatprep.subr.bf16.mxu0 0
  %107 = vmatpush1.bf16.msra.mxu0 0
  %108 = vmatprep.subr.bf16.mxu0 0
  %109 = vmatpush1.bf16.msra.mxu0 0
  %110 = vmatprep.subr.bf16.mxu0 0
  %111 = vmatpush1.bf16.msra.mxu0 0
  %112 = vmatprep.subr.bf16.mxu0 0
  %113 = vmatpush1.bf16.msra.mxu0 0
  %114 = vmatprep.subr.bf16.mxu0 0
  %115 = vmatpush1.bf16.msra.mxu0 0
  %116 = vmatprep.subr.bf16.mxu0 0
  %117 = vmatpush1.bf16.msra.mxu0 0
  %118 = vmatprep.subr.bf16.mxu0 0
  %119 = vmatpush1.bf16.msra.mxu0 0
  %120 = vmatprep.mubr.bf16.mxu0 0
  %121 = vmatmul.mubr.bf16.gmra.mrb[0].mxu0 %v86
  %v122 = vpop.f32.mrb[0].mxu0
  %v123 = vadd.f32 %v37, %v122
  %v124 = vpop.f32.mrb[0].mxu0
  %v125 = vadd.f32 %v41, %v124
  %v126 = vpop.f32.mrb[0].mxu0
  %v127 = vadd.f32 %v37, %v126
  %v128 = vpop.f32.mrb[0].mxu0
  %v129 = vadd.f32 %v41, %v128
  %130 = vdwg.mxu0
  %131 = vst [vmem:[%s5] sm:$0xff] %v123
  %132 = vst.msk [vmem:[%s5 + $0x8] sm:$0xff] %vm84, %v125
  %133 = vst [vmem:[%s5 + $0x10] sm:$0xff] %v127
  %134 = vst.msk [vmem:[%s5 + $0x18] sm:$0xff] %vm84, %v129
  // Predicated region
  $region22: #{_lambda_.13} parent=0 // pred_check
    _
  $region23: #{_lambda_.13} parent=0 // pred_check_branch
    %136 = sbr.rel (0) target = $region25
  $region24: #{_lambda_.13} parent=0 // pred_region
    _
  $region25: #{_lambda_.13} parent=0 // pred_fallthru
    _
  // Predicated region
  $region26: #{_lambda_.13} parent=0 // pred_check
    _
  $region27: #{_lambda_.13} parent=0 // pred_check_branch
    %138 = sbr.rel (0) target = $region29
  $region28: #{_lambda_.13} parent=0 // pred_region
    _
  $region29: #{_lambda_.13} parent=0 // pred_fallthru
    _

// kernel: _lambda_.14
$region0: #{_lambda_.14}
  #allocation0 [shape = 'u32[]', space=smem, size = 0x4, offset = 0x4, fixed_abs, tag = 'smem constant byte address 0x4 - core index']
  #allocation1 [shape = 'u32[144,128]{1,0:T(1,128)}', space=vmem, size = 0x12000, scoped, tag = 'internal scratch']
  %s0 = inlined_call_operand.vmem [shape: f32[8,64], index: 0, kind: input, shape index: {}]
  %s1 = inlined_call_operand.vmem [shape: f32[1,64], index: 1, kind: input, shape index: {}]
  %s2 = inlined_call_operand.vmem [shape: f32[1,64], index: 2, kind: input, shape index: {}, may-alias: {2,4}]
  %s3 = inlined_call_operand.vmem [shape: bf16[64,64], index: 3, kind: input, shape index: {}]
  %s4 = inlined_call_operand.vmem [shape: f32[1,64], index: 4, kind: input, shape index: {}, may-alias: {2,4}]
  %s5 = inlined_call_operand.vmem [shape: f32[8,64], index: 5, kind: output, shape index: {}]
  %s6 = sld [smem:[#allocation0]]
  $region30: #{_lambda_.14} parent=0
    _
  %s8 = ssub.s32 1, %s6
  %s9 = scalar_select 0, %s8, %s6
  // Predicated region
  $region2: #{_lambda_.14} parent=0 // pred_check
    _
  $region3: #{_lambda_.14} parent=0 // pred_check_branch
    %11 = sbr.rel (0) target = $region5
  $region4: #{_lambda_.14} parent=0 // pred_region
    _
  $region5: #{_lambda_.14} parent=0 // pred_fallthru
    _
  // Predicated region
  $region6: #{_lambda_.14} parent=0 // pred_check
    _
  $region7: #{_lambda_.14} parent=0 // pred_check_branch
    %13 = sbr.rel (0) target = $region9
  $region8: #{_lambda_.14} parent=0 // pred_region
    _
  $region9: #{_lambda_.14} parent=0 // pred_fallthru
    _
  // Predicated region
  $region10: #{_lambda_.14} parent=0 // pred_check
    _
  $region11: #{_lambda_.14} parent=0 // pred_check_branch
    %15 = sbr.rel (0) target = $region13
  $region12: #{_lambda_.14} parent=0 // pred_region
    _
  $region13: #{_lambda_.14} parent=0 // pred_fallthru
    _
  // Predicated region
  $region14: #{_lambda_.14} parent=0 // pred_check
    _
  $region15: #{_lambda_.14} parent=0 // pred_check_branch
    %17 = sbr.rel (0) target = $region17
  $region16: #{_lambda_.14} parent=0 // pred_region
    _
  $region17: #{_lambda_.14} parent=0 // pred_fallthru
    _
  // Predicated region
  $region18: #{_lambda_.14} parent=0 // pred_check
    _
  $region19: #{_lambda_.14} parent=0 // pred_check_branch
    %19 = sbr.rel (0) target = $region21
  $region20: #{_lambda_.14} parent=0 // pred_region
    _
  $region21: #{_lambda_.14} parent=0 // pred_fallthru
    _
  %v21 = vld [vmem:[%s0] sm:$0xff]
  %v22 = vpack.c.bf16 %v21, %v21
  %v23 = vld [vmem:[%s3] sm:$0xf]
  %v24 = vld [vmem:[%s3 + $0x4] sm:$0xf]
  %v25 = vld [vmem:[%s3 + $0x8] sm:$0xf]
  %v26 = vld [vmem:[%s3 + $0xc] sm:$0xf]
  %v27 = vld [vmem:[%s3 + $0x10] sm:$0xf]
  %v28 = vld [vmem:[%s3 + $0x14] sm:$0xf]
  %v29 = vld [vmem:[%s3 + $0x18] sm:$0xf]
  %v30 = vld [vmem:[%s3 + $0x1c] sm:$0xf]
  %v31 = vld [vmem:[%s4] sm:$0x1]
  %v33 = vlaneseq
  %v34 = vshrl.u32 %v33, 7
  %v35 = vsub.s32 0, %v34
  %v36 = vrot.slane %v31, %v35
  %v46 = vunpack.c.l.b16 %v23
  %v47 = vunpack.c.l.b16 %v24
  %v48 = vunpack.c.l.b16 %v25
  %v49 = vunpack.c.l.b16 %v26
  %v50 = vunpack.c.l.b16 %v27
  %v51 = vunpack.c.l.b16 %v28
  %v52 = vunpack.c.l.b16 %v29
  %v53 = vunpack.c.l.b16 %v30
  %v54 = vpack.c.b16 %v47, %v46
  %v55 = vpack.c.b16 %v49, %v48
  %v56 = vpack.c.b16 %v51, %v50
  %v57 = vpack.c.b16 %v53, %v52
  %vm62 = vcmask 523264
  %v64 = vsel %vm62, %v22, 0
  %66 = vmatprep.subr.bf16.mxu0 0
  %67 = vmatpush1.bf16.msra.mxu0 %v54
  %68 = vmatprep.subr.bf16.mxu0 0
  %69 = vmatpush1.bf16.msra.mxu0 %v55
  %70 = vmatprep.subr.bf16.mxu0 0
  %71 = vmatpush1.bf16.msra.mxu0 %v56
  %72 = vmatprep.subr.bf16.mxu0 0
  %73 = vmatpush1.bf16.msra.mxu0 %v57
  %74 = vmatprep.subr.bf16.mxu0 0
  %75 = vmatpush1.bf16.msra.mxu0 0
  %76 = vmatprep.subr.bf16.mxu0 0
  %77 = vmatpush1.bf16.msra.mxu0 0
  %78 = vmatprep.subr.bf16.mxu0 0
  %79 = vmatpush1.bf16.msra.mxu0 0
  %80 = vmatprep.subr.bf16.mxu0 0
  %81 = vmatpush1.bf16.msra.mxu0 0
  %82 = vmatprep.subr.bf16.mxu0 0
  %83 = vmatpush1.bf16.msra.mxu0 0
  %84 = vmatprep.subr.bf16.mxu0 0
  %85 = vmatpush1.bf16.msra.mxu0 0
  %86 = vmatprep.subr.bf16.mxu0 0
  %87 = vmatpush1.bf16.msra.mxu0 0
  %88 = vmatprep.subr.bf16.mxu0 0
  %89 = vmatpush1.bf16.msra.mxu0 0
  %90 = vmatprep.subr.bf16.mxu0 0
  %91 = vmatpush1.bf16.msra.mxu0 0
  %92 = vmatprep.subr.bf16.mxu0 0
  %93 = vmatpush1.bf16.msra.mxu0 0
  %94 = vmatprep.subr.bf16.mxu0 0
  %95 = vmatpush1.bf16.msra.mxu0 0
  %96 = vmatprep.subr.bf16.mxu0 0
  %97 = vmatpush1.bf16.msra.mxu0 0
  %98 = vmatprep.mubr.bf16.mxu0 0
  %99 = vmatmul.mubr.bf16.gmra.mrb[0].mxu0 %v64
  %v100 = vpop.f32.mrb[0].mxu0
  %v101 = vadd.f32 %v36, %v100
  %v102 = vpop.f32.mrb[0].mxu0
  %v103 = vpop.f32.mrb[0].mxu0
  %v104 = vpop.f32.mrb[0].mxu0
  %105 = vdwg.mxu0
  %106 = vst.msk [vmem:[%s5] sm:$0xff] %vm62, %v101
  // Predicated region
  $region22: #{_lambda_.14} parent=0 // pred_check
    _
  $region23: #{_lambda_.14} parent=0 // pred_check_branch
    %108 = sbr.rel (0) target = $region25
  $region24: #{_lambda_.14} parent=0 // pred_region
    _
  $region25: #{_lambda_.14} parent=0 // pred_fallthru
    _
  // Predicated region
  $region26: #{_lambda_.14} parent=0 // pred_check
    _
  $region27: #{_lambda_.14} parent=0 // pred_check_branch
    %110 = sbr.rel (0) target = $region29
  $region28: #{_lambda_.14} parent=0 // pred_region
    _
  $region29: #{_lambda_.14} parent=0 // pred_fallthru
    _

// kernel: _lambda_.16
$region0: #{_lambda_.16}
  #allocation0 [shape = 'u32[]', space=smem, size = 0x4, offset = 0x4, fixed_abs, tag = 'smem constant byte address 0x4 - core index']
  #allocation1 [shape = 'u32[144,128]{1,0:T(1,128)}', space=vmem, size = 0x12000, scoped, tag = 'internal scratch']
  %s0 = inlined_call_operand.vmem [shape: f32[16,64], index: 0, kind: input, shape index: {}]
  %s1 = inlined_call_operand.vmem [shape: f32[16,32], index: 1, kind: input, shape index: {}]
  %s2 = inlined_call_operand.vmem [shape: bf16[64,64], index: 2, kind: input, shape index: {}]
  %s3 = inlined_call_operand.vmem [shape: f32[1,64], index: 3, kind: input, shape index: {}]
  %s4 = inlined_call_operand.vmem [shape: bf16[64,32], index: 4, kind: input, shape index: {}]
  %s5 = inlined_call_operand.vmem [shape: f32[1,32], index: 5, kind: input, shape index: {}]
  %s6 = inlined_call_operand.vmem [shape: f32[16,32], index: 6, kind: output, shape index: {}]
  %s7 = sld [smem:[#allocation0]]
  $region34: #{_lambda_.16} parent=0
    _
  %s9 = ssub.s32 1, %s7
  %s10 = scalar_select 0, %s9, %s7
  // Predicated region
  $region2: #{_lambda_.16} parent=0 // pred_check
    _
  $region3: #{_lambda_.16} parent=0 // pred_check_branch
    %12 = sbr.rel (0) target = $region5
  $region4: #{_lambda_.16} parent=0 // pred_region
    _
  $region5: #{_lambda_.16} parent=0 // pred_fallthru
    _
  // Predicated region
  $region6: #{_lambda_.16} parent=0 // pred_check
    _
  $region7: #{_lambda_.16} parent=0 // pred_check_branch
    %14 = sbr.rel (0) target = $region9
  $region8: #{_lambda_.16} parent=0 // pred_region
    _
  $region9: #{_lambda_.16} parent=0 // pred_fallthru
    _
  // Predicated region
  $region10: #{_lambda_.16} parent=0 // pred_check
    _
  $region11: #{_lambda_.16} parent=0 // pred_check_branch
    %16 = sbr.rel (0) target = $region13
  $region12: #{_lambda_.16} parent=0 // pred_region
    _
  $region13: #{_lambda_.16} parent=0 // pred_fallthru
    _
  // Predicated region
  $region14: #{_lambda_.16} parent=0 // pred_check
    _
  $region15: #{_lambda_.16} parent=0 // pred_check_branch
    %18 = sbr.rel (0) target = $region17
  $region16: #{_lambda_.16} parent=0 // pred_region
    _
  $region17: #{_lambda_.16} parent=0 // pred_fallthru
    _
  // Predicated region
  $region18: #{_lambda_.16} parent=0 // pred_check
    _
  $region19: #{_lambda_.16} parent=0 // pred_check_branch
    %20 = sbr.rel (0) target = $region21
  $region20: #{_lambda_.16} parent=0 // pred_region
    _
  $region21: #{_lambda_.16} parent=0 // pred_fallthru
    _
  // Predicated region
  $region22: #{_lambda_.16} parent=0 // pred_check
    _
  $region23: #{_lambda_.16} parent=0 // pred_check_branch
    %22 = sbr.rel (0) target = $region25
  $region24: #{_lambda_.16} parent=0 // pred_region
    _
  $region25: #{_lambda_.16} parent=0 // pred_fallthru
    _
  %v24 = vld [vmem:[%s0] sm:$0xff]
  %v25 = vld [vmem:[%s0 + $0x8] sm:$0xff]
  %v26 = vpack.c.bf16 %v25, %v24
  %v27 = vld [vmem:[%s2] sm:$0xf]
  %v28 = vld [vmem:[%s2 + $0x4] sm:$0xf]
  %v29 = vld [vmem:[%s2 + $0x8] sm:$0xf]
  %v30 = vld [vmem:[%s2 + $0xc] sm:$0xf]
  %v31 = vld [vmem:[%s2 + $0x10] sm:$0xf]
  %v32 = vld [vmem:[%s2 + $0x14] sm:$0xf]
  %v33 = vld [vmem:[%s2 + $0x18] sm:$0xf]
  %v34 = vld [vmem:[%s2 + $0x1c] sm:$0xf]
  %v35 = vld [vmem:[%s3] sm:$0x1]
  %v37 = vlaneseq
  %v38 = vshrl.u32 %v37, 7
  %v39 = vsub.s32 0, %v38
  %v40 = vrot.slane %v35, %v39
  %v50 = vunpack.c.l.b16 %v27
  %v51 = vunpack.c.l.b16 %v28
  %v52 = vunpack.c.l.b16 %v29
  %v53 = vunpack.c.l.b16 %v30
  %v54 = vunpack.c.l.b16 %v31
  %v55 = vunpack.c.l.b16 %v32
  %v56 = vunpack.c.l.b16 %v33
  %v57 = vunpack.c.l.b16 %v34
  %v58 = vpack.c.b16 %v51, %v50
  %v59 = vpack.c.b16 %v53, %v52
  %v60 = vpack.c.b16 %v55, %v54
  %v61 = vpack.c.b16 %v57, %v56
  %vm66 = vcmask 523264
  %v68 = vsel %vm66, %v26, 0
  %70 = vmatprep.subr.bf16.mxu0 0
  %71 = vmatpush1.bf16.msra.mxu0 %v58
  %72 = vmatprep.subr.bf16.mxu0 0
  %73 = vmatpush1.bf16.msra.mxu0 %v59
  %74 = vmatprep.subr.bf16.mxu0 0
  %75 = vmatpush1.bf16.msra.mxu0 %v60
  %76 = vmatprep.subr.bf16.mxu0 0
  %77 = vmatpush1.bf16.msra.mxu0 %v61
  %78 = vmatprep.subr.bf16.mxu0 0
  %79 = vmatpush1.bf16.msra.mxu0 0
  %80 = vmatprep.subr.bf16.mxu0 0
  %81 = vmatpush1.bf16.msra.mxu0 0
  %82 = vmatprep.subr.bf16.mxu0 0
  %83 = vmatpush1.bf16.msra.mxu0 0
  %84 = vmatprep.subr.bf16.mxu0 0
  %85 = vmatpush1.bf16.msra.mxu0 0
  %86 = vmatprep.subr.bf16.mxu0 0
  %87 = vmatpush1.bf16.msra.mxu0 0
  %88 = vmatprep.subr.bf16.mxu0 0
  %89 = vmatpush1.bf16.msra.mxu0 0
  %90 = vmatprep.subr.bf16.mxu0 0
  %91 = vmatpush1.bf16.msra.mxu0 0
  %92 = vmatprep.subr.bf16.mxu0 0
  %93 = vmatpush1.bf16.msra.mxu0 0
  %94 = vmatprep.subr.bf16.mxu0 0
  %95 = vmatpush1.bf16.msra.mxu0 0
  %96 = vmatprep.subr.bf16.mxu0 0
  %97 = vmatpush1.bf16.msra.mxu0 0
  %98 = vmatprep.subr.bf16.mxu0 0
  %99 = vmatpush1.bf16.msra.mxu0 0
  %100 = vmatprep.subr.bf16.mxu0 0
  %101 = vmatpush1.bf16.msra.mxu0 0
  %102 = vmatprep.mubr.bf16.mxu0 0
  %103 = vmatmul.mubr.bf16.gmra.mrb[0].mxu0 %v68
  %v104 = vpop.f32.mrb[0].mxu0
  %v105 = vadd.f32 %v40, %v104
  %v106 = vpop.f32.mrb[0].mxu0
  %v107 = vpop.f32.mrb[0].mxu0
  %v108 = vadd.f32 %v40, %v107
  %v109 = vpop.f32.mrb[0].mxu0
  %110 = vdwg.mxu0
  %v111 = vpack.c.bf16 %v108, %v105
  %v112 = vld [vmem:[%s4] sm:$0xf]
  %v113 = vld [vmem:[%s4 + $0x4] sm:$0xf]
  %v114 = vld [vmem:[%s4 + $0x8] sm:$0xf]
  %v115 = vld [vmem:[%s4 + $0xc] sm:$0xf]
  %v116 = vld [vmem:[%s4 + $0x10] sm:$0xf]
  %v117 = vld [vmem:[%s4 + $0x14] sm:$0xf]
  %v118 = vld [vmem:[%s4 + $0x18] sm:$0xf]
  %v119 = vld [vmem:[%s4 + $0x1c] sm:$0xf]
  %v120 = vld [vmem:[%s5] sm:$0x1]
  %v122 = vlaneseq
  %v123 = vshrl.u32 %v122, 7
  %v124 = vsub.s32 0, %v123
  %v125 = vrot.slane %v120, %v124
  %v135 = vunpack.c.l.b16 %v112
  %v136 = vunpack.c.l.b16 %v113
  %v137 = vunpack.c.l.b16 %v114
  %v138 = vunpack.c.l.b16 %v115
  %v139 = vunpack.c.l.b16 %v116
  %v140 = vunpack.c.l.b16 %v117
  %v141 = vunpack.c.l.b16 %v118
  %v142 = vunpack.c.l.b16 %v119
  %v143 = vpack.c.b16 %v136, %v135
  %v144 = vpack.c.b16 %v138, %v137
  %v145 = vpack.c.b16 %v140, %v139
  %v146 = vpack.c.b16 %v142, %v141
  %v152 = vsel %vm66, %v111, 0
  %154 = vmatprep.subr.bf16.mxu0 0
  %155 = vmatpush1.bf16.msra.mxu0 %v143
  %156 = vmatprep.subr.bf16.mxu0 0
  %157 = vmatpush1.bf16.msra.mxu0 %v144
  %158 = vmatprep.subr.bf16.mxu0 0
  %159 = vmatpush1.bf16.msra.mxu0 %v145
  %160 = vmatprep.subr.bf16.mxu0 0
  %161 = vmatpush1.bf16.msra.mxu0 %v146
  %162 = vmatprep.subr.bf16.mxu0 0
  %163 = vmatpush1.bf16.msra.mxu0 0
  %164 = vmatprep.subr.bf16.mxu0 0
  %165 = vmatpush1.bf16.msra.mxu0 0
  %166 = vmatprep.subr.bf16.mxu0 0
  %167 = vmatpush1.bf16.msra.mxu0 0
  %168 = vmatprep.subr.bf16.mxu0 0
  %169 = vmatpush1.bf16.msra.mxu0 0
  %170 = vmatprep.subr.bf16.mxu0 0
  %171 = vmatpush1.bf16.msra.mxu0 0
  %172 = vmatprep.subr.bf16.mxu0 0
  %173 = vmatpush1.bf16.msra.mxu0 0
  %174 = vmatprep.subr.bf16.mxu0 0
  %175 = vmatpush1.bf16.msra.mxu0 0
  %176 = vmatprep.subr.bf16.mxu0 0
  %177 = vmatpush1.bf16.msra.mxu0 0
  %178 = vmatprep.subr.bf16.mxu0 0
  %179 = vmatpush1.bf16.msra.mxu0 0
  %180 = vmatprep.subr.bf16.mxu0 0
  %181 = vmatpush1.bf16.msra.mxu0 0
  %182 = vmatprep.subr.bf16.mxu0 0
  %183 = vmatpush1.bf16.msra.mxu0 0
  %184 = vmatprep.subr.bf16.mxu0 0
  %185 = vmatpush1.bf16.msra.mxu0 0
  %186 = vmatprep.mubr.bf16.mxu0 0
  %187 = vmatmul.mubr.bf16.gmra.mrb[0].mxu0 %v152
  %v188 = vpop.f32.mrb[0].mxu0
  %v189 = vadd.f32 %v125, %v188
  %v190 = vpop.f32.mrb[0].mxu0
  %v191 = vpop.f32.mrb[0].mxu0
  %v192 = vadd.f32 %v125, %v191
  %v193 = vpop.f32.mrb[0].mxu0
  %194 = vdwg.mxu0
  %v195 = vld [vmem:[%s1] sm:$0xff]
  %v196 = vld [vmem:[%s1 + $0x8] sm:$0xff]
  %v197 = vadd.f32 %v195, %v189
  %v198 = vadd.f32 %v196, %v192
  %vm199 = vcmask 261120
  %200 = vst.msk [vmem:[%s6] sm:$0xff] %vm199, %v197
  %201 = vst.msk [vmem:[%s6 + $0x8] sm:$0xff] %vm199, %v198
  // Predicated region
  $region26: #{_lambda_.16} parent=0 // pred_check
    _
  $region27: #{_lambda_.16} parent=0 // pred_check_branch
    %203 = sbr.rel (0) target = $region29
  $region28: #{_lambda_.16} parent=0 // pred_region
    _
  $region29: #{_lambda_.16} parent=0 // pred_fallthru
    _
  // Predicated region
  $region30: #{_lambda_.16} parent=0 // pred_check
    _
  $region31: #{_lambda_.16} parent=0 // pred_check_branch
    %205 = sbr.rel (0) target = $region33
  $region32: #{_lambda_.16} parent=0 // pred_region
    _
  $region33: #{_lambda_.16} parent=0 // pred_fallthru
    _

// kernel: _lambda_.17
$region0: #{_lambda_.17}
  #allocation0 [shape = 'u32[]', space=smem, size = 0x4, offset = 0x4, fixed_abs, tag = 'smem constant byte address 0x4 - core index']
  #allocation1 [shape = 'u32[144,128]{1,0:T(1,128)}', space=vmem, size = 0x12000, scoped, tag = 'internal scratch']
  %s0 = inlined_call_operand.vmem [shape: f32[16,32], index: 0, kind: input, shape index: {}]
  %s1 = inlined_call_operand.vmem [shape: f32[1,32], index: 1, kind: input, shape index: {}]
  %s2 = inlined_call_operand.vmem [shape: f32[1,32], index: 2, kind: input, shape index: {}]
  %s3 = inlined_call_operand.vmem [shape: bf16[32,128], index: 3, kind: input, shape index: {}]
  %s4 = inlined_call_operand.vmem [shape: f32[1,128], index: 4, kind: input, shape index: {}]
  %s5 = inlined_call_operand.vmem [shape: bf16[128,32], index: 5, kind: input, shape index: {}]
  %s6 = inlined_call_operand.vmem [shape: f32[1,32], index: 6, kind: input, shape index: {}]
  %s7 = inlined_call_operand.vmem [shape: f32[1,32], index: 7, kind: input, shape index: {}]
  %s8 = inlined_call_operand.vmem [shape: f32[1,32], index: 8, kind: input, shape index: {}]
  %s9 = inlined_call_operand.hbm [shape: f32[16,32], index: 9, kind: output, shape index: {}]
  %s10 = sld [smem:[#allocation0]]
  $region46: #{_lambda_.17} parent=0
    _
  %s12 = ssub.s32 1, %s10
  %s13 = scalar_select 0, %s12, %s10
  $region1: #{_lambda_.17} parent=0
    #allocation2 [shape = 'u8[8192]{0}', space=vmem, size = 0x2000, scoped, tag = 'output window, operand 0, single buffered']
    #allocation3 [shape = 's32[1]{0}', space=sflag, size = 0x4, scoped, tag = 'scoped memory for _lambda_.17']
    %14 = vsyncpa [#allocation3], 0
    // Predicated region
    $region2: #{_lambda_.17} parent=1 // pred_check
      _
    $region3: #{_lambda_.17} parent=1 // pred_check_branch
      %16 = sbr.rel (0) target = $region5
    $region4: #{_lambda_.17} parent=1 // pred_region
      _
    $region5: #{_lambda_.17} parent=1 // pred_fallthru
      _
    // Predicated region
    $region6: #{_lambda_.17} parent=1 // pred_check
      _
    $region7: #{_lambda_.17} parent=1 // pred_check_branch
      %18 = sbr.rel (0) target = $region9
    $region8: #{_lambda_.17} parent=1 // pred_region
      _
    $region9: #{_lambda_.17} parent=1 // pred_fallthru
      _
    // Predicated region
    $region10: #{_lambda_.17} parent=1 // pred_check
      _
    $region11: #{_lambda_.17} parent=1 // pred_check_branch
      %20 = sbr.rel (0) target = $region13
    $region12: #{_lambda_.17} parent=1 // pred_region
      _
    $region13: #{_lambda_.17} parent=1 // pred_fallthru
      _
    // Predicated region
    $region14: #{_lambda_.17} parent=1 // pred_check
      _
    $region15: #{_lambda_.17} parent=1 // pred_check_branch
      %22 = sbr.rel (0) target = $region17
    $region16: #{_lambda_.17} parent=1 // pred_region
      _
    $region17: #{_lambda_.17} parent=1 // pred_fallthru
      _
    // Predicated region
    $region18: #{_lambda_.17} parent=1 // pred_check
      _
    $region19: #{_lambda_.17} parent=1 // pred_check_branch
      %24 = sbr.rel (0) target = $region21
    $region20: #{_lambda_.17} parent=1 // pred_region
      _
    $region21: #{_lambda_.17} parent=1 // pred_fallthru
      _
    // Predicated region
    $region22: #{_lambda_.17} parent=1 // pred_check
      _
    $region23: #{_lambda_.17} parent=1 // pred_check_branch
      %26 = sbr.rel (0) target = $region25
    $region24: #{_lambda_.17} parent=1 // pred_region
      _
    $region25: #{_lambda_.17} parent=1 // pred_fallthru
      _
    // Predicated region
    $region26: #{_lambda_.17} parent=1 // pred_check
      _
    $region27: #{_lambda_.17} parent=1 // pred_check_branch
      %28 = sbr.rel (0) target = $region29
    $region28: #{_lambda_.17} parent=1 // pred_region
      _
    $region29: #{_lambda_.17} parent=1 // pred_fallthru
      _
    // Predicated region
    $region30: #{_lambda_.17} parent=1 // pred_check
      _
    $region31: #{_lambda_.17} parent=1 // pred_check_branch
      %30 = sbr.rel (0) target = $region33
    $region32: #{_lambda_.17} parent=1 // pred_region
      _
    $region33: #{_lambda_.17} parent=1 // pred_fallthru
      _
    // Predicated region
    $region34: #{_lambda_.17} parent=1 // pred_check
      _
    $region35: #{_lambda_.17} parent=1 // pred_check_branch
      %32 = sbr.rel (0) target = $region37
    $region36: #{_lambda_.17} parent=1 // pred_region
      _
    $region37: #{_lambda_.17} parent=1 // pred_fallthru
      _
    %v34 = vld [vmem:[%s0] sm:$0xff]
    %v35 = vld [vmem:[%s0 + $0x8] sm:$0xff]
    %vm36 = vcmask 261120
    %v37 = vsel %vm36, %v34, 0.0
    %38 = vadd.xlane.f32.xlu0 %v37
    %v39 = vpop.xlane.xlu0 %38
    %v40 = vsel %vm36, %v35, 0.0
    %41 = vadd.xlane.f32.xlu0 %v40
    %v42 = vpop.xlane.xlu0 %41
    %v43 = vrcp.pop 32.0
    %v44 = vmul.f32 %v39, %v43
    %v45 = vmul.f32 %v42, %v43
    %v46 = vsub.f32 %v34, %v44
    %v47 = vsub.f32 %v35, %v45
    %v48 = vmul.f32 %v46, %v46
    %v49 = vmul.f32 %v47, %v47
    %v50 = vsel %vm36, %v48, 0.0
    %51 = vadd.xlane.f32.xlu0 %v50
    %v52 = vpop.xlane.xlu0 %51
    %v53 = vsel %vm36, %v49, 0.0
    %54 = vadd.xlane.f32.xlu0 %v53
    %v55 = vpop.xlane.xlu0 %54
    %v56 = vmul.f32 %v52, %v43
    %v57 = vmul.f32 %v55, %v43
    %v58 = vadd.f32 %v56, 1e-05
    %v59 = vadd.f32 %v57, 1e-05
    %v60 = vrsqrt.pop %v58
    %v61 = vrsqrt.pop %v59
    %v62 = vmul.f32 %v46, %v60
    %v63 = vmul.f32 %v47, %v61
    %v64 = vld [vmem:[%s1] sm:$0x1]
    %v66 = vlaneseq
    %v67 = vshrl.u32 %v66, 7
    %v68 = vsub.s32 0, %v67
    %v69 = vrot.slane %v64, %v68
    %v71 = vmul.f32 %v62, %v69
    %v72 = vmul.f32 %v63, %v69
    %v73 = vld [vmem:[%s2] sm:$0x1]
    %v75 = vlaneseq
    %v76 = vshrl.u32 %v75, 7
    %v77 = vsub.s32 0, %v76
    %v78 = vrot.slane %v73, %v77
    %v80 = vadd.f32 %v71, %v78
    %v81 = vadd.f32 %v72, %v78
    %v82 = vpack.c.bf16 %v81, %v80
    %v83 = vld [vmem:[%s3] sm:$0xf]
    %v84 = vld [vmem:[%s3 + $0x4] sm:$0xf]
    %v85 = vld [vmem:[%s3 + $0x8] sm:$0xf]
    %v86 = vld [vmem:[%s3 + $0xc] sm:$0xf]
    %v87 = vld [vmem:[%s4] sm:$0x1]
    %v89 = vlaneseq
    %v90 = vshrl.u32 %v89, 7
    %v91 = vsub.s32 0, %v90
    %v92 = vrot.slane %v87, %v91
    %v98 = vunpack.c.l.b16 %v83
    %v99 = vunpack.c.l.b16 %v84
    %v100 = vunpack.c.l.b16 %v85
    %v101 = vunpack.c.l.b16 %v86
    %v102 = vpack.c.b16 %v99, %v98
    %v103 = vpack.c.b16 %v101, %v100
    %v107 = vsel %vm36, %v82, 0
    %109 = vmatprep.subr.bf16.mxu0 0
    %110 = vmatpush1.bf16.msra.mxu0 %v102
    %111 = vmatprep.subr.bf16.mxu0 0
    %112 = vmatpush1.bf16.msra.mxu0 %v103
    %113 = vmatprep.subr.bf16.mxu0 0
    %114 = vmatpush1.bf16.msra.mxu0 0
    %115 = vmatprep.subr.bf16.mxu0 0
    %116 = vmatpush1.bf16.msra.mxu0 0
    %117 = vmatprep.subr.bf16.mxu0 0
    %118 = vmatpush1.bf16.msra.mxu0 0
    %119 = vmatprep.subr.bf16.mxu0 0
    %120 = vmatpush1.bf16.msra.mxu0 0
    %121 = vmatprep.subr.bf16.mxu0 0
    %122 = vmatpush1.bf16.msra.mxu0 0
    %123 = vmatprep.subr.bf16.mxu0 0
    %124 = vmatpush1.bf16.msra.mxu0 0
    %125 = vmatprep.subr.bf16.mxu0 0
    %126 = vmatpush1.bf16.msra.mxu0 0
    %127 = vmatprep.subr.bf16.mxu0 0
    %128 = vmatpush1.bf16.msra.mxu0 0
    %129 = vmatprep.subr.bf16.mxu0 0
    %130 = vmatpush1.bf16.msra.mxu0 0
    %131 = vmatprep.subr.bf16.mxu0 0
    %132 = vmatpush1.bf16.msra.mxu0 0
    %133 = vmatprep.subr.bf16.mxu0 0
    %134 = vmatpush1.bf16.msra.mxu0 0
    %135 = vmatprep.subr.bf16.mxu0 0
    %136 = vmatpush1.bf16.msra.mxu0 0
    %137 = vmatprep.subr.bf16.mxu0 0
    %138 = vmatpush1.bf16.msra.mxu0 0
    %139 = vmatprep.subr.bf16.mxu0 0
    %140 = vmatpush1.bf16.msra.mxu0 0
    %141 = vmatprep.mubr.bf16.mxu0 0
    %142 = vmatmul.mubr.bf16.gmra.mrb[0].mxu0 %v107
    %v143 = vpop.f32.mrb[0].mxu0
    %v144 = vadd.f32 %v92, %v143
    %v145 = vpop.f32.mrb[0].mxu0
    %v146 = vpop.f32.mrb[0].mxu0
    %v147 = vadd.f32 %v92, %v146
    %v148 = vpop.f32.mrb[0].mxu0
    %149 = vdwg.mxu0
    %v150 = vxor.u32 %v144, 2147483648
    %v151 = vxor.u32 %v147, 2147483648
    %v152 = vmul.f32 %v150, 1.442695
    %v153 = vpow.pop %v152
    %v154 = vmul.f32 %v151, 1.442695
    %v155 = vpow.pop %v154
    %v156 = vadd.f32 %v153, 1.0
    %v157 = vadd.f32 %v155, 1.0
    %v158 = vrcp.pop %v156
    %v159 = vmul.f32 1.0, %v158
    %v160 = vrcp.pop %v157
    %v161 = vmul.f32 1.0, %v160
    %v162 = vmul.f32 %v144, %v159
    %v163 = vmul.f32 %v147, %v161
    %v164 = vpack.c.bf16 %v163, %v162
    %v165 = vld [vmem:[%s5] sm:$0xf]
    %v166 = vld [vmem:[%s5 + $0x4] sm:$0xf]
    %v167 = vld [vmem:[%s5 + $0x8] sm:$0xf]
    %v168 = vld [vmem:[%s5 + $0xc] sm:$0xf]
    %v169 = vld [vmem:[%s5 + $0x10] sm:$0xf]
    %v170 = vld [vmem:[%s5 + $0x14] sm:$0xf]
    %v171 = vld [vmem:[%s5 + $0x18] sm:$0xf]
    %v172 = vld [vmem:[%s5 + $0x1c] sm:$0xf]
    %v173 = vld [vmem:[%s5 + $0x20] sm:$0xf]
    %v174 = vld [vmem:[%s5 + $0x24] sm:$0xf]
    %v175 = vld [vmem:[%s5 + $0x28] sm:$0xf]
    %v176 = vld [vmem:[%s5 + $0x2c] sm:$0xf]
    %v177 = vld [vmem:[%s5 + $0x30] sm:$0xf]
    %v178 = vld [vmem:[%s5 + $0x34] sm:$0xf]
    %v179 = vld [vmem:[%s5 + $0x38] sm:$0xf]
    %v180 = vld [vmem:[%s5 + $0x3c] sm:$0xf]
    %v181 = vld [vmem:[%s6] sm:$0x1]
    %v183 = vlaneseq
    %v184 = vshrl.u32 %v183, 7
    %v185 = vsub.s32 0, %v184
    %v186 = vrot.slane %v181, %v185
    %v204 = vunpack.c.l.b16 %v165
    %v205 = vunpack.c.l.b16 %v166
    %v206 = vunpack.c.l.b16 %v167
    %v207 = vunpack.c.l.b16 %v168
    %v208 = vunpack.c.l.b16 %v169
    %v209 = vunpack.c.l.b16 %v170
    %v210 = vunpack.c.l.b16 %v171
    %v211 = vunpack.c.l.b16 %v172
    %v212 = vunpack.c.l.b16 %v173
    %v213 = vunpack.c.l.b16 %v174
    %v214 = vunpack.c.l.b16 %v175
    %v215 = vunpack.c.l.b16 %v176
    %v216 = vunpack.c.l.b16 %v177
    %v217 = vunpack.c.l.b16 %v178
    %v218 = vunpack.c.l.b16 %v179
    %v219 = vunpack.c.l.b16 %v180
    %v220 = vpack.c.b16 %v205, %v204
    %v221 = vpack.c.b16 %v207, %v206
    %v222 = vpack.c.b16 %v209, %v208
    %v223 = vpack.c.b16 %v211, %v210
    %v224 = vpack.c.b16 %v213, %v212
    %v225 = vpack.c.b16 %v215, %v214
    %v226 = vpack.c.b16 %v217, %v216
    %v227 = vpack.c.b16 %v219, %v218
    %236 = vmatprep.subr.bf16.mxu0 0
    %237 = vmatpush1.bf16.msra.mxu0 %v220
    %238 = vmatprep.subr.bf16.mxu0 0
    %239 = vmatpush1.bf16.msra.mxu0 %v221
    %240 = vmatprep.subr.bf16.mxu0 0
    %241 = vmatpush1.bf16.msra.mxu0 %v222
    %242 = vmatprep.subr.bf16.mxu0 0
    %243 = vmatpush1.bf16.msra.mxu0 %v223
    %244 = vmatprep.subr.bf16.mxu0 0
    %245 = vmatpush1.bf16.msra.mxu0 %v224
    %246 = vmatprep.subr.bf16.mxu0 0
    %247 = vmatpush1.bf16.msra.mxu0 %v225
    %248 = vmatprep.subr.bf16.mxu0 0
    %249 = vmatpush1.bf16.msra.mxu0 %v226
    %250 = vmatprep.subr.bf16.mxu0 0
    %251 = vmatpush1.bf16.msra.mxu0 %v227
    %252 = vmatprep.subr.bf16.mxu0 0
    %253 = vmatpush1.bf16.msra.mxu0 0
    %254 = vmatprep.subr.bf16.mxu0 0
    %255 = vmatpush1.bf16.msra.mxu0 0
    %256 = vmatprep.subr.bf16.mxu0 0
    %257 = vmatpush1.bf16.msra.mxu0 0
    %258 = vmatprep.subr.bf16.mxu0 0
    %259 = vmatpush1.bf16.msra.mxu0 0
    %260 = vmatprep.subr.bf16.mxu0 0
    %261 = vmatpush1.bf16.msra.mxu0 0
    %262 = vmatprep.subr.bf16.mxu0 0
    %263 = vmatpush1.bf16.msra.mxu0 0
    %264 = vmatprep.subr.bf16.mxu0 0
    %265 = vmatpush1.bf16.msra.mxu0 0
    %266 = vmatprep.subr.bf16.mxu0 0
    %267 = vmatpush1.bf16.msra.mxu0 0
    %268 = vmatprep.mubr.bf16.mxu0 0
    %269 = vmatmul.mubr.bf16.gmra.mrb[0].mxu0 %v164
    %v270 = vpop.f32.mrb[0].mxu0
    %v271 = vadd.f32 %v186, %v270
    %v272 = vpop.f32.mrb[0].mxu0
    %v273 = vpop.f32.mrb[0].mxu0
    %v274 = vadd.f32 %v186, %v273
    %v275 = vpop.f32.mrb[0].mxu0
    %276 = vdwg.mxu0
    %v277 = vmul.f32 %v271, 0.5
    %v278 = vmul.f32 %v274, 0.5
    %v279 = vadd.f32 %v34, %v277
    %v280 = vadd.f32 %v35, %v278
    %v281 = vsel %vm36, %v279, 0.0
    %282 = vadd.xlane.f32.xlu0 %v281
    %v283 = vpop.xlane.xlu0 %282
    %v284 = vsel %vm36, %v280, 0.0
    %285 = vadd.xlane.f32.xlu0 %v284
    %v286 = vpop.xlane.xlu0 %285
    %v287 = vmul.f32 %v283, %v43
    %v288 = vmul.f32 %v286, %v43
    %v289 = vsub.f32 %v279, %v287
    %v290 = vsub.f32 %v280, %v288
    %v291 = vmul.f32 %v289, %v289
    %v292 = vmul.f32 %v290, %v290
    %v293 = vsel %vm36, %v291, 0.0
    %294 = vadd.xlane.f32.xlu0 %v293
    %v295 = vpop.xlane.xlu0 %294
    %v296 = vsel %vm36, %v292, 0.0
    %297 = vadd.xlane.f32.xlu0 %v296
    %v298 = vpop.xlane.xlu0 %297
    %v299 = vmul.f32 %v295, %v43
    %v300 = vmul.f32 %v298, %v43
    %v301 = vadd.f32 %v299, 1e-05
    %v302 = vadd.f32 %v300, 1e-05
    %v303 = vrsqrt.pop %v301
    %v304 = vrsqrt.pop %v302
    %v305 = vmul.f32 %v289, %v303
    %v306 = vmul.f32 %v290, %v304
    %v307 = vld [vmem:[%s7] sm:$0x1]
    %v309 = vlaneseq
    %v310 = vshrl.u32 %v309, 7
    %v311 = vsub.s32 0, %v310
    %v312 = vrot.slane %v307, %v311
    %v314 = vmul.f32 %v305, %v312
    %v315 = vmul.f32 %v306, %v312
    %v316 = vld [vmem:[%s8] sm:$0x1]
    %v318 = vlaneseq
    %v319 = vshrl.u32 %v318, 7
    %v320 = vsub.s32 0, %v319
    %v321 = vrot.slane %v316, %v320
    %v323 = vadd.f32 %v314, %v321
    %v324 = vadd.f32 %v315, %v321
    %325 = vst.msk [vmem:[#allocation2] sm:$0xff] %vm36, %v323
    %326 = vst.msk [vmem:[#allocation2 + $0x8] sm:$0xff] %vm36, %v324
    // Predicated region
    $region38: #{_lambda_.17} parent=1 // pred_check
      _
    $region39: #{_lambda_.17} parent=1 // pred_check_branch
      %328 = sbr.rel (0) target = $region41
    $region40: #{_lambda_.17} parent=1 // pred_region
      %s330 = ssub.s32 256, 256
      %331 = vsyncadd [#allocation3], %s330
      %s332 = sshll.u32 [#allocation2], 4
      %s333 = int_to_ptr.vmem [resolvable:$true] %s332
      %338 = dma.vmem_to_hbm [thread:$0]  %s333, 256, %s9, [#allocation3], 128, 128, 8
    $region41: #{_lambda_.17} parent=1 // pred_fallthru
      _
    // Predicated region
    $region42: #{_lambda_.17} parent=1 // pred_check
      _
    $region43: #{_lambda_.17} parent=1 // pred_check_branch
      %340 = sbr.rel (0) target = $region45
    $region44: #{_lambda_.17} parent=1 // pred_region
      %341 = dma.done [#allocation3], 256
    $region45: #{_lambda_.17} parent=1 // pred_fallthru
      _
    %342 = vsyncpa [#allocation3], 1

// kernel: _lambda_.15
$region0: #{_lambda_.15}
  #allocation0 [shape = 'u32[]', space=smem, size = 0x4, offset = 0x4, fixed_abs, tag = 'smem constant byte address 0x4 - core index']
  #allocation1 [shape = 'u32[144,128]{1,0:T(1,128)}', space=vmem, size = 0x12000, scoped, tag = 'internal scratch']
  %s0 = inlined_call_operand.vmem [shape: f32[2,8,192], index: 0, kind: input, shape index: {}]
  %s1 = inlined_call_operand.vmem [shape: f32[8,64], index: 1, kind: input, shape index: {}]
  %s2 = inlined_call_operand.vmem [shape: f32[4,16], index: 2, kind: input, shape index: {}]
  %s3 = inlined_call_operand.vmem [shape: f32[4,16], index: 3, kind: input, shape index: {}]
  %s4 = inlined_call_operand.vmem [shape: f32[2,8,64], index: 4, kind: output, shape index: {}]
  %s5 = sld [smem:[#allocation0]]
  $region49: #{_lambda_.15} parent=0
    _
  %s7 = ssub.s32 1, %s5
  %s8 = scalar_select 0, %s7, %s5
  loop: start=0, step=1, limit=4
  $region2: #{_lambda_.15} parent=0 // loop_pre_header
    _
  $region3: #{_lambda_.15} parent=0 // loop_header
    %s10 = sphi 0, %s14
    %p11 = scmp.ge.s32.totalorder %s10, 4
    %s20 = sphi 0, %s22
    %s23 = sphi 0, %s20
    %s24 = sphi 0, %s23
    %s40 = sphi 0, %s24
    %s44 = sphi 0, %s44
    %s46 = sphi 0, %s44
    %s47 = sphi 0, %s46
    %s61 = sphi 0, %s47
    %s65 = sphi 0, %s65
    %s67 = sphi 0, %s65
    %s68 = sphi 0, %s67
    %s82 = sphi 0, %s68
    %s86 = sphi 0, %s86
    %s88 = sphi 0, %s86
    %s89 = sphi 0, %s88
    %s103 = sphi 0, %s89
    %s109 = sphi 0, %s111
    %s112 = sphi 0, %s109
    %s113 = sphi 0, %s112
    %s129 = sphi 0, %s113
  $region4: #{_lambda_.15} parent=0 // loop_header_branch
    %13 = sbr.rel (%p11) target = $region8
  $region5: #{_lambda_.15} parent=0 // loop_body
    %s15 = ssub.s32 %s10, 1
    %s16 = ssub.s32 %s10, 2
    %s17 = sadd.s32 %s10, 1
    %s18 = ssub.s32 %s10, %s17
    %p19 = scmp.eq.s32.totalorder %s18, 0
    %s21 = sadd.s32 %s20, 1
    %s22 = scalar_select %p19, %s20, %s21
    %p25 = pneg %p19
    %p26 = scmp.eq.s32.totalorder %s10, 1
    %p27 = por %p25, %p26
    %p28 = scmp.ne.s32.totalorder %s20, %s23
    %p29 = scmp.eq.s32.totalorder %s10, 0
    %p30 = por %p28, %p29
    %p31 = scmp.ne.s32.totalorder %s20, %s23
    %p32 = scmp.eq.s32.totalorder %s15, 1
    %p33 = por %p31, %p32
    %p34 = scmp.ne.s32.totalorder %s23, %s24
    %p35 = scmp.eq.s32.totalorder %s15, 0
    %p36 = por %p34, %p35
    %p37 = scmp.ne.s32.totalorder %s23, %s24
    %p38 = scmp.eq.s32.totalorder %s16, 1
    %p39 = por %p37, %p38
    %p41 = scmp.ne.s32.totalorder %s24, %s40
    %p42 = scmp.eq.s32.totalorder %s16, 0
    %p43 = por %p41, %p42
    %s45 = sadd.s32 %s44, 1
    %p48 = scmp.eq.s32.totalorder %s10, 1
    %p49 = scmp.ne.s32.totalorder %s44, %s46
    %p50 = scmp.eq.s32.totalorder %s10, 0
    %p51 = por %p49, %p50
    %p52 = scmp.ne.s32.totalorder %s44, %s46
    %p53 = scmp.eq.s32.totalorder %s15, 1
    %p54 = por %p52, %p53
    %p55 = scmp.ne.s32.totalorder %s46, %s47
    %p56 = scmp.eq.s32.totalorder %s15, 0
    %p57 = por %p55, %p56
    %p58 = scmp.ne.s32.totalorder %s46, %s47
    %p59 = scmp.eq.s32.totalorder %s16, 1
    %p60 = por %p58, %p59
    %p62 = scmp.ne.s32.totalorder %s47, %s61
    %p63 = scmp.eq.s32.totalorder %s16, 0
    %p64 = por %p62, %p63
    %s66 = sadd.s32 %s65, 1
    %p69 = scmp.eq.s32.totalorder %s10, 1
    %p70 = scmp.ne.s32.totalorder %s65, %s67
    %p71 = scmp.eq.s32.totalorder %s10, 0
    %p72 = por %p70, %p71
    %p73 = scmp.ne.s32.totalorder %s65, %s67
    %p74 = scmp.eq.s32.totalorder %s15, 1
    %p75 = por %p73, %p74
    %p76 = scmp.ne.s32.totalorder %s67, %s68
    %p77 = scmp.eq.s32.totalorder %s15, 0
    %p78 = por %p76, %p77
    %p79 = scmp.ne.s32.totalorder %s67, %s68
    %p80 = scmp.eq.s32.totalorder %s16, 1
    %p81 = por %p79, %p80
    %p83 = scmp.ne.s32.totalorder %s68, %s82
    %p84 = scmp.eq.s32.totalorder %s16, 0
    %p85 = por %p83, %p84
    %s87 = sadd.s32 %s86, 1
    %p90 = scmp.eq.s32.totalorder %s10, 1
    %p91 = scmp.ne.s32.totalorder %s86, %s88
    %p92 = scmp.eq.s32.totalorder %s10, 0
    %p93 = por %p91, %p92
    %p94 = scmp.ne.s32.totalorder %s86, %s88
    %p95 = scmp.eq.s32.totalorder %s15, 1
    %p96 = por %p94, %p95
    %p97 = scmp.ne.s32.totalorder %s88, %s89
    %p98 = scmp.eq.s32.totalorder %s15, 0
    %p99 = por %p97, %p98
    %p100 = scmp.ne.s32.totalorder %s88, %s89
    %p101 = scmp.eq.s32.totalorder %s16, 1
    %p102 = por %p100, %p101
    %p104 = scmp.ne.s32.totalorder %s89, %s103
    %p105 = scmp.eq.s32.totalorder %s16, 0
    %p106 = por %p104, %p105
    %s107 = ssub.s32 %s10, %s17
    %p108 = scmp.eq.s32.totalorder %s107, 0
    %s110 = sadd.s32 %s109, 1
    %s111 = scalar_select %p108, %s109, %s110
    %p114 = pneg %p108
    %p115 = scmp.eq.s32.totalorder %s10, 1
    %p116 = por %p114, %p115
    %p117 = scmp.ne.s32.totalorder %s109, %s112
    %p118 = scmp.eq.s32.totalorder %s10, 0
    %p119 = por %p117, %p118
    %p120 = scmp.ne.s32.totalorder %s109, %s112
    %p121 = scmp.eq.s32.totalorder %s15, 1
    %p122 = por %p120, %p121
    %p123 = scmp.ne.s32.totalorder %s112, %s113
    %p124 = scmp.eq.s32.totalorder %s15, 0
    %p125 = por %p123, %p124
    %p126 = scmp.ne.s32.totalorder %s112, %s113
    %p127 = scmp.eq.s32.totalorder %s16, 1
    %p128 = por %p126, %p127
    %p130 = scmp.ne.s32.totalorder %s113, %s129
    %p131 = scmp.eq.s32.totalorder %s16, 0
    %p132 = por %p130, %p131
    %p133 = scmp.le.s32.totalorder 1, %s10
    %p134 = scmp.lt.s32.totalorder %s10, 3
    %p135 = pnand %p133, %p134
    %p136 = pneg %p135
    // Predicated region
    $region9: #{_lambda_.15} parent=5 // pred_check
      _
    $region10: #{_lambda_.15} parent=5 // pred_check_branch
      %138 = sbr.rel (%p135) target = $region12
    $region11: #{_lambda_.15} parent=5 // pred_region
      %s139 = ssub.s32 %s10, 1
      // Predicated region
      $region13: #{_lambda_.15} parent=11 // pred_check
        %p140 = pneg %p57
      $region14: #{_lambda_.15} parent=11 // pred_check_branch
        %142 = sbr.rel (%p140) target = $region16
      $region15: #{_lambda_.15} parent=11 // pred_region
        _
      $region16: #{_lambda_.15} parent=11 // pred_fallthru
        _
      // Predicated region
      $region17: #{_lambda_.15} parent=11 // pred_check
        %p143 = pneg %p78
      $region18: #{_lambda_.15} parent=11 // pred_check_branch
        %145 = sbr.rel (%p143) target = $region20
      $region19: #{_lambda_.15} parent=11 // pred_region
        _
      $region20: #{_lambda_.15} parent=11 // pred_fallthru
        _
      // Predicated region
      $region21: #{_lambda_.15} parent=11 // pred_check
        %p146 = pneg %p99
      $region22: #{_lambda_.15} parent=11 // pred_check_branch
        %148 = sbr.rel (%p146) target = $region24
      $region23: #{_lambda_.15} parent=11 // pred_region
        _
      $region24: #{_lambda_.15} parent=11 // pred_fallthru
        _
    $region12: #{_lambda_.15} parent=5 // pred_fallthru
      _
    %p149 = scmp.lt.s32.totalorder %s10, 2
    // Predicated region
    $region25: #{_lambda_.15} parent=5 // pred_check
      %p150 = pneg %p149
    $region26: #{_lambda_.15} parent=5 // pred_check_branch
      %152 = sbr.rel (%p150) target = $region28
    $region27: #{_lambda_.15} parent=5 // pred_region
      // Predicated region
      $region29: #{_lambda_.15} parent=27 // pred_check
        %p153 = pneg %p30
      $region30: #{_lambda_.15} parent=27 // pred_check_branch
        %155 = sbr.rel (%p153) target = $region32
      $region31: #{_lambda_.15} parent=27 // pred_region
        %p156 = scmp.lt.s32.totalorder %s10, 1
        %s157 = scalar_select %p156, %s10, 1
        %s158 = smul.addr %s157, 2
        %s159 = smul.addr %s158, 8
        %s160 = scalar_lea.vmem %s0, %s159
      $region32: #{_lambda_.15} parent=27 // pred_fallthru
        _
    $region28: #{_lambda_.15} parent=5 // pred_fallthru
      _
    %p161 = scmp.le.s32.totalorder 1, %s10
    %p162 = scmp.lt.s32.totalorder %s10, 3
    %p163 = pnand %p161, %p162
    %p164 = pneg %p163
    // Predicated region
    $region33: #{_lambda_.15} parent=5 // pred_check
      _
    $region34: #{_lambda_.15} parent=5 // pred_check_branch
      %166 = sbr.rel (%p163) target = $region36
    $region35: #{_lambda_.15} parent=5 // pred_region
      %s167 = ssub.s32 %s10, 1
      %p168 = scmp.lt.s32.totalorder %s15, 1
      %s169 = scalar_select %p168, %s15, 1
      %s170 = smul.addr %s169, 2
      %s171 = smul.addr %s170, 8
      %s172 = scalar_lea.vmem %s0, %s171
      %p173 = pneg %p36
      %p174 = pneg %p33
      %p175 = pneg %p57
      %p176 = pneg %p54
      %p177 = pneg %p78
      %p178 = pneg %p75
      %p179 = pneg %p99
      %p180 = pneg %p96
      %p181 = pneg %p125
      %p182 = pneg %p122
      %p183 = scmp.lt.s32.totalorder %s15, 1
      %s184 = scalar_select %p183, %s15, 1
      %s185 = smul.addr %s184, 8
      %s186 = scalar_lea.vmem %s4, %s185
      %p187 = scmp.lt.s32.totalorder %s15, 1
      %s188 = scalar_select %p187, %s15, 1
      %s189 = smul.addr %s188, 2
      %s190 = smul.addr %s189, 8
      %s191 = scalar_lea.vmem %s0, %s190
      %p192 = scmp.lt.s32.totalorder %s15, 1
      %s193 = scalar_select %p192, %s15, 1
      %s194 = smul.addr %s193, 8
      %s195 = scalar_lea.vmem %s4, %s194
      %v197 = vld [vmem:[%s191] sm:$0xff]
      %v198 = vld [vmem:[%s191 + $0x8] sm:$0xff]
      %v199 = vld [vmem:[%s1] sm:$0xff]
      %201 = vrot.lane.b32.xlu0 %v197, 112
      %v202 = vpop.permute.xlu0 %201
      %204 = vrot.lane.b32.xlu0 %v197, 96
      %v205 = vpop.permute.xlu0 %204
      %207 = vrot.lane.b32.xlu0 %v197, 80
      %v208 = vpop.permute.xlu0 %207
      %v210 = vpack.c.bf16 %v197, %v197
      %v211 = vpack.c.bf16 %v202, %v202
      %v212 = vpack.c.bf16 %v205, %v205
      %v213 = vpack.c.bf16 %v208, %v208
      %215 = vrot.lane.b32.xlu0 %v198, 112
      %v216 = vpop.permute.xlu0 %215
      %218 = vrot.lane.b32.xlu0 %v198, 96
      %v219 = vpop.permute.xlu0 %218
      %221 = vrot.lane.b32.xlu0 %v198, 80
      %v222 = vpop.permute.xlu0 %221
      %v224 = vpack.c.bf16 %v198, %v198
      %v225 = vpack.c.bf16 %v216, %v216
      %v226 = vpack.c.bf16 %v219, %v219
      %v227 = vpack.c.bf16 %v222, %v222
      %229 = vrot.lane.b32.xlu0 %v199, 112
      %v230 = vpop.permute.xlu0 %229
      %232 = vrot.lane.b32.xlu0 %v199, 96
      %v233 = vpop.permute.xlu0 %232
      %235 = vrot.lane.b32.xlu0 %v199, 80
      %v236 = vpop.permute.xlu0 %235
      %v238 = vpack.c.bf16 %v199, %v199
      %v239 = vpack.c.bf16 %v230, %v230
      %v240 = vpack.c.bf16 %v233, %v233
      %v241 = vpack.c.bf16 %v236, %v236
      %v242 = vld [vmem:[%s2] sm:$0xf]
      %v245 = vunpack.c.l.s4 1966171168
      %v246 = vunpack.c.0.s8 %v245
      %v247 = vlaneseq
      %v248 = vshrl.u32 %v247, 7
      %v249 = vsub.s32 %v246, %v248
      %v250 = vrot.slane %v242, %v249
      %v251 = vcombine.high %v250, %v250
      %v253 = vunpack.c.l.s4 1966171168
      %v254 = vunpack.c.0.s8 %v253
      %v255 = vlaneseq
      %v256 = vshrl.u32 %v255, 7
      %v257 = vsub.s32 %v254, %v256
      %v258 = vrot.slane %v250, %v257
      %v260 = vunpack.c.l.s4 1966171168
      %v261 = vunpack.c.0.s8 %v260
      %v262 = vlaneseq
      %v263 = vshrl.u32 %v262, 7
      %v264 = vsub.s32 %v261, %v263
      %v265 = vrot.slane %v251, %v264
      %v266 = vcombine.high %v258, %v258
      %v267 = vcombine.high %v265, %v265
      %v268 = vld [vmem:[%s3] sm:$0xf]
      %v271 = vunpack.c.l.s4 1966171168
      %v272 = vunpack.c.0.s8 %v271
      %v273 = vlaneseq
      %v274 = vshrl.u32 %v273, 7
      %v275 = vsub.s32 %v272, %v274
      %v276 = vrot.slane %v268, %v275
      %v277 = vcombine.high %v276, %v276
      %v279 = vunpack.c.l.s4 1966171168
      %v280 = vunpack.c.0.s8 %v279
      %v281 = vlaneseq
      %v282 = vshrl.u32 %v281, 7
      %v283 = vsub.s32 %v280, %v282
      %v284 = vrot.slane %v276, %v283
      %v286 = vunpack.c.l.s4 1966171168
      %v287 = vunpack.c.0.s8 %v286
      %v288 = vlaneseq
      %v289 = vshrl.u32 %v288, 7
      %v290 = vsub.s32 %v287, %v289
      %v291 = vrot.slane %v277, %v290
      %v292 = vcombine.high %v284, %v284
      %v293 = vcombine.high %v291, %v291
      %v294 = vlaneseq
      %v295 = vshrl.u32 %v294, 7
      %v296 = vsub.s32 0, %v295
      %v297 = vrot.slane %v258, %v296
      %v298 = vlaneseq
      %v299 = vshrl.u32 %v298, 7
      %v300 = vsub.s32 0, %v299
      %v301 = vrot.slane %v265, %v300
      %v302 = vlaneseq
      %v303 = vshrl.u32 %v302, 7
      %v304 = vsub.s32 0, %v303
      %v305 = vrot.slane %v266, %v304
      %v306 = vlaneseq
      %v307 = vshrl.u32 %v306, 7
      %v308 = vsub.s32 0, %v307
      %v309 = vrot.slane %v267, %v308
      %v314 = vadd.f32 %v197, %v297
      %v315 = vadd.f32 %v202, %v301
      %v316 = vadd.f32 %v205, %v305
      %v317 = vadd.f32 %v208, %v309
      %v318 = vpack.c.bf16 %v314, %v314
      %v319 = vpack.c.bf16 %v315, %v315
      %v320 = vpack.c.bf16 %v316, %v316
      %v321 = vpack.c.bf16 %v317, %v317
      %v322 = vlaneseq
      %v323 = vshrl.u32 %v322, 7
      %v324 = vsub.s32 0, %v323
      %v325 = vrot.slane %v284, %v324
      %v326 = vlaneseq
      %v327 = vshrl.u32 %v326, 7
      %v328 = vsub.s32 0, %v327
      %v329 = vrot.slane %v291, %v328
      %v330 = vlaneseq
      %v331 = vshrl.u32 %v330, 7
      %v332 = vsub.s32 0, %v331
      %v333 = vrot.slane %v292, %v332
      %v334 = vlaneseq
      %v335 = vshrl.u32 %v334, 7
      %v336 = vsub.s32 0, %v335
      %v337 = vrot.slane %v293, %v336
      %v342 = vadd.f32 %v197, %v325
      %v343 = vadd.f32 %v202, %v329
      %v344 = vadd.f32 %v205, %v333
      %v345 = vadd.f32 %v208, %v337
      %v346 = vpack.c.bf16 %v342, %v342
      %v347 = vpack.c.bf16 %v343, %v343
      %v348 = vpack.c.bf16 %v344, %v344
      %v349 = vpack.c.bf16 %v345, %v345
      %vm350 = vcmask 130048
      %v352 = vsel %vm350, %v346, 0
      %v355 = vsel %vm350, %v238, 0
      %357 = vmatprep.subr.bf16.mxu0 0
      %358 = vmatpush1.bf16.xpose.msra.mxu0 %v355
      %359 = vmatprep.subr.bf16.mxu0 0
      %360 = vmatpush1.bf16.xpose.msra.mxu0 0
      %361 = vmatprep.subr.bf16.mxu0 0
      %362 = vmatpush1.bf16.xpose.msra.mxu0 0
      %363 = vmatprep.subr.bf16.mxu0 0
      %364 = vmatpush1.bf16.xpose.msra.mxu0 0
      %365 = vmatprep.subr.bf16.mxu0 0
      %366 = vmatpush1.bf16.xpose.msra.mxu0 0
      %367 = vmatprep.subr.bf16.mxu0 0
      %368 = vmatpush1.bf16.xpose.msra.mxu0 0
      %369 = vmatprep.subr.bf16.mxu0 0
      %370 = vmatpush1.bf16.xpose.msra.mxu0 0
      %371 = vmatprep.subr.bf16.mxu0 0
      %372 = vmatpush1.bf16.xpose.msra.mxu0 0
      %373 = vmatprep.subr.bf16.mxu0 0
      %374 = vmatpush1.bf16.xpose.msra.mxu0 0
      %375 = vmatprep.subr.bf16.mxu0 0
      %376 = vmatpush1.bf16.xpose.msra.mxu0 0
      %377 = vmatprep.subr.bf16.mxu0 0
      %378 = vmatpush1.bf16.xpose.msra.mxu0 0
      %379 = vmatprep.subr.bf16.mxu0 0
      %380 = vmatpush1.bf16.xpose.msra.mxu0 0
      %381 = vmatprep.subr.bf16.mxu0 0
      %382 = vmatpush1.bf16.xpose.msra.mxu0 0
      %383 = vmatprep.subr.bf16.mxu0 0
      %384 = vmatpush1.bf16.xpose.msra.mxu0 0
      %385 = vmatprep.subr.bf16.mxu0 0
      %386 = vmatpush1.bf16.xpose.msra.mxu0 0
      %387 = vmatprep.subr.bf16.mxu0 0
      %388 = vmatpush1.bf16.xpose.msra.mxu0 0
      %389 = vmatprep.mubr.bf16.mxu0 0
      %390 = vmatmul.mubr.bf16.gmra.mrb[0].mxu0 %v352
      %v391 = vpop.f32.mrb[0].mxu0
      %v392 = vadd.f32 0.0, %v391
      %v393 = vpop.f32.mrb[0].mxu0
      %v394 = vpop.f32.mrb[0].mxu0
      %v395 = vpop.f32.mrb[0].mxu0
      %396 = vdwg.mxu0
      %v398 = vsel %vm350, %v347, 0
      %v401 = vsel %vm350, %v239, 0
      %403 = vmatprep.subr.bf16.mxu0 0
      %404 = vmatpush1.bf16.xpose.msra.mxu0 %v401
      %405 = vmatprep.subr.bf16.mxu0 0
      %406 = vmatpush1.bf16.xpose.msra.mxu0 0
      %407 = vmatprep.subr.bf16.mxu0 0
      %408 = vmatpush1.bf16.xpose.msra.mxu0 0
      %409 = vmatprep.subr.bf16.mxu0 0
      %410 = vmatpush1.bf16.xpose.msra.mxu0 0
      %411 = vmatprep.subr.bf16.mxu0 0
      %412 = vmatpush1.bf16.xpose.msra.mxu0 0
      %413 = vmatprep.subr.bf16.mxu0 0
      %414 = vmatpush1.bf16.xpose.msra.mxu0 0
      %415 = vmatprep.subr.bf16.mxu0 0
      %416 = vmatpush1.bf16.xpose.msra.mxu0 0
      %417 = vmatprep.subr.bf16.mxu0 0
      %418 = vmatpush1.bf16.xpose.msra.mxu0 0
      %419 = vmatprep.subr.bf16.mxu0 0
      %420 = vmatpush1.bf16.xpose.msra.mxu0 0
      %421 = vmatprep.subr.bf16.mxu0 0
      %422 = vmatpush1.bf16.xpose.msra.mxu0 0
      %423 = vmatprep.subr.bf16.mxu0 0
      %424 = vmatpush1.bf16.xpose.msra.mxu0 0
      %425 = vmatprep.subr.bf16.mxu0 0
      %426 = vmatpush1.bf16.xpose.msra.mxu0 0
      %427 = vmatprep.subr.bf16.mxu0 0
      %428 = vmatpush1.bf16.xpose.msra.mxu0 0
      %429 = vmatprep.subr.bf16.mxu0 0
      %430 = vmatpush1.bf16.xpose.msra.mxu0 0
      %431 = vmatprep.subr.bf16.mxu0 0
      %432 = vmatpush1.bf16.xpose.msra.mxu0 0
      %433 = vmatprep.subr.bf16.mxu0 0
      %434 = vmatpush1.bf16.xpose.msra.mxu0 0
      %435 = vmatprep.mubr.bf16.mxu0 0
      %436 = vmatmul.mubr.bf16.gmra.mrb[0].mxu0 %v398
      %v437 = vpop.f32.mrb[0].mxu0
      %v438 = vadd.f32 0.0, %v437
      %v439 = vpop.f32.mrb[0].mxu0
      %v440 = vpop.f32.mrb[0].mxu0
      %v441 = vpop.f32.mrb[0].mxu0
      %442 = vdwg.mxu0
      %v444 = vsel %vm350, %v348, 0
      %v447 = vsel %vm350, %v240, 0
      %449 = vmatprep.subr.bf16.mxu0 0
      %450 = vmatpush1.bf16.xpose.msra.mxu0 %v447
      %451 = vmatprep.subr.bf16.mxu0 0
      %452 = vmatpush1.bf16.xpose.msra.mxu0 0
      %453 = vmatprep.subr.bf16.mxu0 0
      %454 = vmatpush1.bf16.xpose.msra.mxu0 0
      %455 = vmatprep.subr.bf16.mxu0 0
      %456 = vmatpush1.bf16.xpose.msra.mxu0 0
      %457 = vmatprep.subr.bf16.mxu0 0
      %458 = vmatpush1.bf16.xpose.msra.mxu0 0
      %459 = vmatprep.subr.bf16.mxu0 0
      %460 = vmatpush1.bf16.xpose.msra.mxu0 0
      %461 = vmatprep.subr.bf16.mxu0 0
      %462 = vmatpush1.bf16.xpose.msra.mxu0 0
      %463 = vmatprep.subr.bf16.mxu0 0
      %464 = vmatpush1.bf16.xpose.msra.mxu0 0
      %465 = vmatprep.subr.bf16.mxu0 0
      %466 = vmatpush1.bf16.xpose.msra.mxu0 0
      %467 = vmatprep.subr.bf16.mxu0 0
      %468 = vmatpush1.bf16.xpose.msra.mxu0 0
      %469 = vmatprep.subr.bf16.mxu0 0
      %470 = vmatpush1.bf16.xpose.msra.mxu0 0
      %471 = vmatprep.subr.bf16.mxu0 0
      %472 = vmatpush1.bf16.xpose.msra.mxu0 0
      %473 = vmatprep.subr.bf16.mxu0 0
      %474 = vmatpush1.bf16.xpose.msra.mxu0 0
      %475 = vmatprep.subr.bf16.mxu0 0
      %476 = vmatpush1.bf16.xpose.msra.mxu0 0
      %477 = vmatprep.subr.bf16.mxu0 0
      %478 = vmatpush1.bf16.xpose.msra.mxu0 0
      %479 = vmatprep.subr.bf16.mxu0 0
      %480 = vmatpush1.bf16.xpose.msra.mxu0 0
      %481 = vmatprep.mubr.bf16.mxu0 0
      %482 = vmatmul.mubr.bf16.gmra.mrb[0].mxu0 %v444
      %v483 = vpop.f32.mrb[0].mxu0
      %v484 = vadd.f32 0.0, %v483
      %v485 = vpop.f32.mrb[0].mxu0
      %v486 = vpop.f32.mrb[0].mxu0
      %v487 = vpop.f32.mrb[0].mxu0
      %488 = vdwg.mxu0
      %v490 = vsel %vm350, %v349, 0
      %v493 = vsel %vm350, %v241, 0
      %495 = vmatprep.subr.bf16.mxu0 0
      %496 = vmatpush1.bf16.xpose.msra.mxu0 %v493
      %497 = vmatprep.subr.bf16.mxu0 0
      %498 = vmatpush1.bf16.xpose.msra.mxu0 0
      %499 = vmatprep.subr.bf16.mxu0 0
      %500 = vmatpush1.bf16.xpose.msra.mxu0 0
      %501 = vmatprep.subr.bf16.mxu0 0
      %502 = vmatpush1.bf16.xpose.msra.mxu0 0
      %503 = vmatprep.subr.bf16.mxu0 0
      %504 = vmatpush1.bf16.xpose.msra.mxu0 0
      %505 = vmatprep.subr.bf16.mxu0 0
      %506 = vmatpush1.bf16.xpose.msra.mxu0 0
      %507 = vmatprep.subr.bf16.mxu0 0
      %508 = vmatpush1.bf16.xpose.msra.mxu0 0
      %509 = vmatprep.subr.bf16.mxu0 0
      %510 = vmatpush1.bf16.xpose.msra.mxu0 0
      %511 = vmatprep.subr.bf16.mxu0 0
      %512 = vmatpush1.bf16.xpose.msra.mxu0 0
      %513 = vmatprep.subr.bf16.mxu0 0
      %514 = vmatpush1.bf16.xpose.msra.mxu0 0
      %515 = vmatprep.subr.bf16.mxu0 0
      %516 = vmatpush1.bf16.xpose.msra.mxu0 0
      %517 = vmatprep.subr.bf16.mxu0 0
      %518 = vmatpush1.bf16.xpose.msra.mxu0 0
      %519 = vmatprep.subr.bf16.mxu0 0
      %520 = vmatpush1.bf16.xpose.msra.mxu0 0
      %521 = vmatprep.subr.bf16.mxu0 0
      %522 = vmatpush1.bf16.xpose.msra.mxu0 0
      %523 = vmatprep.subr.bf16.mxu0 0
      %524 = vmatpush1.bf16.xpose.msra.mxu0 0
      %525 = vmatprep.subr.bf16.mxu0 0
      %526 = vmatpush1.bf16.xpose.msra.mxu0 0
      %527 = vmatprep.mubr.bf16.mxu0 0
      %528 = vmatmul.mubr.bf16.gmra.mrb[0].mxu0 %v490
      %v529 = vpop.f32.mrb[0].mxu0
      %v530 = vadd.f32 0.0, %v529
      %v531 = vpop.f32.mrb[0].mxu0
      %v532 = vpop.f32.mrb[0].mxu0
      %v533 = vpop.f32.mrb[0].mxu0
      %534 = vdwg.mxu0
      %v539 = vrot.slane %v392, 1
      %v540 = vrot.slane %v438, 1
      %v541 = vrot.slane %v484, 1
      %v542 = vrot.slane %v530, 1
      %vm547 = vcmask 1046528
      %v548 = vsel %vm547, %v539, 0.0
      %v549 = vsel %vm547, %v540, 0.0
      %v550 = vsel %vm547, %v541, 0.0
      %v551 = vsel %vm547, %v542, 0.0
      %556 = vrot.lane.b32.xlu0 %v548, 9
      %v557 = vpop.permute.xlu0 %556
      %558 = vrot.lane.b32.xlu0 %v549, 9
      %v559 = vpop.permute.xlu0 %558
      %560 = vrot.lane.b32.xlu0 %v550, 9
      %v561 = vpop.permute.xlu0 %560
      %562 = vrot.lane.b32.xlu0 %v551, 9
      %v563 = vpop.permute.xlu0 %562
      %vm568 = vcmask 64512
      %v569 = vsel %vm568, %v392, 0.0
      %v570 = vsel %vm568, %v438, 0.0
      %v571 = vsel %vm568, %v484, 0.0
      %v572 = vsel %vm568, %v530, 0.0
      %vm573 = vcmask 72704
      %v574 = vsel %vm573, %v569, %v557
      %v575 = vsel %vm573, %v570, %v559
      %v576 = vsel %vm573, %v571, %v561
      %v577 = vsel %vm573, %v572, %v563
      %582 = vrot.lane.b32.xlu0 %v574, 1
      %v583 = vpop.permute.xlu0 %582
      %584 = vrot.lane.b32.xlu0 %v575, 1
      %v585 = vpop.permute.xlu0 %584
      %586 = vrot.lane.b32.xlu0 %v576, 1
      %v587 = vpop.permute.xlu0 %586
      %588 = vrot.lane.b32.xlu0 %v577, 1
      %v589 = vpop.permute.xlu0 %588
      %594 = vrot.lane.b32.xlu0 %v574, 2
      %v595 = vpop.permute.xlu0 %594
      %596 = vrot.lane.b32.xlu0 %v575, 2
      %v597 = vpop.permute.xlu0 %596
      %598 = vrot.lane.b32.xlu0 %v576, 2
      %v599 = vpop.permute.xlu0 %598
      %600 = vrot.lane.b32.xlu0 %v577, 2
      %v601 = vpop.permute.xlu0 %600
      %606 = vrot.lane.b32.xlu0 %v574, 3
      %v607 = vpop.permute.xlu0 %606
      %608 = vrot.lane.b32.xlu0 %v575, 3
      %v609 = vpop.permute.xlu0 %608
      %610 = vrot.lane.b32.xlu0 %v576, 3
      %v611 = vpop.permute.xlu0 %610
      %612 = vrot.lane.b32.xlu0 %v577, 3
      %v613 = vpop.permute.xlu0 %612
      %618 = vrot.lane.b32.xlu0 %v574, 4
      %v619 = vpop.permute.xlu0 %618
      %620 = vrot.lane.b32.xlu0 %v575, 4
      %v621 = vpop.permute.xlu0 %620
      %622 = vrot.lane.b32.xlu0 %v576, 4
      %v623 = vpop.permute.xlu0 %622
      %624 = vrot.lane.b32.xlu0 %v577, 4
      %v625 = vpop.permute.xlu0 %624
      %630 = vrot.lane.b32.xlu0 %v574, 5
      %v631 = vpop.permute.xlu0 %630
      %632 = vrot.lane.b32.xlu0 %v575, 5
      %v633 = vpop.permute.xlu0 %632
      %634 = vrot.lane.b32.xlu0 %v576, 5
      %v635 = vpop.permute.xlu0 %634
      %636 = vrot.lane.b32.xlu0 %v577, 5
      %v637 = vpop.permute.xlu0 %636
      %642 = vrot.lane.b32.xlu0 %v574, 6
      %v643 = vpop.permute.xlu0 %642
      %644 = vrot.lane.b32.xlu0 %v575, 6
      %v645 = vpop.permute.xlu0 %644
      %646 = vrot.lane.b32.xlu0 %v576, 6
      %v647 = vpop.permute.xlu0 %646
      %648 = vrot.lane.b32.xlu0 %v577, 6
      %v649 = vpop.permute.xlu0 %648
      %654 = vrot.lane.b32.xlu0 %v574, 7
      %v655 = vpop.permute.xlu0 %654
      %656 = vrot.lane.b32.xlu0 %v575, 7
      %v657 = vpop.permute.xlu0 %656
      %658 = vrot.lane.b32.xlu0 %v576, 7
      %v659 = vpop.permute.xlu0 %658
      %660 = vrot.lane.b32.xlu0 %v577, 7
      %v661 = vpop.permute.xlu0 %660
      %vm666 = vcmask 1040384
      %v667 = vsel %vm666, %v574, %v583
      %v668 = vsel %vm666, %v575, %v585
      %v669 = vsel %vm666, %v576, %v587
      %v670 = vsel %vm666, %v577, %v589
      %vm671 = vcmask 1041408
      %v672 = vsel %vm671, %v667, %v595
      %v673 = vsel %vm671, %v668, %v597
      %v674 = vsel %vm671, %v669, %v599
      %v675 = vsel %vm671, %v670, %v601
      %vm676 = vcmask 1042432
      %v677 = vsel %vm676, %v672, %v607
      %v678 = vsel %vm676, %v673, %v609
      %v679 = vsel %vm676, %v674, %v611
      %v680 = vsel %vm676, %v675, %v613
      %vm681 = vcmask 1043456
      %v682 = vsel %vm681, %v677, %v619
      %v683 = vsel %vm681, %v678, %v621
      %v684 = vsel %vm681, %v679, %v623
      %v685 = vsel %vm681, %v680, %v625
      %vm686 = vcmask 1044480
      %v687 = vsel %vm686, %v682, %v631
      %v688 = vsel %vm686, %v683, %v633
      %v689 = vsel %vm686, %v684, %v635
      %v690 = vsel %vm686, %v685, %v637
      %vm691 = vcmask 1045504
      %v692 = vsel %vm691, %v687, %v643
      %v693 = vsel %vm691, %v688, %v645
      %v694 = vsel %vm691, %v689, %v647
      %v695 = vsel %vm691, %v690, %v649
      %v696 = vsel %vm547, %v692, %v655
      %v697 = vsel %vm547, %v693, %v657
      %v698 = vsel %vm547, %v694, %v659
      %v699 = vsel %vm547, %v695, %v661
      %701 = vrot.lane.b32.xlu0 %v210, 64
      %v702 = vpop.permute.xlu0 %701
      %704 = vrot.lane.b32.xlu0 %v696, 121
      %v705 = vpop.permute.xlu0 %704
      %v708 = vsel %vm350, %v318, 0
      %v711 = vsel %vm350, %v702, 0
      %713 = vmatprep.subr.bf16.mxu0 0
      %714 = vmatpush1.bf16.xpose.msra.mxu0 %v711
      %715 = vmatprep.subr.bf16.mxu0 0
      %716 = vmatpush1.bf16.xpose.msra.mxu0 0
      %717 = vmatprep.subr.bf16.mxu0 0
      %718 = vmatpush1.bf16.xpose.msra.mxu0 0
      %719 = vmatprep.subr.bf16.mxu0 0
      %720 = vmatpush1.bf16.xpose.msra.mxu0 0
      %721 = vmatprep.subr.bf16.mxu0 0
      %722 = vmatpush1.bf16.xpose.msra.mxu0 0
      %723 = vmatprep.subr.bf16.mxu0 0
      %724 = vmatpush1.bf16.xpose.msra.mxu0 0
      %725 = vmatprep.subr.bf16.mxu0 0
      %726 = vmatpush1.bf16.xpose.msra.mxu0 0
      %727 = vmatprep.subr.bf16.mxu0 0
      %728 = vmatpush1.bf16.xpose.msra.mxu0 0
      %729 = vmatprep.subr.bf16.mxu0 0
      %730 = vmatpush1.bf16.xpose.msra.mxu0 0
      %731 = vmatprep.subr.bf16.mxu0 0
      %732 = vmatpush1.bf16.xpose.msra.mxu0 0
      %733 = vmatprep.subr.bf16.mxu0 0
      %734 = vmatpush1.bf16.xpose.msra.mxu0 0
      %735 = vmatprep.subr.bf16.mxu0 0
      %736 = vmatpush1.bf16.xpose.msra.mxu0 0
      %737 = vmatprep.subr.bf16.mxu0 0
      %738 = vmatpush1.bf16.xpose.msra.mxu0 0
      %739 = vmatprep.subr.bf16.mxu0 0
      %740 = vmatpush1.bf16.xpose.msra.mxu0 0
      %741 = vmatprep.subr.bf16.mxu0 0
      %742 = vmatpush1.bf16.xpose.msra.mxu0 0
      %743 = vmatprep.subr.bf16.mxu0 0
      %744 = vmatpush1.bf16.xpose.msra.mxu0 0
      %745 = vmatprep.mubr.bf16.mxu0 0
      %746 = vmatmul.mubr.bf16.gmra.mrb[0].mxu0 %v708
      %v747 = vpop.f32.mrb[0].mxu0
      %v748 = vadd.f32 %v705, %v747
      %v749 = vpop.f32.mrb[0].mxu0
      %v750 = vpop.f32.mrb[0].mxu0
      %v751 = vpop.f32.mrb[0].mxu0
      %752 = vdwg.mxu0
      %754 = vrot.lane.b32.xlu0 %v211, 64
      %v755 = vpop.permute.xlu0 %754
      %757 = vrot.lane.b32.xlu0 %v697, 121
      %v758 = vpop.permute.xlu0 %757
      %v761 = vsel %vm350, %v319, 0
      %v764 = vsel %vm350, %v755, 0
      %766 = vmatprep.subr.bf16.mxu0 0
      %767 = vmatpush1.bf16.xpose.msra.mxu0 %v764
      %768 = vmatprep.subr.bf16.mxu0 0
      %769 = vmatpush1.bf16.xpose.msra.mxu0 0
      %770 = vmatprep.subr.bf16.mxu0 0
      %771 = vmatpush1.bf16.xpose.msra.mxu0 0
      %772 = vmatprep.subr.bf16.mxu0 0
      %773 = vmatpush1.bf16.xpose.msra.mxu0 0
      %774 = vmatprep.subr.bf16.mxu0 0
      %775 = vmatpush1.bf16.xpose.msra.mxu0 0
      %776 = vmatprep.subr.bf16.mxu0 0
      %777 = vmatpush1.bf16.xpose.msra.mxu0 0
      %778 = vmatprep.subr.bf16.mxu0 0
      %779 = vmatpush1.bf16.xpose.msra.mxu0 0
      %780 = vmatprep.subr.bf16.mxu0 0
      %781 = vmatpush1.bf16.xpose.msra.mxu0 0
      %782 = vmatprep.subr.bf16.mxu0 0
      %783 = vmatpush1.bf16.xpose.msra.mxu0 0
      %784 = vmatprep.subr.bf16.mxu0 0
      %785 = vmatpush1.bf16.xpose.msra.mxu0 0
      %786 = vmatprep.subr.bf16.mxu0 0
      %787 = vmatpush1.bf16.xpose.msra.mxu0 0
      %788 = vmatprep.subr.bf16.mxu0 0
      %789 = vmatpush1.bf16.xpose.msra.mxu0 0
      %790 = vmatprep.subr.bf16.mxu0 0
      %791 = vmatpush1.bf16.xpose.msra.mxu0 0
      %792 = vmatprep.subr.bf16.mxu0 0
      %793 = vmatpush1.bf16.xpose.msra.mxu0 0
      %794 = vmatprep.subr.bf16.mxu0 0
      %795 = vmatpush1.bf16.xpose.msra.mxu0 0
      %796 = vmatprep.subr.bf16.mxu0 0
      %797 = vmatpush1.bf16.xpose.msra.mxu0 0
      %798 = vmatprep.mubr.bf16.mxu0 0
      %799 = vmatmul.mubr.bf16.gmra.mrb[0].mxu0 %v761
      %v800 = vpop.f32.mrb[0].mxu0
      %v801 = vadd.f32 %v758, %v800
      %v802 = vpop.f32.mrb[0].mxu0
      %v803 = vpop.f32.mrb[0].mxu0
      %v804 = vpop.f32.mrb[0].mxu0
      %805 = vdwg.mxu0
      %807 = vrot.lane.b32.xlu0 %v212, 64
      %v808 = vpop.permute.xlu0 %807
      %810 = vrot.lane.b32.xlu0 %v698, 121
      %v811 = vpop.permute.xlu0 %810
      %v814 = vsel %vm350, %v320, 0
      %v817 = vsel %vm350, %v808, 0
      %819 = vmatprep.subr.bf16.mxu0 0
      %820 = vmatpush1.bf16.xpose.msra.mxu0 %v817
      %821 = vmatprep.subr.bf16.mxu0 0
      %822 = vmatpush1.bf16.xpose.msra.mxu0 0
      %823 = vmatprep.subr.bf16.mxu0 0
      %824 = vmatpush1.bf16.xpose.msra.mxu0 0
      %825 = vmatprep.subr.bf16.mxu0 0
      %826 = vmatpush1.bf16.xpose.msra.mxu0 0
      %827 = vmatprep.subr.bf16.mxu0 0
      %828 = vmatpush1.bf16.xpose.msra.mxu0 0
      %829 = vmatprep.subr.bf16.mxu0 0
      %830 = vmatpush1.bf16.xpose.msra.mxu0 0
      %831 = vmatprep.subr.bf16.mxu0 0
      %832 = vmatpush1.bf16.xpose.msra.mxu0 0
      %833 = vmatprep.subr.bf16.mxu0 0
      %834 = vmatpush1.bf16.xpose.msra.mxu0 0
      %835 = vmatprep.subr.bf16.mxu0 0
      %836 = vmatpush1.bf16.xpose.msra.mxu0 0
      %837 = vmatprep.subr.bf16.mxu0 0
      %838 = vmatpush1.bf16.xpose.msra.mxu0 0
      %839 = vmatprep.subr.bf16.mxu0 0
      %840 = vmatpush1.bf16.xpose.msra.mxu0 0
      %841 = vmatprep.subr.bf16.mxu0 0
      %842 = vmatpush1.bf16.xpose.msra.mxu0 0
      %843 = vmatprep.subr.bf16.mxu0 0
      %844 = vmatpush1.bf16.xpose.msra.mxu0 0
      %845 = vmatprep.subr.bf16.mxu0 0
      %846 = vmatpush1.bf16.xpose.msra.mxu0 0
      %847 = vmatprep.subr.bf16.mxu0 0
      %848 = vmatpush1.bf16.xpose.msra.mxu0 0
      %849 = vmatprep.subr.bf16.mxu0 0
      %850 = vmatpush1.bf16.xpose.msra.mxu0 0
      %851 = vmatprep.mubr.bf16.mxu0 0
      %852 = vmatmul.mubr.bf16.gmra.mrb[0].mxu0 %v814
      %v853 = vpop.f32.mrb[0].mxu0
      %v854 = vadd.f32 %v811, %v853
      %v855 = vpop.f32.mrb[0].mxu0
      %v856 = vpop.f32.mrb[0].mxu0
      %v857 = vpop.f32.mrb[0].mxu0
      %858 = vdwg.mxu0
      %860 = vrot.lane.b32.xlu0 %v213, 64
      %v861 = vpop.permute.xlu0 %860
      %863 = vrot.lane.b32.xlu0 %v699, 121
      %v864 = vpop.permute.xlu0 %863
      %v867 = vsel %vm350, %v321, 0
      %v870 = vsel %vm350, %v861, 0
      %872 = vmatprep.subr.bf16.mxu0 0
      %873 = vmatpush1.bf16.xpose.msra.mxu0 %v870
      %874 = vmatprep.subr.bf16.mxu0 0
      %875 = vmatpush1.bf16.xpose.msra.mxu0 0
      %876 = vmatprep.subr.bf16.mxu0 0
      %877 = vmatpush1.bf16.xpose.msra.mxu0 0
      %878 = vmatprep.subr.bf16.mxu0 0
      %879 = vmatpush1.bf16.xpose.msra.mxu0 0
      %880 = vmatprep.subr.bf16.mxu0 0
      %881 = vmatpush1.bf16.xpose.msra.mxu0 0
      %882 = vmatprep.subr.bf16.mxu0 0
      %883 = vmatpush1.bf16.xpose.msra.mxu0 0
      %884 = vmatprep.subr.bf16.mxu0 0
      %885 = vmatpush1.bf16.xpose.msra.mxu0 0
      %886 = vmatprep.subr.bf16.mxu0 0
      %887 = vmatpush1.bf16.xpose.msra.mxu0 0
      %888 = vmatprep.subr.bf16.mxu0 0
      %889 = vmatpush1.bf16.xpose.msra.mxu0 0
      %890 = vmatprep.subr.bf16.mxu0 0
      %891 = vmatpush1.bf16.xpose.msra.mxu0 0
      %892 = vmatprep.subr.bf16.mxu0 0
      %893 = vmatpush1.bf16.xpose.msra.mxu0 0
      %894 = vmatprep.subr.bf16.mxu0 0
      %895 = vmatpush1.bf16.xpose.msra.mxu0 0
      %896 = vmatprep.subr.bf16.mxu0 0
      %897 = vmatpush1.bf16.xpose.msra.mxu0 0
      %898 = vmatprep.subr.bf16.mxu0 0
      %899 = vmatpush1.bf16.xpose.msra.mxu0 0
      %900 = vmatprep.subr.bf16.mxu0 0
      %901 = vmatpush1.bf16.xpose.msra.mxu0 0
      %902 = vmatprep.subr.bf16.mxu0 0
      %903 = vmatpush1.bf16.xpose.msra.mxu0 0
      %904 = vmatprep.mubr.bf16.mxu0 0
      %905 = vmatmul.mubr.bf16.gmra.mrb[0].mxu0 %v867
      %v906 = vpop.f32.mrb[0].mxu0
      %v907 = vadd.f32 %v864, %v906
      %v908 = vpop.f32.mrb[0].mxu0
      %v909 = vpop.f32.mrb[0].mxu0
      %v910 = vpop.f32.mrb[0].mxu0
      %911 = vdwg.mxu0
      %v912 = vmul.f32 %v748, 0.125
      %v913 = vmul.f32 %v801, 0.125
      %v914 = vmul.f32 %v854, 0.125
      %v915 = vmul.f32 %v907, 0.125
      %v916 = vsel %vm568, %v912, -inf
      %917 = vmax.xlane.f32.xlu0 %v916
      %v918 = vpop.xlane.xlu0 %917
      %v919 = vsel %vm568, %v913, -inf
      %920 = vmax.xlane.f32.xlu0 %v919
      %v921 = vpop.xlane.xlu0 %920
      %v922 = vsel %vm568, %v914, -inf
      %923 = vmax.xlane.f32.xlu0 %v922
      %v924 = vpop.xlane.xlu0 %923
      %v925 = vsel %vm568, %v915, -inf
      %926 = vmax.xlane.f32.xlu0 %v925
      %v927 = vpop.xlane.xlu0 %926
      %v928 = vsub.f32 %v912, %v918
      %v929 = vsub.f32 %v913, %v921
      %v930 = vsub.f32 %v914, %v924
      %v931 = vsub.f32 %v915, %v927
      %v932 = vmul.f32 %v928, 1.442695
      %v933 = vpow.pop %v932
      %v934 = vmul.f32 %v929, 1.442695
      %v935 = vpow.pop %v934
      %v936 = vmul.f32 %v930, 1.442695
      %v937 = vpow.pop %v936
      %v938 = vmul.f32 %v931, 1.442695
      %v939 = vpow.pop %v938
      %v940 = vsel %vm568, %v933, 0.0
      %941 = vadd.xlane.f32.xlu0 %v940
      %v942 = vpop.xlane.xlu0 %941
      %v943 = vsel %vm568, %v935, 0.0
      %944 = vadd.xlane.f32.xlu0 %v943
      %v945 = vpop.xlane.xlu0 %944
      %v946 = vsel %vm568, %v937, 0.0
      %947 = vadd.xlane.f32.xlu0 %v946
      %v948 = vpop.xlane.xlu0 %947
      %v949 = vsel %vm568, %v939, 0.0
      %950 = vadd.xlane.f32.xlu0 %v949
      %v951 = vpop.xlane.xlu0 %950
      %v952 = vrcp.pop %v942
      %v953 = vrcp.pop %v945
      %v954 = vrcp.pop %v948
      %v955 = vrcp.pop %v951
      %v956 = vmul.f32 %v933, %v952
      %v957 = vmul.f32 %v935, %v953
      %v958 = vmul.f32 %v937, %v954
      %v959 = vmul.f32 %v939, %v955
      %v960 = vpack.c.bf16 %v956, %v956
      %v961 = vpack.c.bf16 %v957, %v957
      %v962 = vpack.c.bf16 %v958, %v958
      %v963 = vpack.c.bf16 %v959, %v959
      %v965 = vsel %vm568, %v960, 0
      %v968 = vsel %vm681, %v224, 0
      %970 = vmatprep.subr.bf16.mxu0 0
      %971 = vmatpush1.bf16.msra.mxu0 %v968
      %972 = vmatprep.subr.bf16.mxu0 0
      %973 = vmatpush1.bf16.msra.mxu0 0
      %974 = vmatprep.subr.bf16.mxu0 0
      %975 = vmatpush1.bf16.msra.mxu0 0
      %976 = vmatprep.subr.bf16.mxu0 0
      %977 = vmatpush1.bf16.msra.mxu0 0
      %978 = vmatprep.subr.bf16.mxu0 0
      %979 = vmatpush1.bf16.msra.mxu0 0
      %980 = vmatprep.subr.bf16.mxu0 0
      %981 = vmatpush1.bf16.msra.mxu0 0
      %982 = vmatprep.subr.bf16.mxu0 0
      %983 = vmatpush1.bf16.msra.mxu0 0
      %984 = vmatprep.subr.bf16.mxu0 0
      %985 = vmatpush1.bf16.msra.mxu0 0
      %986 = vmatprep.subr.bf16.mxu0 0
      %987 = vmatpush1.bf16.msra.mxu0 0
      %988 = vmatprep.subr.bf16.mxu0 0
      %989 = vmatpush1.bf16.msra.mxu0 0
      %990 = vmatprep.subr.bf16.mxu0 0
      %991 = vmatpush1.bf16.msra.mxu0 0
      %992 = vmatprep.subr.bf16.mxu0 0
      %993 = vmatpush1.bf16.msra.mxu0 0
      %994 = vmatprep.subr.bf16.mxu0 0
      %995 = vmatpush1.bf16.msra.mxu0 0
      %996 = vmatprep.subr.bf16.mxu0 0
      %997 = vmatpush1.bf16.msra.mxu0 0
      %998 = vmatprep.subr.bf16.mxu0 0
      %999 = vmatpush1.bf16.msra.mxu0 0
      %1000 = vmatprep.subr.bf16.mxu0 0
      %1001 = vmatpush1.bf16.msra.mxu0 0
      %1002 = vmatprep.mubr.bf16.mxu0 0
      %1003 = vmatmul.mubr.bf16.gmra.mrb[0].mxu0 %v965
      %v1004 = vpop.f32.mrb[0].mxu0
      %v1005 = vadd.f32 0.0, %v1004
      %v1006 = vpop.f32.mrb[0].mxu0
      %v1007 = vpop.f32.mrb[0].mxu0
      %v1008 = vpop.f32.mrb[0].mxu0
      %1009 = vdwg.mxu0
      %v1011 = vsel %vm568, %v961, 0
      %v1014 = vsel %vm681, %v225, 0
      %1016 = vmatprep.subr.bf16.mxu0 0
      %1017 = vmatpush1.bf16.msra.mxu0 %v1014
      %1018 = vmatprep.subr.bf16.mxu0 0
      %1019 = vmatpush1.bf16.msra.mxu0 0
      %1020 = vmatprep.subr.bf16.mxu0 0
      %1021 = vmatpush1.bf16.msra.mxu0 0
      %1022 = vmatprep.subr.bf16.mxu0 0
      %1023 = vmatpush1.bf16.msra.mxu0 0
      %1024 = vmatprep.subr.bf16.mxu0 0
      %1025 = vmatpush1.bf16.msra.mxu0 0
      %1026 = vmatprep.subr.bf16.mxu0 0
      %1027 = vmatpush1.bf16.msra.mxu0 0
      %1028 = vmatprep.subr.bf16.mxu0 0
      %1029 = vmatpush1.bf16.msra.mxu0 0
      %1030 = vmatprep.subr.bf16.mxu0 0
      %1031 = vmatpush1.bf16.msra.mxu0 0
      %1032 = vmatprep.subr.bf16.mxu0 0
      %1033 = vmatpush1.bf16.msra.mxu0 0
      %1034 = vmatprep.subr.bf16.mxu0 0
      %1035 = vmatpush1.bf16.msra.mxu0 0
      %1036 = vmatprep.subr.bf16.mxu0 0
      %1037 = vmatpush1.bf16.msra.mxu0 0
      %1038 = vmatprep.subr.bf16.mxu0 0
      %1039 = vmatpush1.bf16.msra.mxu0 0
      %1040 = vmatprep.subr.bf16.mxu0 0
      %1041 = vmatpush1.bf16.msra.mxu0 0
      %1042 = vmatprep.subr.bf16.mxu0 0
      %1043 = vmatpush1.bf16.msra.mxu0 0
      %1044 = vmatprep.subr.bf16.mxu0 0
      %1045 = vmatpush1.bf16.msra.mxu0 0
      %1046 = vmatprep.subr.bf16.mxu0 0
      %1047 = vmatpush1.bf16.msra.mxu0 0
      %1048 = vmatprep.mubr.bf16.mxu0 0
      %1049 = vmatmul.mubr.bf16.gmra.mrb[0].mxu0 %v1011
      %v1050 = vpop.f32.mrb[0].mxu0
      %v1051 = vadd.f32 0.0, %v1050
      %v1052 = vpop.f32.mrb[0].mxu0
      %v1053 = vpop.f32.mrb[0].mxu0
      %v1054 = vpop.f32.mrb[0].mxu0
      %1055 = vdwg.mxu0
      %v1057 = vsel %vm568, %v962, 0
      %v1060 = vsel %vm681, %v226, 0
      %1062 = vmatprep.subr.bf16.mxu0 0
      %1063 = vmatpush1.bf16.msra.mxu0 %v1060
      %1064 = vmatprep.subr.bf16.mxu0 0
      %1065 = vmatpush1.bf16.msra.mxu0 0
      %1066 = vmatprep.subr.bf16.mxu0 0
      %1067 = vmatpush1.bf16.msra.mxu0 0
      %1068 = vmatprep.subr.bf16.mxu0 0
      %1069 = vmatpush1.bf16.msra.mxu0 0
      %1070 = vmatprep.subr.bf16.mxu0 0
      %1071 = vmatpush1.bf16.msra.mxu0 0
      %1072 = vmatprep.subr.bf16.mxu0 0
      %1073 = vmatpush1.bf16.msra.mxu0 0
      %1074 = vmatprep.subr.bf16.mxu0 0
      %1075 = vmatpush1.bf16.msra.mxu0 0
      %1076 = vmatprep.subr.bf16.mxu0 0
      %1077 = vmatpush1.bf16.msra.mxu0 0
      %1078 = vmatprep.subr.bf16.mxu0 0
      %1079 = vmatpush1.bf16.msra.mxu0 0
      %1080 = vmatprep.subr.bf16.mxu0 0
      %1081 = vmatpush1.bf16.msra.mxu0 0
      %1082 = vmatprep.subr.bf16.mxu0 0
      %1083 = vmatpush1.bf16.msra.mxu0 0
      %1084 = vmatprep.subr.bf16.mxu0 0
      %1085 = vmatpush1.bf16.msra.mxu0 0
      %1086 = vmatprep.subr.bf16.mxu0 0
      %1087 = vmatpush1.bf16.msra.mxu0 0
      %1088 = vmatprep.subr.bf16.mxu0 0
      %1089 = vmatpush1.bf16.msra.mxu0 0
      %1090 = vmatprep.subr.bf16.mxu0 0
      %1091 = vmatpush1.bf16.msra.mxu0 0
      %1092 = vmatprep.subr.bf16.mxu0 0
      %1093 = vmatpush1.bf16.msra.mxu0 0
      %1094 = vmatprep.mubr.bf16.mxu0 0
      %1095 = vmatmul.mubr.bf16.gmra.mrb[0].mxu0 %v1057
      %v1096 = vpop.f32.mrb[0].mxu0
      %v1097 = vadd.f32 0.0, %v1096
      %v1098 = vpop.f32.mrb[0].mxu0
      %v1099 = vpop.f32.mrb[0].mxu0
      %v1100 = vpop.f32.mrb[0].mxu0
      %1101 = vdwg.mxu0
      %v1103 = vsel %vm568, %v963, 0
      %v1106 = vsel %vm681, %v227, 0
      %1108 = vmatprep.subr.bf16.mxu0 0
      %1109 = vmatpush1.bf16.msra.mxu0 %v1106
      %1110 = vmatprep.subr.bf16.mxu0 0
      %1111 = vmatpush1.bf16.msra.mxu0 0
      %1112 = vmatprep.subr.bf16.mxu0 0
      %1113 = vmatpush1.bf16.msra.mxu0 0
      %1114 = vmatprep.subr.bf16.mxu0 0
      %1115 = vmatpush1.bf16.msra.mxu0 0
      %1116 = vmatprep.subr.bf16.mxu0 0
      %1117 = vmatpush1.bf16.msra.mxu0 0
      %1118 = vmatprep.subr.bf16.mxu0 0
      %1119 = vmatpush1.bf16.msra.mxu0 0
      %1120 = vmatprep.subr.bf16.mxu0 0
      %1121 = vmatpush1.bf16.msra.mxu0 0
      %1122 = vmatprep.subr.bf16.mxu0 0
      %1123 = vmatpush1.bf16.msra.mxu0 0
      %1124 = vmatprep.subr.bf16.mxu0 0
      %1125 = vmatpush1.bf16.msra.mxu0 0
      %1126 = vmatprep.subr.bf16.mxu0 0
      %1127 = vmatpush1.bf16.msra.mxu0 0
      %1128 = vmatprep.subr.bf16.mxu0 0
      %1129 = vmatpush1.bf16.msra.mxu0 0
      %1130 = vmatprep.subr.bf16.mxu0 0
      %1131 = vmatpush1.bf16.msra.mxu0 0
      %1132 = vmatprep.subr.bf16.mxu0 0
      %1133 = vmatpush1.bf16.msra.mxu0 0
      %1134 = vmatprep.subr.bf16.mxu0 0
      %1135 = vmatpush1.bf16.msra.mxu0 0
      %1136 = vmatprep.subr.bf16.mxu0 0
      %1137 = vmatpush1.bf16.msra.mxu0 0
      %1138 = vmatprep.subr.bf16.mxu0 0
      %1139 = vmatpush1.bf16.msra.mxu0 0
      %1140 = vmatprep.mubr.bf16.mxu0 0
      %1141 = vmatmul.mubr.bf16.gmra.mrb[0].mxu0 %v1103
      %v1142 = vpop.f32.mrb[0].mxu0
      %v1143 = vadd.f32 0.0, %v1142
      %v1144 = vpop.f32.mrb[0].mxu0
      %v1145 = vpop.f32.mrb[0].mxu0
      %v1146 = vpop.f32.mrb[0].mxu0
      %1147 = vdwg.mxu0
      %1149 = vrot.lane.b32.xlu0 %v1051, 16
      %v1150 = vpop.permute.xlu0 %1149
      %1153 = vrot.lane.b32.xlu0 %v1097, 32
      %v1154 = vpop.permute.xlu0 %1153
      %1157 = vrot.lane.b32.xlu0 %v1143, 48
      %v1158 = vpop.permute.xlu0 %1157
      %v1160 = vsel %vm350, %v1005, %v1150
      %vm1161 = vcmask 261120
      %v1162 = vsel %vm1161, %v1160, %v1154
      %vm1163 = vcmask 392192
      %v1164 = vsel %vm1163, %v1162, %v1158
      %vm1165 = vcmask 523264
      %1166 = vst.msk [vmem:[%s195] sm:$0xff] %vm1165, %v1164
      %p1167 = scmp.lt.s32.totalorder %s15, 1
      %s1168 = scalar_select %p1167, %s15, 1
      %s1169 = smul.addr %s1168, 8
      %s1170 = scalar_lea.vmem %s4, %s1169
      // Predicated region
      $region37: #{_lambda_.15} parent=35 // pred_check
        %p1171 = pneg %p122
      $region38: #{_lambda_.15} parent=35 // pred_check_branch
        %1173 = sbr.rel (%p1171) target = $region40
      $region39: #{_lambda_.15} parent=35 // pred_region
        _
      $region40: #{_lambda_.15} parent=35 // pred_fallthru
        _
    $region36: #{_lambda_.15} parent=5 // pred_fallthru
      _
    %p1174 = scmp.le.s32.totalorder 2, %s10
    // Predicated region
    $region41: #{_lambda_.15} parent=5 // pred_check
      %p1175 = pneg %p1174
    $region42: #{_lambda_.15} parent=5 // pred_check_branch
      %1177 = sbr.rel (%p1175) target = $region44
    $region43: #{_lambda_.15} parent=5 // pred_region
      %s1178 = ssub.s32 %s10, 2
      // Predicated region
      $region45: #{_lambda_.15} parent=43 // pred_check
        %p1179 = pneg %p128
      $region46: #{_lambda_.15} parent=43 // pred_check_branch
        %1181 = sbr.rel (%p1179) target = $region48
      $region47: #{_lambda_.15} parent=43 // pred_region
        %p1182 = scmp.lt.s32.totalorder %s16, 1
        %s1183 = scalar_select %p1182, %s16, 1
        %s1184 = smul.addr %s1183, 8
        %s1185 = scalar_lea.vmem %s4, %s1184
      $region48: #{_lambda_.15} parent=43 // pred_fallthru
        _
    $region44: #{_lambda_.15} parent=5 // pred_fallthru
      _
  $region6: #{_lambda_.15} parent=0 // loop_footer
    %s14 = sadd.s32 1, %s10
  $region7: #{_lambda_.15} parent=0 // loop_footer_branch
    %9 = sbr.rel target = $region3
  $region8: #{_lambda_.15} parent=0 // loop_exit
    _

</llo_original>
